<compile_context>
chip_gen: v6e
topology: v6e:2x2x1
jax: 0.10.0
libtpu: 0.0.40
codegen_flags: <defaults>
</compile_context>

<pallas_src>
import functools
import math

import jax
import jax.numpy as jnp
from jax.experimental import pallas as pl
from jax.experimental.pallas import tpu as pltpu

NEG_BIG = -1.0e30


def _round_up(x, m):
    return ((x + m - 1) // m) * m


def _decode_kernel(L, use_tanh, C,
                   # inputs
                   x0_ref, h0_ref, c0_ref, emb_ref, eg_ref, ep_ref,
                   wi_ref, wh_ref, b_ref,
                   wq_g_ref, bq_g_ref, v_g_ref,
                   wq_p_ref, bq_p_ref, v_p_ref,
                   # outputs
                   probs_ref, idx_ref, hN_ref, cN_ref,
                   # scratch (persists across grid steps)
                   x_scr, h_scr, c_scr, mask_scr):
    t = pl.program_id(0)

    # ---- step-0 init of the recurrent state held in VMEM ----
    @pl.when(t == 0)
    def _init():
        x_scr[...] = x0_ref[...]
        h_scr[...] = h0_ref[...]
        c_scr[...] = c0_ref[...]
        lane = jax.lax.broadcasted_iota(jnp.int32, mask_scr.shape, 1)
        # positions >= L are padding -> permanently masked
        mask_scr[...] = jnp.where(lane >= L, 1.0, 0.0).astype(jnp.float32)

    x = x_scr[...]          # [B, E]
    hx = h_scr[...]         # [B, H]
    cx = c_scr[...]         # [B, H]
    mask = mask_scr[...]    # [B, LP]

    # ---- LSTM cell: per-gate weight slabs, bf16 operands, f32 accumulation ----
    xb = x.astype(jnp.bfloat16)
    hb = hx.astype(jnp.bfloat16)
    gates = []
    for k in range(4):      # unrolled: i, f, g, o
        g = (jnp.dot(xb, wi_ref[k], preferred_element_type=jnp.float32)
             + jnp.dot(hb, wh_ref[k], preferred_element_type=jnp.float32)
             + b_ref[k])
        gates.append(g)
    ingate = jax.nn.sigmoid(gates[0])
    forgetgate = jax.nn.sigmoid(gates[1])
    cellgate = jnp.tanh(gates[2])
    outgate = jax.nn.sigmoid(gates[3])
    cy = forgetgate * cx + ingate * cellgate    # [B, H]
    hy = outgate * jnp.tanh(cy)                 # [B, H]

    def attn_scores(q_in, wq, bq, v, e):
        # project_query; e (= project_ref(ctx)) is precomputed & passed in.
        q = jnp.dot(q_in.astype(jnp.bfloat16), wq,
                    preferred_element_type=jnp.float32) + bq      # [B, H]
        tsc = jnp.tanh(q[:, None, :] + e)                         # [B, LP, H]
        # u[b, l] = v . tanh(q + e[l])  -> VPU multiply + lane reduce
        return jnp.sum(tsc * v[None, :, :], axis=-1)              # [B, LP]

    def masked_softmax(logits):
        lg = jnp.where(mask > 0.0, NEG_BIG, logits)
        m = jnp.max(lg, axis=-1, keepdims=True)
        ex = jnp.exp(lg - m)
        denom = jnp.sum(ex, axis=-1, keepdims=True)
        return ex * pl.reciprocal(denom, approx=True)

    # ---- glimpse attention (n_glimpses = 1, use_tanh=False) ----
    e_g = eg_ref[...]                                             # [B, LP, H]
    u_g = attn_scores(hy, wq_g_ref[...], bq_g_ref[...], v_g_ref[...], e_g)
    p_g = masked_softmax(u_g)                                     # [B, LP]
    g_l = jnp.sum(p_g[:, :, None] * e_g, axis=1)                  # [B, H]

    # ---- pointer attention ----
    e_p = ep_ref[...]
    u_p = attn_scores(g_l, wq_p_ref[...], bq_p_ref[...], v_p_ref[...], e_p)
    logits = (C * jnp.tanh(u_p)) if use_tanh else u_p
    probs = masked_softmax(logits)                                # [B, LP]

    # ---- greedy argmax (first max index), next-input gather, mask update ----
    lane = jax.lax.broadcasted_iota(jnp.int32, probs.shape, 1)
    mx = jnp.max(probs, axis=-1, keepdims=True)
    big_idx = probs.shape[-1]
    idx = jnp.min(jnp.where(probs == mx, lane, big_idx),
                  axis=-1, keepdims=True)                         # [B, 1] int32
    sel = (lane == idx).astype(jnp.float32)                       # one-hot [B, LP]
    x_new = jnp.sum(sel[:, :, None] * emb_ref[...], axis=1)       # [B, E]

    # ---- outputs ----
    probs_ref[0] = probs
    idx_ref[0] = idx
    hN_ref[...] = hy     # resident output (constant index map) -> final value
    cN_ref[...] = cy

    # ---- carry state to next step ----
    x_scr[...] = x_new
    h_scr[...] = hy
    c_scr[...] = cy
    mask_scr[...] = jnp.maximum(mask, sel)


def make_decode_call(B, L, LP, E, H, T, use_tanh, C):
    kernel = functools.partial(_decode_kernel, L, bool(use_tanh), float(C))

    const2 = lambda t: (0, 0)
    const3 = lambda t: (0, 0, 0)

    in_specs = [
        pl.BlockSpec((B, E), const2),        # x0 (initial decoder input)
        pl.BlockSpec((B, H), const2),        # h0
        pl.BlockSpec((B, H), const2),        # c0
        pl.BlockSpec((B, LP, E), const3),    # embedded_inputs  [B, LP, E]
        pl.BlockSpec((B, LP, H), const3),    # e_g (precomputed glimpse ref proj)
        pl.BlockSpec((B, LP, H), const3),    # e_p (precomputed pointer ref proj)
        pl.BlockSpec((4, E, H), const3),     # W_in per gate  (bf16)
        pl.BlockSpec((4, H, H), const3),     # W_hid per gate (bf16)
        pl.BlockSpec((4, 1, H), const3),     # b_in + b_hid per gate (f32)
        pl.BlockSpec((H, H), const2),        # glimpse Wq (bf16)
        pl.BlockSpec((1, H), const2),        # glimpse bq
        pl.BlockSpec((1, H), const2),        # glimpse v
        pl.BlockSpec((H, H), const2),        # pointer Wq (bf16)
        pl.BlockSpec((1, H), const2),        # pointer bq
        pl.BlockSpec((1, H), const2),        # pointer v
    ]
    out_specs = (
        pl.BlockSpec((1, B, LP), lambda t: (t, 0, 0)),   # per-step probs
        pl.BlockSpec((1, B, 1), lambda t: (t, 0, 0)),    # per-step greedy idx
        pl.BlockSpec((B, H), const2),                    # final h
        pl.BlockSpec((B, H), const2),                    # final c
    )
    out_shape = (
        jax.ShapeDtypeStruct((T, B, LP), jnp.float32),
        jax.ShapeDtypeStruct((T, B, 1), jnp.int32),
        jax.ShapeDtypeStruct((B, H), jnp.float32),
        jax.ShapeDtypeStruct((B, H), jnp.float32),
    )
    scratch = [
        pltpu.VMEM((B, E), jnp.float32),    # x carry
        pltpu.VMEM((B, H), jnp.float32),    # h carry
        pltpu.VMEM((B, H), jnp.float32),    # c carry
        pltpu.VMEM((B, LP), jnp.float32),   # mask carry
    ]
    return pl.pallas_call(
        kernel,
        grid=(T,),
        in_specs=in_specs,
        out_specs=out_specs,
        out_shape=out_shape,
        scratch_shapes=scratch,
        compiler_params=pltpu.CompilerParams(
            dimension_semantics=("arbitrary",)),   # sequential decode steps
    )


def decoder_forward(params, decoder_input, embedded_inputs, hidden, context,
                    max_length, decode_type="greedy", use_tanh=True, C=10.0):
    """Mirrors Decoder.forward (greedy decode).

    decoder_input:   [B, E]
    embedded_inputs: [L, B, E]
    hidden:          (hx [B, H], cx [B, H])
    context:         [L, B, H]   (PyTorch layout; transposed internally)
    """
    if decode_type != "greedy":
        # TODO(synk): stochastic (multinomial) / beam_search decode not implemented.
        raise NotImplementedError(decode_type)

    L, B, H = context.shape
    E = decoder_input.shape[1]
    LP = max(128, _round_up(L, 128))    # lane-dense padded source length
    T = int(max_length)

    ctx_blh = jnp.transpose(context, (1, 0, 2))           # [B, L, H]
    emb_ble = jnp.transpose(embedded_inputs, (1, 0, 2))   # [B, L, E]

    # Hoisted, step-invariant reference projections (Conv1d k=1 == per-pos Linear).
    e_g = jnp.einsum("blh,hk->blk", ctx_blh, params["wr_g"]) + params["br_g"]
    e_p = jnp.einsum("blh,hk->blk", ctx_blh, params["wr_p"]) + params["br_p"]

    pad = ((0, 0), (0, LP - L), (0, 0))
    e_g = jnp.pad(e_g, pad).astype(jnp.float32)
    e_p = jnp.pad(e_p, pad).astype(jnp.float32)
    emb_pad = jnp.pad(emb_ble, pad).astype(jnp.float32)

    # Per-gate weight slabs [4, fan_in, H]; matmul operands in bf16.
    def split_gates(w):
        return jnp.stack([w[:, k * H:(k + 1) * H] for k in range(4)], axis=0)

    wi = split_gates(params["w_in"]).astype(jnp.bfloat16)
    wh = split_gates(params["w_hid"]).astype(jnp.bfloat16)
    b_comb = params["b_in"] + params["b_hid"]                       # [1, 4H]
    b = jnp.stack([b_comb[:, k * H:(k + 1) * H] for k in range(4)], axis=0)  # [4,1,H]

    call = make_decode_call(B, L, LP, E, H, T, use_tanh, C)
    probs_all, idx_all, h_fin, c_fin = call(
        decoder_input.astype(jnp.float32),
        hidden[0].astype(jnp.float32), hidden[1].astype(jnp.float32),
        emb_pad, e_g, e_p,
        wi, wh, b.astype(jnp.float32),
        params["wq_g"].astype(jnp.bfloat16), params["bq_g"], params["v_g"],
        params["wq_p"].astype(jnp.bfloat16), params["bq_p"], params["v_p"])

    outputs = [probs_all[t, :, :L] for t in range(T)]
    selections = [idx_all[t, :, 0] for t in range(T)]
    return (outputs, selections), (h_fin, c_fin)


def init_params(key, embedding_dim, hidden_dim):
    keys = jax.random.split(key, 8)

    def lin(k, fan_in, fan_out):
        bound = 1.0 / math.sqrt(fan_in)
        kw, kb = jax.random.split(k)
        w = jax.random.uniform(kw, (fan_in, fan_out), jnp.float32, -bound, bound)
        b = jax.random.uniform(kb, (1, fan_out), jnp.float32, -bound, bound)
        return w, b

    p = {}
    p["w_in"], p["b_in"] = lin(keys[0], embedding_dim, 4 * hidden_dim)
    p["w_hid"], p["b_hid"] = lin(keys[1], hidden_dim, 4 * hidden_dim)
    vb = 1.0 / math.sqrt(hidden_dim)
    p["wq_g"], p["bq_g"] = lin(keys[2], hidden_dim, hidden_dim)
    p["wr_g"], p["br_g"] = lin(keys[3], hidden_dim, hidden_dim)
    p["v_g"] = jax.random.uniform(keys[4], (1, hidden_dim), jnp.float32, -vb, vb)
    p["wq_p"], p["bq_p"] = lin(keys[5], hidden_dim, hidden_dim)
    p["wr_p"], p["br_p"] = lin(keys[6], hidden_dim, hidden_dim)
    p["v_p"] = jax.random.uniform(keys[7], (1, hidden_dim), jnp.float32, -vb, vb)
    return p


if __name__ == "__main__":
    B, E, H, L = 2, 32, 32, 8
    max_length = 3

    key = jax.random.PRNGKey(0)
    k1, k2, k3, k4, k5, kp = jax.random.split(key, 6)
    decoder_input   = jax.random.normal(k1, (B, E), jnp.float32)
    embedded_inputs = jax.random.normal(k2, (L, B, E), jnp.float32)
    hx0             = jax.random.normal(k3, (B, H), jnp.float32)
    cx0             = jax.random.normal(k4, (B, H), jnp.float32)
    context         = jax.random.normal(k5, (L, B, H), jnp.float32)
    params = init_params(kp, E, H)

    (outputs, selections), (hxf, cxf) = decoder_forward(
        params, decoder_input, embedded_inputs, (hx0, cx0), context,
        max_length, decode_type="greedy", use_tanh=True, C=10.0)

    jax.block_until_ready((outputs, selections, hxf, cxf))
    print("KERNEL_OK")
</pallas_src>

<mosaic_0001>
module attributes {stable_mosaic.version = 11 : i64} {
  func.func @_decode_kernel(%arg0: i32, %arg1: memref<2x32xf32, #tpu.memory_space<vmem>>, %arg2: memref<2x32xf32, #tpu.memory_space<vmem>>, %arg3: memref<2x32xf32, #tpu.memory_space<vmem>>, %arg4: memref<2x128x32xf32, #tpu.memory_space<vmem>>, %arg5: memref<2x128x32xf32, #tpu.memory_space<vmem>>, %arg6: memref<2x128x32xf32, #tpu.memory_space<vmem>>, %arg7: memref<4x32x32xbf16, #tpu.memory_space<vmem>>, %arg8: memref<4x32x32xbf16, #tpu.memory_space<vmem>>, %arg9: memref<4x1x32xf32, #tpu.memory_space<vmem>>, %arg10: memref<32x32xbf16, #tpu.memory_space<vmem>>, %arg11: memref<1x32xf32, #tpu.memory_space<vmem>>, %arg12: memref<1x32xf32, #tpu.memory_space<vmem>>, %arg13: memref<32x32xbf16, #tpu.memory_space<vmem>>, %arg14: memref<1x32xf32, #tpu.memory_space<vmem>>, %arg15: memref<1x32xf32, #tpu.memory_space<vmem>>, %arg16: memref<1x2x128xf32, #tpu.memory_space<vmem>>, %arg17: memref<1x2x1xi32, #tpu.memory_space<vmem>>, %arg18: memref<2x32xf32, #tpu.memory_space<vmem>>, %arg19: memref<2x32xf32, #tpu.memory_space<vmem>>, %arg20: memref<2x32xf32, #tpu.memory_space<vmem>>, %arg21: memref<2x32xf32, #tpu.memory_space<vmem>>, %arg22: memref<2x32xf32, #tpu.memory_space<vmem>>, %arg23: memref<2x128xf32, #tpu.memory_space<vmem>>) attributes {dimension_semantics = [#tpu.dimension_semantics<arbitrary>], iteration_bounds = array<i64: 3>, scalar_prefetch = 0 : i64, scratch_operands = 4 : i64, tpu.core_type = #tpu.core_type<tc>, window_params = [{pipeline_mode = #tpu.pipeline_mode<synchronous>, transform_indices = @transform_0, window_bounds = array<i64: 2, 32>}, {pipeline_mode = #tpu.pipeline_mode<synchronous>, transform_indices = @transform_1, window_bounds = array<i64: 2, 32>}, {pipeline_mode = #tpu.pipeline_mode<synchronous>, transform_indices = @transform_2, window_bounds = array<i64: 2, 32>}, {pipeline_mode = #tpu.pipeline_mode<synchronous>, transform_indices = @transform_3, window_bounds = array<i64: 2, 128, 32>}, {pipeline_mode = #tpu.pipeline_mode<synchronous>, transform_indices = @transform_4, window_bounds = array<i64: 2, 128, 32>}, {pipeline_mode = #tpu.pipeline_mode<synchronous>, transform_indices = @transform_5, window_bounds = array<i64: 2, 128, 32>}, {pipeline_mode = #tpu.pipeline_mode<synchronous>, transform_indices = @transform_6, window_bounds = array<i64: 4, 32, 32>}, {pipeline_mode = #tpu.pipeline_mode<synchronous>, transform_indices = @transform_7, window_bounds = array<i64: 4, 32, 32>}, {pipeline_mode = #tpu.pipeline_mode<synchronous>, transform_indices = @transform_8, window_bounds = array<i64: 4, 1, 32>}, {pipeline_mode = #tpu.pipeline_mode<synchronous>, transform_indices = @transform_9, window_bounds = array<i64: 32, 32>}, {pipeline_mode = #tpu.pipeline_mode<synchronous>, transform_indices = @transform_10, window_bounds = array<i64: 1, 32>}, {pipeline_mode = #tpu.pipeline_mode<synchronous>, transform_indices = @transform_11, window_bounds = array<i64: 1, 32>}, {pipeline_mode = #tpu.pipeline_mode<synchronous>, transform_indices = @transform_12, window_bounds = array<i64: 32, 32>}, {pipeline_mode = #tpu.pipeline_mode<synchronous>, transform_indices = @transform_13, window_bounds = array<i64: 1, 32>}, {pipeline_mode = #tpu.pipeline_mode<synchronous>, transform_indices = @transform_14, window_bounds = array<i64: 1, 32>}, {transform_indices = @transform_15, window_bounds = array<i64: 1, 2, 128>}, {transform_indices = @transform_16, window_bounds = array<i64: 1, 2, 1>}, {pipeline_mode = #tpu.pipeline_mode<synchronous>, transform_indices = @transform_17, window_bounds = array<i64: 2, 32>}, {pipeline_mode = #tpu.pipeline_mode<synchronous>, transform_indices = @transform_18, window_bounds = array<i64: 2, 32>}]} {
    %c0_i32 = arith.constant 0 : i32
    %0 = arith.cmpi eq, %arg0, %c0_i32 : i32
    %1 = arith.extui %0 : i1 to i32
    %c0_i32_0 = arith.constant 0 : i32
    %2 = arith.cmpi ne, %1, %c0_i32_0 : i32
    scf.if %2 {
      %c0_107 = arith.constant 0 : index
      %c0_108 = arith.constant 0 : index
      %172 = vector.load %arg1[%c0_107, %c0_108] : memref<2x32xf32, #tpu.memory_space<vmem>>, vector<2x32xf32>
      %c0_109 = arith.constant 0 : index
      %c0_110 = arith.constant 0 : index
      %173 = vector.load %arg20[%c0_109, %c0_110] : memref<2x32xf32, #tpu.memory_space<vmem>>, vector<2x32xf32>
      tpu.vector_store %arg20[%c0_109, %c0_110], %172 {strides = array<i32>} : memref<2x32xf32, #tpu.memory_space<vmem>>, vector<2x32xf32>,
      %c0_111 = arith.constant 0 : index
      %c0_112 = arith.constant 0 : index
      %174 = vector.load %arg2[%c0_111, %c0_112] : memref<2x32xf32, #tpu.memory_space<vmem>>, vector<2x32xf32>
      %c0_113 = arith.constant 0 : index
      %c0_114 = arith.constant 0 : index
      %175 = vector.load %arg21[%c0_113, %c0_114] : memref<2x32xf32, #tpu.memory_space<vmem>>, vector<2x32xf32>
      tpu.vector_store %arg21[%c0_113, %c0_114], %174 {strides = array<i32>} : memref<2x32xf32, #tpu.memory_space<vmem>>, vector<2x32xf32>,
      %c0_115 = arith.constant 0 : index
      %c0_116 = arith.constant 0 : index
      %176 = vector.load %arg3[%c0_115, %c0_116] : memref<2x32xf32, #tpu.memory_space<vmem>>, vector<2x32xf32>
      %c0_117 = arith.constant 0 : index
      %c0_118 = arith.constant 0 : index
      %177 = vector.load %arg22[%c0_117, %c0_118] : memref<2x32xf32, #tpu.memory_space<vmem>>, vector<2x32xf32>
      tpu.vector_store %arg22[%c0_117, %c0_118], %176 {strides = array<i32>} : memref<2x32xf32, #tpu.memory_space<vmem>>, vector<2x32xf32>,
      %178 = tpu.iota {dimensions = array<i32: 1>} : vector<2x128xi32>
      %c8_i32 = arith.constant 8 : i32
      %179 = vector.broadcast %c8_i32 : i32 to vector<2x128xi32>
      %180 = arith.cmpi sge, %178, %179 : vector<2x128xi32>
      %cst_119 = arith.constant 1.000000e+00 : f32
      %cst_120 = arith.constant 0.000000e+00 : f32
      %181 = vector.broadcast %cst_119 : f32 to vector<2x128xf32>
      %182 = vector.broadcast %cst_120 : f32 to vector<2x128xf32>
      %183 = arith.select %180, %181, %182 : vector<2x128xi1>, vector<2x128xf32>
      %c0_121 = arith.constant 0 : index
      %c0_122 = arith.constant 0 : index
      %184 = vector.load %arg23[%c0_121, %c0_122] : memref<2x128xf32, #tpu.memory_space<vmem>>, vector<2x128xf32>
      tpu.vector_store %arg23[%c0_121, %c0_122], %183 {strides = array<i32>} : memref<2x128xf32, #tpu.memory_space<vmem>>, vector<2x128xf32>,
    } else {
    }
    %c0 = arith.constant 0 : index
    %c0_1 = arith.constant 0 : index
    %3 = vector.load %arg20[%c0, %c0_1] : memref<2x32xf32, #tpu.memory_space<vmem>>, vector<2x32xf32>
    %c0_2 = arith.constant 0 : index
    %c0_3 = arith.constant 0 : index
    %4 = vector.load %arg21[%c0_2, %c0_3] : memref<2x32xf32, #tpu.memory_space<vmem>>, vector<2x32xf32>
    %c0_4 = arith.constant 0 : index
    %c0_5 = arith.constant 0 : index
    %5 = vector.load %arg22[%c0_4, %c0_5] : memref<2x32xf32, #tpu.memory_space<vmem>>, vector<2x32xf32>
    %c0_6 = arith.constant 0 : index
    %c0_7 = arith.constant 0 : index
    %6 = vector.load %arg23[%c0_6, %c0_7] : memref<2x128xf32, #tpu.memory_space<vmem>>, vector<2x128xf32>
    %7 = arith.truncf %3 : vector<2x32xf32> to vector<2x32xbf16>
    %8 = arith.truncf %4 : vector<2x32xf32> to vector<2x32xbf16>
    %c0_8 = arith.constant 0 : index
    %c0_9 = arith.constant 0 : index
    %c0_10 = arith.constant 0 : index
    %9 = vector.load %arg7[%c0_8, %c0_9, %c0_10] : memref<4x32x32xbf16, #tpu.memory_space<vmem>>, vector<1x32x32xbf16>
    %10 = vector.shape_cast %9 : vector<1x32x32xbf16> to vector<32x32xbf16>
    %cst = arith.constant dense<0.000000e+00> : vector<2x32xf32>
    %11 = tpu.matmul %7, %10, %cst {dimension_numbers = #tpu.dot_dimension_numbers<[1], [0], [0], [1], [0, 0, 1, 1], [], []>} : vector<2x32xbf16>, vector<32x32xbf16>, vector<2x32xf32> -> vector<2x32xf32>
    %c0_11 = arith.constant 0 : index
    %c0_12 = arith.constant 0 : index
    %c0_13 = arith.constant 0 : index
    %12 = vector.load %arg8[%c0_11, %c0_12, %c0_13] : memref<4x32x32xbf16, #tpu.memory_space<vmem>>, vector<1x32x32xbf16>
    %13 = vector.shape_cast %12 : vector<1x32x32xbf16> to vector<32x32xbf16>
    %cst_14 = arith.constant dense<0.000000e+00> : vector<2x32xf32>
    %14 = tpu.matmul %8, %13, %cst_14 {dimension_numbers = #tpu.dot_dimension_numbers<[1], [0], [0], [1], [0, 0, 1, 1], [], []>} : vector<2x32xbf16>, vector<32x32xbf16>, vector<2x32xf32> -> vector<2x32xf32>
    %15 = arith.addf %11, %14 : vector<2x32xf32>
    %c0_15 = arith.constant 0 : index
    %c0_16 = arith.constant 0 : index
    %c0_17 = arith.constant 0 : index
    %16 = vector.load %arg9[%c0_15, %c0_16, %c0_17] : memref<4x1x32xf32, #tpu.memory_space<vmem>>, vector<1x1x32xf32>
    %17 = vector.shape_cast %16 : vector<1x1x32xf32> to vector<1x32xf32>
    %18 = vector.broadcast %17 : vector<1x32xf32> to vector<2x32xf32>
    %19 = arith.addf %15, %18 : vector<2x32xf32>
    %c1 = arith.constant 1 : index
    %c0_18 = arith.constant 0 : index
    %c0_19 = arith.constant 0 : index
    %20 = vector.load %arg7[%c1, %c0_18, %c0_19] : memref<4x32x32xbf16, #tpu.memory_space<vmem>>, vector<1x32x32xbf16>
    %21 = vector.shape_cast %20 : vector<1x32x32xbf16> to vector<32x32xbf16>
    %cst_20 = arith.constant dense<0.000000e+00> : vector<2x32xf32>
    %22 = tpu.matmul %7, %21, %cst_20 {dimension_numbers = #tpu.dot_dimension_numbers<[1], [0], [0], [1], [0, 0, 1, 1], [], []>} : vector<2x32xbf16>, vector<32x32xbf16>, vector<2x32xf32> -> vector<2x32xf32>
    %c1_21 = arith.constant 1 : index
    %c0_22 = arith.constant 0 : index
    %c0_23 = arith.constant 0 : index
    %23 = vector.load %arg8[%c1_21, %c0_22, %c0_23] : memref<4x32x32xbf16, #tpu.memory_space<vmem>>, vector<1x32x32xbf16>
    %24 = vector.shape_cast %23 : vector<1x32x32xbf16> to vector<32x32xbf16>
    %cst_24 = arith.constant dense<0.000000e+00> : vector<2x32xf32>
    %25 = tpu.matmul %8, %24, %cst_24 {dimension_numbers = #tpu.dot_dimension_numbers<[1], [0], [0], [1], [0, 0, 1, 1], [], []>} : vector<2x32xbf16>, vector<32x32xbf16>, vector<2x32xf32> -> vector<2x32xf32>
    %26 = arith.addf %22, %25 : vector<2x32xf32>
    %c1_25 = arith.constant 1 : index
    %c0_26 = arith.constant 0 : index
    %c0_27 = arith.constant 0 : index
    %27 = vector.load %arg9[%c1_25, %c0_26, %c0_27] : memref<4x1x32xf32, #tpu.memory_space<vmem>>, vector<1x1x32xf32>
    %28 = vector.shape_cast %27 : vector<1x1x32xf32> to vector<1x32xf32>
    %29 = vector.broadcast %28 : vector<1x32xf32> to vector<2x32xf32>
    %30 = arith.addf %26, %29 : vector<2x32xf32>
    %c2 = arith.constant 2 : index
    %c0_28 = arith.constant 0 : index
    %c0_29 = arith.constant 0 : index
    %31 = vector.load %arg7[%c2, %c0_28, %c0_29] : memref<4x32x32xbf16, #tpu.memory_space<vmem>>, vector<1x32x32xbf16>
    %32 = vector.shape_cast %31 : vector<1x32x32xbf16> to vector<32x32xbf16>
    %cst_30 = arith.constant dense<0.000000e+00> : vector<2x32xf32>
    %33 = tpu.matmul %7, %32, %cst_30 {dimension_numbers = #tpu.dot_dimension_numbers<[1], [0], [0], [1], [0, 0, 1, 1], [], []>} : vector<2x32xbf16>, vector<32x32xbf16>, vector<2x32xf32> -> vector<2x32xf32>
    %c2_31 = arith.constant 2 : index
    %c0_32 = arith.constant 0 : index
    %c0_33 = arith.constant 0 : index
    %34 = vector.load %arg8[%c2_31, %c0_32, %c0_33] : memref<4x32x32xbf16, #tpu.memory_space<vmem>>, vector<1x32x32xbf16>
    %35 = vector.shape_cast %34 : vector<1x32x32xbf16> to vector<32x32xbf16>
    %cst_34 = arith.constant dense<0.000000e+00> : vector<2x32xf32>
    %36 = tpu.matmul %8, %35, %cst_34 {dimension_numbers = #tpu.dot_dimension_numbers<[1], [0], [0], [1], [0, 0, 1, 1], [], []>} : vector<2x32xbf16>, vector<32x32xbf16>, vector<2x32xf32> -> vector<2x32xf32>
    %37 = arith.addf %33, %36 : vector<2x32xf32>
    %c2_35 = arith.constant 2 : index
    %c0_36 = arith.constant 0 : index
    %c0_37 = arith.constant 0 : index
    %38 = vector.load %arg9[%c2_35, %c0_36, %c0_37] : memref<4x1x32xf32, #tpu.memory_space<vmem>>, vector<1x1x32xf32>
    %39 = vector.shape_cast %38 : vector<1x1x32xf32> to vector<1x32xf32>
    %40 = vector.broadcast %39 : vector<1x32xf32> to vector<2x32xf32>
    %41 = arith.addf %37, %40 : vector<2x32xf32>
    %c3 = arith.constant 3 : index
    %c0_38 = arith.constant 0 : index
    %c0_39 = arith.constant 0 : index
    %42 = vector.load %arg7[%c3, %c0_38, %c0_39] : memref<4x32x32xbf16, #tpu.memory_space<vmem>>, vector<1x32x32xbf16>
    %43 = vector.shape_cast %42 : vector<1x32x32xbf16> to vector<32x32xbf16>
    %cst_40 = arith.constant dense<0.000000e+00> : vector<2x32xf32>
    %44 = tpu.matmul %7, %43, %cst_40 {dimension_numbers = #tpu.dot_dimension_numbers<[1], [0], [0], [1], [0, 0, 1, 1], [], []>} : vector<2x32xbf16>, vector<32x32xbf16>, vector<2x32xf32> -> vector<2x32xf32>
    %c3_41 = arith.constant 3 : index
    %c0_42 = arith.constant 0 : index
    %c0_43 = arith.constant 0 : index
    %45 = vector.load %arg8[%c3_41, %c0_42, %c0_43] : memref<4x32x32xbf16, #tpu.memory_space<vmem>>, vector<1x32x32xbf16>
    %46 = vector.shape_cast %45 : vector<1x32x32xbf16> to vector<32x32xbf16>
    %cst_44 = arith.constant dense<0.000000e+00> : vector<2x32xf32>
    %47 = tpu.matmul %8, %46, %cst_44 {dimension_numbers = #tpu.dot_dimension_numbers<[1], [0], [0], [1], [0, 0, 1, 1], [], []>} : vector<2x32xbf16>, vector<32x32xbf16>, vector<2x32xf32> -> vector<2x32xf32>
    %48 = arith.addf %44, %47 : vector<2x32xf32>
    %c3_45 = arith.constant 3 : index
    %c0_46 = arith.constant 0 : index
    %c0_47 = arith.constant 0 : index
    %49 = vector.load %arg9[%c3_45, %c0_46, %c0_47] : memref<4x1x32xf32, #tpu.memory_space<vmem>>, vector<1x1x32xf32>
    %50 = vector.shape_cast %49 : vector<1x1x32xf32> to vector<1x32xf32>
    %51 = vector.broadcast %50 : vector<1x32xf32> to vector<2x32xf32>
    %52 = arith.addf %48, %51 : vector<2x32xf32>
    %53 = arith.negf %19 : vector<2x32xf32>
    %54 = math.exp %53 : vector<2x32xf32>
    %cst_48 = arith.constant 1.000000e+00 : f32
    %55 = vector.broadcast %cst_48 : f32 to vector<2x32xf32>
    %56 = arith.addf %55, %54 : vector<2x32xf32>
    %57 = arith.divf %55, %56 : vector<2x32xf32>
    %58 = arith.negf %30 : vector<2x32xf32>
    %59 = math.exp %58 : vector<2x32xf32>
    %cst_49 = arith.constant 1.000000e+00 : f32
    %60 = vector.broadcast %cst_49 : f32 to vector<2x32xf32>
    %61 = arith.addf %60, %59 : vector<2x32xf32>
    %62 = arith.divf %60, %61 : vector<2x32xf32>
    %63 = math.tanh %41 : vector<2x32xf32>
    %64 = arith.negf %52 : vector<2x32xf32>
    %65 = math.exp %64 : vector<2x32xf32>
    %cst_50 = arith.constant 1.000000e+00 : f32
    %66 = vector.broadcast %cst_50 : f32 to vector<2x32xf32>
    %67 = arith.addf %66, %65 : vector<2x32xf32>
    %68 = arith.divf %66, %67 : vector<2x32xf32>
    %69 = arith.mulf %62, %5 : vector<2x32xf32>
    %70 = arith.mulf %57, %63 : vector<2x32xf32>
    %71 = arith.addf %69, %70 : vector<2x32xf32>
    %72 = math.tanh %71 : vector<2x32xf32>
    %73 = arith.mulf %68, %72 : vector<2x32xf32>
    %c0_51 = arith.constant 0 : index
    %c0_52 = arith.constant 0 : index
    %c0_53 = arith.constant 0 : index
    %74 = vector.load %arg5[%c0_51, %c0_52, %c0_53] : memref<2x128x32xf32, #tpu.memory_space<vmem>>, vector<2x128x32xf32>
    %c0_54 = arith.constant 0 : index
    %c0_55 = arith.constant 0 : index
    %75 = vector.load %arg10[%c0_54, %c0_55] : memref<32x32xbf16, #tpu.memory_space<vmem>>, vector<32x32xbf16>
    %c0_56 = arith.constant 0 : index
    %c0_57 = arith.constant 0 : index
    %76 = vector.load %arg11[%c0_56, %c0_57] : memref<1x32xf32, #tpu.memory_space<vmem>>, vector<1x32xf32>
    %c0_58 = arith.constant 0 : index
    %c0_59 = arith.constant 0 : index
    %77 = vector.load %arg12[%c0_58, %c0_59] : memref<1x32xf32, #tpu.memory_space<vmem>>, vector<1x32xf32>
    %78 = arith.truncf %73 : vector<2x32xf32> to vector<2x32xbf16>
    %cst_60 = arith.constant dense<0.000000e+00> : vector<2x32xf32>
    %79 = tpu.matmul %78, %75, %cst_60 {dimension_numbers = #tpu.dot_dimension_numbers<[1], [0], [0], [1], [0, 0, 1, 1], [], []>} : vector<2x32xbf16>, vector<32x32xbf16>, vector<2x32xf32> -> vector<2x32xf32>
    %80 = vector.broadcast %76 : vector<1x32xf32> to vector<2x32xf32>
    %81 = arith.addf %79, %80 : vector<2x32xf32>
    %82 = vector.shape_cast %81 : vector<2x32xf32> to vector<2x1x32xf32>
    %83 = vector.broadcast %82 : vector<2x1x32xf32> to vector<2x128x32xf32>
    %84 = arith.addf %83, %74 : vector<2x128x32xf32>
    %85 = math.tanh %84 : vector<2x128x32xf32>
    %86 = vector.shape_cast %77 : vector<1x32xf32> to vector<1x1x32xf32>
    %87 = vector.broadcast %86 : vector<1x1x32xf32> to vector<2x128x32xf32>
    %88 = arith.mulf %85, %87 : vector<2x128x32xf32>
    %cst_61 = arith.constant dense<0.000000e+00> : vector<2x128xf32>
    %89 = vector.multi_reduction <add>, %88, %cst_61 [2] : vector<2x128x32xf32> to vector<2x128xf32>
    %cst_62 = arith.constant 0.000000e+00 : f32
    %90 = vector.broadcast %cst_62 : f32 to vector<2x128xf32>
    %91 = arith.cmpf ogt, %6, %90 : vector<2x128xf32>
    %cst_63 = arith.constant -1.000000e+30 : f32
    %92 = vector.broadcast %cst_63 : f32 to vector<2x128xf32>
    %93 = arith.select %91, %92, %89 : vector<2x128xi1>, vector<2x128xf32>
    %cst_64 = arith.constant dense<0xFF800000> : vector<2xf32>
    %94 = vector.multi_reduction <maximumf>, %93, %cst_64 [1] : vector<2x128xf32> to vector<2xf32>
    %95 = vector.shape_cast %94 : vector<2xf32> to vector<2x1xf32>
    %96 = vector.broadcast %95 : vector<2x1xf32> to vector<2x128xf32>
    %97 = arith.subf %93, %96 : vector<2x128xf32>
    %98 = math.exp %97 : vector<2x128xf32>
    %cst_65 = arith.constant dense<0.000000e+00> : vector<2xf32>
    %99 = vector.multi_reduction <add>, %98, %cst_65 [1] : vector<2x128xf32> to vector<2xf32>
    %100 = vector.shape_cast %99 : vector<2xf32> to vector<2x1xf32>
    %101 = tpu.reciprocal %100 {approx = true} : vector<2x1xf32> -> vector<2x1xf32>
    %102 = vector.broadcast %101 : vector<2x1xf32> to vector<2x128xf32>
    %103 = arith.mulf %98, %102 : vector<2x128xf32>
    %104 = vector.shape_cast %103 : vector<2x128xf32> to vector<2x128x1xf32>
    %105 = vector.broadcast %104 : vector<2x128x1xf32> to vector<2x128x32xf32>
    %106 = arith.mulf %105, %74 : vector<2x128x32xf32>
    %cst_66 = arith.constant dense<0.000000e+00> : vector<2x32xf32>
    %107 = vector.multi_reduction <add>, %106, %cst_66 [1] : vector<2x128x32xf32> to vector<2x32xf32>
    %c0_67 = arith.constant 0 : index
    %c0_68 = arith.constant 0 : index
    %c0_69 = arith.constant 0 : index
    %108 = vector.load %arg6[%c0_67, %c0_68, %c0_69] : memref<2x128x32xf32, #tpu.memory_space<vmem>>, vector<2x128x32xf32>
    %c0_70 = arith.constant 0 : index
    %c0_71 = arith.constant 0 : index
    %109 = vector.load %arg13[%c0_70, %c0_71] : memref<32x32xbf16, #tpu.memory_space<vmem>>, vector<32x32xbf16>
    %c0_72 = arith.constant 0 : index
    %c0_73 = arith.constant 0 : index
    %110 = vector.load %arg14[%c0_72, %c0_73] : memref<1x32xf32, #tpu.memory_space<vmem>>, vector<1x32xf32>
    %c0_74 = arith.constant 0 : index
    %c0_75 = arith.constant 0 : index
    %111 = vector.load %arg15[%c0_74, %c0_75] : memref<1x32xf32, #tpu.memory_space<vmem>>, vector<1x32xf32>
    %112 = arith.truncf %107 : vector<2x32xf32> to vector<2x32xbf16>
    %cst_76 = arith.constant dense<0.000000e+00> : vector<2x32xf32>
    %113 = tpu.matmul %112, %109, %cst_76 {dimension_numbers = #tpu.dot_dimension_numbers<[1], [0], [0], [1], [0, 0, 1, 1], [], []>} : vector<2x32xbf16>, vector<32x32xbf16>, vector<2x32xf32> -> vector<2x32xf32>
    %114 = vector.broadcast %110 : vector<1x32xf32> to vector<2x32xf32>
    %115 = arith.addf %113, %114 : vector<2x32xf32>
    %116 = vector.shape_cast %115 : vector<2x32xf32> to vector<2x1x32xf32>
    %117 = vector.broadcast %116 : vector<2x1x32xf32> to vector<2x128x32xf32>
    %118 = arith.addf %117, %108 : vector<2x128x32xf32>
    %119 = math.tanh %118 : vector<2x128x32xf32>
    %120 = vector.shape_cast %111 : vector<1x32xf32> to vector<1x1x32xf32>
    %121 = vector.broadcast %120 : vector<1x1x32xf32> to vector<2x128x32xf32>
    %122 = arith.mulf %119, %121 : vector<2x128x32xf32>
    %cst_77 = arith.constant dense<0.000000e+00> : vector<2x128xf32>
    %123 = vector.multi_reduction <add>, %122, %cst_77 [2] : vector<2x128x32xf32> to vector<2x128xf32>
    %124 = math.tanh %123 : vector<2x128xf32>
    %cst_78 = arith.constant 1.000000e+01 : f32
    %125 = vector.broadcast %cst_78 : f32 to vector<2x128xf32>
    %126 = arith.mulf %125, %124 : vector<2x128xf32>
    %cst_79 = arith.constant 0.000000e+00 : f32
    %127 = vector.broadcast %cst_79 : f32 to vector<2x128xf32>
    %128 = arith.cmpf ogt, %6, %127 : vector<2x128xf32>
    %cst_80 = arith.constant -1.000000e+30 : f32
    %129 = vector.broadcast %cst_80 : f32 to vector<2x128xf32>
    %130 = arith.select %128, %129, %126 : vector<2x128xi1>, vector<2x128xf32>
    %cst_81 = arith.constant dense<0xFF800000> : vector<2xf32>
    %131 = vector.multi_reduction <maximumf>, %130, %cst_81 [1] : vector<2x128xf32> to vector<2xf32>
    %132 = vector.shape_cast %131 : vector<2xf32> to vector<2x1xf32>
    %133 = vector.broadcast %132 : vector<2x1xf32> to vector<2x128xf32>
    %134 = arith.subf %130, %133 : vector<2x128xf32>
    %135 = math.exp %134 : vector<2x128xf32>
    %cst_82 = arith.constant dense<0.000000e+00> : vector<2xf32>
    %136 = vector.multi_reduction <add>, %135, %cst_82 [1] : vector<2x128xf32> to vector<2xf32>
    %137 = vector.shape_cast %136 : vector<2xf32> to vector<2x1xf32>
    %138 = tpu.reciprocal %137 {approx = true} : vector<2x1xf32> -> vector<2x1xf32>
    %139 = vector.broadcast %138 : vector<2x1xf32> to vector<2x128xf32>
    %140 = arith.mulf %135, %139 : vector<2x128xf32>
    %141 = tpu.iota {dimensions = array<i32: 1>} : vector<2x128xi32>
    %cst_83 = arith.constant dense<0xFF800000> : vector<2xf32>
    %142 = vector.multi_reduction <maximumf>, %140, %cst_83 [1] : vector<2x128xf32> to vector<2xf32>
    %143 = vector.shape_cast %142 : vector<2xf32> to vector<2x1xf32>
    %144 = vector.broadcast %143 : vector<2x1xf32> to vector<2x128xf32>
    %145 = arith.cmpf oeq, %140, %144 : vector<2x128xf32>
    %c128_i32 = arith.constant 128 : i32
    %146 = vector.broadcast %c128_i32 : i32 to vector<2x128xi32>
    %147 = arith.select %145, %141, %146 : vector<2x128xi1>, vector<2x128xi32>
    %cst_84 = arith.constant dense<2147483647> : vector<2xi32>
    %148 = vector.multi_reduction <minsi>, %147, %cst_84 [1] : vector<2x128xi32> to vector<2xi32>
    %149 = vector.shape_cast %148 : vector<2xi32> to vector<2x1xi32>
    %150 = vector.broadcast %149 : vector<2x1xi32> to vector<2x128xi32>
    %151 = arith.cmpi eq, %141, %150 : vector<2x128xi32>
    %152 = arith.extui %151 : vector<2x128xi1> to vector<2x128xi32>
    %153 = arith.sitofp %152 : vector<2x128xi32> to vector<2x128xf32>
    %154 = vector.shape_cast %153 : vector<2x128xf32> to vector<2x128x1xf32>
    %c0_85 = arith.constant 0 : index
    %c0_86 = arith.constant 0 : index
    %c0_87 = arith.constant 0 : index
    %155 = vector.load %arg4[%c0_85, %c0_86, %c0_87] : memref<2x128x32xf32, #tpu.memory_space<vmem>>, vector<2x128x32xf32>
    %156 = vector.broadcast %154 : vector<2x128x1xf32> to vector<2x128x32xf32>
    %157 = arith.mulf %156, %155 : vector<2x128x32xf32>
    %cst_88 = arith.constant dense<0.000000e+00> : vector<2x32xf32>
    %158 = vector.multi_reduction <add>, %157, %cst_88 [1] : vector<2x128x32xf32> to vector<2x32xf32>
    %c0_89 = arith.constant 0 : index
    %c0_90 = arith.constant 0 : index
    %c0_91 = arith.constant 0 : index
    %159 = vector.load %arg16[%c0_89, %c0_90, %c0_91] : memref<1x2x128xf32, #tpu.memory_space<vmem>>, vector<1x2x128xf32>
    %160 = vector.shape_cast %159 : vector<1x2x128xf32> to vector<2x128xf32>
    %161 = vector.shape_cast %140 : vector<2x128xf32> to vector<1x2x128xf32>
    tpu.vector_store %arg16[%c0_89, %c0_90, %c0_91], %161 {strides = array<i32>} : memref<1x2x128xf32, #tpu.memory_space<vmem>>, vector<1x2x128xf32>,
    %c0_92 = arith.constant 0 : index
    %c0_93 = arith.constant 0 : index
    %c0_94 = arith.constant 0 : index
    %162 = vector.load %arg17[%c0_92, %c0_93, %c0_94] : memref<1x2x1xi32, #tpu.memory_space<vmem>>, vector<1x2x1xi32>
    %163 = vector.shape_cast %162 : vector<1x2x1xi32> to vector<2x1xi32>
    %164 = vector.shape_cast %149 : vector<2x1xi32> to vector<1x2x1xi32>
    tpu.vector_store %arg17[%c0_92, %c0_93, %c0_94], %164 {strides = array<i32>} : memref<1x2x1xi32, #tpu.memory_space<vmem>>, vector<1x2x1xi32>,
    %c0_95 = arith.constant 0 : index
    %c0_96 = arith.constant 0 : index
    %165 = vector.load %arg18[%c0_95, %c0_96] : memref<2x32xf32, #tpu.memory_space<vmem>>, vector<2x32xf32>
    tpu.vector_store %arg18[%c0_95, %c0_96], %73 {strides = array<i32>} : memref<2x32xf32, #tpu.memory_space<vmem>>, vector<2x32xf32>,
    %c0_97 = arith.constant 0 : index
    %c0_98 = arith.constant 0 : index
    %166 = vector.load %arg19[%c0_97, %c0_98] : memref<2x32xf32, #tpu.memory_space<vmem>>, vector<2x32xf32>
    tpu.vector_store %arg19[%c0_97, %c0_98], %71 {strides = array<i32>} : memref<2x32xf32, #tpu.memory_space<vmem>>, vector<2x32xf32>,
    %c0_99 = arith.constant 0 : index
    %c0_100 = arith.constant 0 : index
    %167 = vector.load %arg20[%c0_99, %c0_100] : memref<2x32xf32, #tpu.memory_space<vmem>>, vector<2x32xf32>
    tpu.vector_store %arg20[%c0_99, %c0_100], %158 {strides = array<i32>} : memref<2x32xf32, #tpu.memory_space<vmem>>, vector<2x32xf32>,
    %c0_101 = arith.constant 0 : index
    %c0_102 = arith.constant 0 : index
    %168 = vector.load %arg21[%c0_101, %c0_102] : memref<2x32xf32, #tpu.memory_space<vmem>>, vector<2x32xf32>
    tpu.vector_store %arg21[%c0_101, %c0_102], %73 {strides = array<i32>} : memref<2x32xf32, #tpu.memory_space<vmem>>, vector<2x32xf32>,
    %c0_103 = arith.constant 0 : index
    %c0_104 = arith.constant 0 : index
    %169 = vector.load %arg22[%c0_103, %c0_104] : memref<2x32xf32, #tpu.memory_space<vmem>>, vector<2x32xf32>
    tpu.vector_store %arg22[%c0_103, %c0_104], %71 {strides = array<i32>} : memref<2x32xf32, #tpu.memory_space<vmem>>, vector<2x32xf32>,
    %170 = arith.maximumf %6, %153 : vector<2x128xf32>
    %c0_105 = arith.constant 0 : index
    %c0_106 = arith.constant 0 : index
    %171 = vector.load %arg23[%c0_105, %c0_106] : memref<2x128xf32, #tpu.memory_space<vmem>>, vector<2x128xf32>
    tpu.vector_store %arg23[%c0_105, %c0_106], %170 {strides = array<i32>} : memref<2x128xf32, #tpu.memory_space<vmem>>, vector<2x128xf32>,
    return
  }
  func.func @transform_0(%arg0: i32) -> (i32, i32) {
    %c0_i32 = arith.constant 0 : i32
    %c0_i32_0 = arith.constant 0 : i32
    %c0_i32_1 = arith.constant 0 : i32
    return %c0_i32, %c0_i32_0 : i32, i32
  }
  func.func @transform_1(%arg0: i32) -> (i32, i32) {
    %c0_i32 = arith.constant 0 : i32
    %c0_i32_0 = arith.constant 0 : i32
    %c0_i32_1 = arith.constant 0 : i32
    return %c0_i32, %c0_i32_0 : i32, i32
  }
  func.func @transform_2(%arg0: i32) -> (i32, i32) {
    %c0_i32 = arith.constant 0 : i32
    %c0_i32_0 = arith.constant 0 : i32
    %c0_i32_1 = arith.constant 0 : i32
    return %c0_i32, %c0_i32_0 : i32, i32
  }
  func.func @transform_3(%arg0: i32) -> (i32, i32, i32) {
    %c0_i32 = arith.constant 0 : i32
    %c0_i32_0 = arith.constant 0 : i32
    %c0_i32_1 = arith.constant 0 : i32
    %c0_i32_2 = arith.constant 0 : i32
    return %c0_i32, %c0_i32_0, %c0_i32_1 : i32, i32, i32
  }
  func.func @transform_4(%arg0: i32) -> (i32, i32, i32) {
    %c0_i32 = arith.constant 0 : i32
    %c0_i32_0 = arith.constant 0 : i32
    %c0_i32_1 = arith.constant 0 : i32
    %c0_i32_2 = arith.constant 0 : i32
    return %c0_i32, %c0_i32_0, %c0_i32_1 : i32, i32, i32
  }
  func.func @transform_5(%arg0: i32) -> (i32, i32, i32) {
    %c0_i32 = arith.constant 0 : i32
    %c0_i32_0 = arith.constant 0 : i32
    %c0_i32_1 = arith.constant 0 : i32
    %c0_i32_2 = arith.constant 0 : i32
    return %c0_i32, %c0_i32_0, %c0_i32_1 : i32, i32, i32
  }
  func.func @transform_6(%arg0: i32) -> (i32, i32, i32) {
    %c0_i32 = arith.constant 0 : i32
    %c0_i32_0 = arith.constant 0 : i32
    %c0_i32_1 = arith.constant 0 : i32
    %c0_i32_2 = arith.constant 0 : i32
    return %c0_i32, %c0_i32_0, %c0_i32_1 : i32, i32, i32
  }
  func.func @transform_7(%arg0: i32) -> (i32, i32, i32) {
    %c0_i32 = arith.constant 0 : i32
    %c0_i32_0 = arith.constant 0 : i32
    %c0_i32_1 = arith.constant 0 : i32
    %c0_i32_2 = arith.constant 0 : i32
    return %c0_i32, %c0_i32_0, %c0_i32_1 : i32, i32, i32
  }
  func.func @transform_8(%arg0: i32) -> (i32, i32, i32) {
    %c0_i32 = arith.constant 0 : i32
    %c0_i32_0 = arith.constant 0 : i32
    %c0_i32_1 = arith.constant 0 : i32
    %c0_i32_2 = arith.constant 0 : i32
    return %c0_i32, %c0_i32_0, %c0_i32_1 : i32, i32, i32
  }
  func.func @transform_9(%arg0: i32) -> (i32, i32) {
    %c0_i32 = arith.constant 0 : i32
    %c0_i32_0 = arith.constant 0 : i32
    %c0_i32_1 = arith.constant 0 : i32
    return %c0_i32, %c0_i32_0 : i32, i32
  }
  func.func @transform_10(%arg0: i32) -> (i32, i32) {
    %c0_i32 = arith.constant 0 : i32
    %c0_i32_0 = arith.constant 0 : i32
    %c0_i32_1 = arith.constant 0 : i32
    return %c0_i32, %c0_i32_0 : i32, i32
  }
  func.func @transform_11(%arg0: i32) -> (i32, i32) {
    %c0_i32 = arith.constant 0 : i32
    %c0_i32_0 = arith.constant 0 : i32
    %c0_i32_1 = arith.constant 0 : i32
    return %c0_i32, %c0_i32_0 : i32, i32
  }
  func.func @transform_12(%arg0: i32) -> (i32, i32) {
    %c0_i32 = arith.constant 0 : i32
    %c0_i32_0 = arith.constant 0 : i32
    %c0_i32_1 = arith.constant 0 : i32
    return %c0_i32, %c0_i32_0 : i32, i32
  }
  func.func @transform_13(%arg0: i32) -> (i32, i32) {
    %c0_i32 = arith.constant 0 : i32
    %c0_i32_0 = arith.constant 0 : i32
    %c0_i32_1 = arith.constant 0 : i32
    return %c0_i32, %c0_i32_0 : i32, i32
  }
  func.func @transform_14(%arg0: i32) -> (i32, i32) {
    %c0_i32 = arith.constant 0 : i32
    %c0_i32_0 = arith.constant 0 : i32
    %c0_i32_1 = arith.constant 0 : i32
    return %c0_i32, %c0_i32_0 : i32, i32
  }
  func.func @transform_15(%arg0: i32) -> (i32, i32, i32) {
    %c0_i32 = arith.constant 0 : i32
    %c0_i32_0 = arith.constant 0 : i32
    %c0_i32_1 = arith.constant 0 : i32
    return %arg0, %c0_i32, %c0_i32_0 : i32, i32, i32
  }
  func.func @transform_16(%arg0: i32) -> (i32, i32, i32) {
    %c0_i32 = arith.constant 0 : i32
    %c0_i32_0 = arith.constant 0 : i32
    %c0_i32_1 = arith.constant 0 : i32
    return %arg0, %c0_i32, %c0_i32_0 : i32, i32, i32
  }
  func.func @transform_17(%arg0: i32) -> (i32, i32) {
    %c0_i32 = arith.constant 0 : i32
    %c0_i32_0 = arith.constant 0 : i32
    %c0_i32_1 = arith.constant 0 : i32
    return %c0_i32, %c0_i32_0 : i32, i32
  }
  func.func @transform_18(%arg0: i32) -> (i32, i32) {
    %c0_i32 = arith.constant 0 : i32
    %c0_i32_0 = arith.constant 0 : i32
    %c0_i32_1 = arith.constant 0 : i32
    return %c0_i32, %c0_i32_0 : i32, i32
  }
}

</mosaic_0001>

<llo_original>
// kernel: tpu_custom_call.1
$region0: #{tpu_custom_call.1}
  #allocation0 [shape = 'u32[]', space=smem, size = 0x4, offset = 0x4, fixed_abs, tag = 'smem constant byte address 0x4 - core index']
  #allocation1 [shape = 'u32[144,128]{1,0:T(1,128)}', space=vmem, size = 0x12000, scoped, tag = 'internal scratch']
  #allocation2 [shape = 'f32[2,32]{1,0:T(2,128)}', space=vmem, size = 0x400, scoped, tag = 'scratch operand']
  #allocation3 [shape = 'f32[2,32]{1,0:T(2,128)}', space=vmem, size = 0x400, scoped, tag = 'scratch operand']
  #allocation4 [shape = 'f32[2,32]{1,0:T(2,128)}', space=vmem, size = 0x400, scoped, tag = 'scratch operand']
  #allocation5 [shape = 'f32[2,128]{1,0:T(2,128)}', space=vmem, size = 0x400, scoped, tag = 'scratch operand']
  %s0 = inlined_call_operand.vmem [shape: f32[2,32], index: 0, kind: input, shape index: {}]
  %s1 = inlined_call_operand.vmem [shape: f32[2,32], index: 1, kind: input, shape index: {}]
  %s2 = inlined_call_operand.vmem [shape: f32[2,32], index: 2, kind: input, shape index: {}]
  %s3 = inlined_call_operand.vmem [shape: f32[2,128,32], index: 3, kind: input, shape index: {}]
  %s4 = inlined_call_operand.vmem [shape: f32[2,128,32], index: 4, kind: input, shape index: {}]
  %s5 = inlined_call_operand.vmem [shape: f32[2,128,32], index: 5, kind: input, shape index: {}]
  %s6 = inlined_call_operand.vmem [shape: bf16[4,32,32], index: 6, kind: input, shape index: {}]
  %s7 = inlined_call_operand.vmem [shape: bf16[4,32,32], index: 7, kind: input, shape index: {}]
  %s8 = inlined_call_operand.vmem [shape: f32[4,1,32], index: 8, kind: input, shape index: {}]
  %s9 = inlined_call_operand.vmem [shape: bf16[32,32], index: 9, kind: input, shape index: {}]
  %s10 = inlined_call_operand.vmem [shape: f32[1,32], index: 10, kind: input, shape index: {}]
  %s11 = inlined_call_operand.vmem [shape: f32[1,32], index: 11, kind: input, shape index: {}]
  %s12 = inlined_call_operand.vmem [shape: bf16[32,32], index: 12, kind: input, shape index: {}]
  %s13 = inlined_call_operand.vmem [shape: f32[1,32], index: 13, kind: input, shape index: {}]
  %s14 = inlined_call_operand.vmem [shape: f32[1,32], index: 14, kind: input, shape index: {}]
  %s15 = inlined_call_operand.hbm [shape: f32[3,2,128], index: 15, kind: output, shape index: {0}]
  %s16 = inlined_call_operand.vmem [shape: s32[3,2,1], index: 16, kind: output, shape index: {1}]
  %s17 = inlined_call_operand.hbm [shape: f32[2,32], index: 17, kind: output, shape index: {2}]
  %s18 = inlined_call_operand.hbm [shape: f32[2,32], index: 18, kind: output, shape index: {3}]
  %19 = xla_tuple %s15, %s16, %s17, %s18
  %s20 = sld [smem:[#allocation0]]
  $region121: #{tpu_custom_call.1} parent=0
    _
  %s22 = ssub.s32 1, %s20
  %s23 = scalar_select 0, %s22, %s20
  $region1: #{tpu_custom_call.1} parent=0
    #allocation6 [shape = 'u8[2048]{0}', space=vmem, size = 0x800, scoped, tag = 'output window, operand 0']
    #allocation7 [shape = 's32[2]{0}', space=sflag, size = 0x8, scoped, tag = 'scoped memory for tpu_custom_call.1']
    #allocation8 [shape = 'u8[1024]{0}', space=vmem, size = 0x400, scoped, tag = 'output window, operand 2, single buffered']
    #allocation9 [shape = 's32[1]{0}', space=sflag, size = 0x4, scoped, tag = 'scoped memory for tpu_custom_call.1']
    #allocation10 [shape = 'u8[1024]{0}', space=vmem, size = 0x400, scoped, tag = 'output window, operand 3, single buffered']
    %24 = vsyncpa [#allocation7], 0
    %s25 = scalar_lea.sflag [#allocation7], 1
    %26 = vsyncpa %s25, 0
    %27 = vsyncpa [#allocation9], 0
    loop: start=0, step=1, limit=5
    $region2: #{tpu_custom_call.1} parent=1 // loop_pre_header
      _
    $region3: #{tpu_custom_call.1} parent=1 // loop_header
      %s29 = sphi 0, %s33
      %p30 = scmp.ge.s32.totalorder %s29, 5
      %s37 = sphi 0, %s37
      %s39 = sphi 0, %s37
      %s40 = sphi 0, %s39
      %s54 = sphi 0, %s40
      %s58 = sphi 0, %s58
      %s60 = sphi 0, %s58
      %s61 = sphi 0, %s60
      %s75 = sphi 0, %s61
      %s79 = sphi 0, %s79
      %s81 = sphi 0, %s79
      %s82 = sphi 0, %s81
      %s96 = sphi 0, %s82
      %s100 = sphi 0, %s100
      %s102 = sphi 0, %s100
      %s103 = sphi 0, %s102
      %s117 = sphi 0, %s103
      %s121 = sphi 0, %s121
      %s123 = sphi 0, %s121
      %s124 = sphi 0, %s123
      %s138 = sphi 0, %s124
      %s142 = sphi 0, %s142
      %s144 = sphi 0, %s142
      %s145 = sphi 0, %s144
      %s159 = sphi 0, %s145
      %s163 = sphi 0, %s163
      %s165 = sphi 0, %s163
      %s166 = sphi 0, %s165
      %s180 = sphi 0, %s166
      %s184 = sphi 0, %s184
      %s186 = sphi 0, %s184
      %s187 = sphi 0, %s186
      %s201 = sphi 0, %s187
      %s205 = sphi 0, %s205
      %s207 = sphi 0, %s205
      %s208 = sphi 0, %s207
      %s222 = sphi 0, %s208
      %s226 = sphi 0, %s226
      %s228 = sphi 0, %s226
      %s229 = sphi 0, %s228
      %s243 = sphi 0, %s229
      %s247 = sphi 0, %s247
      %s249 = sphi 0, %s247
      %s250 = sphi 0, %s249
      %s264 = sphi 0, %s250
      %s268 = sphi 0, %s268
      %s270 = sphi 0, %s268
      %s271 = sphi 0, %s270
      %s285 = sphi 0, %s271
      %s289 = sphi 0, %s289
      %s291 = sphi 0, %s289
      %s292 = sphi 0, %s291
      %s306 = sphi 0, %s292
      %s310 = sphi 0, %s310
      %s312 = sphi 0, %s310
      %s313 = sphi 0, %s312
      %s327 = sphi 0, %s313
      %s331 = sphi 0, %s331
      %s333 = sphi 0, %s331
      %s334 = sphi 0, %s333
      %s348 = sphi 0, %s334
      %s354 = sphi 0, %s356
      %s357 = sphi 0, %s354
      %s358 = sphi 0, %s357
      %s374 = sphi 0, %s358
      %s380 = sphi 0, %s382
      %s383 = sphi 0, %s380
      %s384 = sphi 0, %s383
      %s400 = sphi 0, %s384
      %s404 = sphi 0, %s404
      %s406 = sphi 0, %s404
      %s407 = sphi 0, %s406
      %s421 = sphi 0, %s407
      %s425 = sphi 0, %s425
      %s427 = sphi 0, %s425
      %s428 = sphi 0, %s427
      %s442 = sphi 0, %s428
    $region4: #{tpu_custom_call.1} parent=1 // loop_header_branch
      %32 = sbr.rel (%p30) target = $region8
    $region5: #{tpu_custom_call.1} parent=1 // loop_body
      %s34 = ssub.s32 %s29, 1
      %s35 = ssub.s32 %s29, 2
      %s36 = sadd.s32 %s29, 1
      %s38 = sadd.s32 %s37, 1
      %p41 = scmp.eq.s32.totalorder %s29, 2
      %p42 = scmp.ne.s32.totalorder %s37, %s39
      %p43 = scmp.eq.s32.totalorder %s29, 0
      %p44 = por %p42, %p43
      %p45 = scmp.ne.s32.totalorder %s37, %s39
      %p46 = scmp.eq.s32.totalorder %s34, 2
      %p47 = por %p45, %p46
      %p48 = scmp.ne.s32.totalorder %s39, %s40
      %p49 = scmp.eq.s32.totalorder %s34, 0
      %p50 = por %p48, %p49
      %p51 = scmp.ne.s32.totalorder %s39, %s40
      %p52 = scmp.eq.s32.totalorder %s35, 2
      %p53 = por %p51, %p52
      %p55 = scmp.ne.s32.totalorder %s40, %s54
      %p56 = scmp.eq.s32.totalorder %s35, 0
      %p57 = por %p55, %p56
      %s59 = sadd.s32 %s58, 1
      %p62 = scmp.eq.s32.totalorder %s29, 2
      %p63 = scmp.ne.s32.totalorder %s58, %s60
      %p64 = scmp.eq.s32.totalorder %s29, 0
      %p65 = por %p63, %p64
      %p66 = scmp.ne.s32.totalorder %s58, %s60
      %p67 = scmp.eq.s32.totalorder %s34, 2
      %p68 = por %p66, %p67
      %p69 = scmp.ne.s32.totalorder %s60, %s61
      %p70 = scmp.eq.s32.totalorder %s34, 0
      %p71 = por %p69, %p70
      %p72 = scmp.ne.s32.totalorder %s60, %s61
      %p73 = scmp.eq.s32.totalorder %s35, 2
      %p74 = por %p72, %p73
      %p76 = scmp.ne.s32.totalorder %s61, %s75
      %p77 = scmp.eq.s32.totalorder %s35, 0
      %p78 = por %p76, %p77
      %s80 = sadd.s32 %s79, 1
      %p83 = scmp.eq.s32.totalorder %s29, 2
      %p84 = scmp.ne.s32.totalorder %s79, %s81
      %p85 = scmp.eq.s32.totalorder %s29, 0
      %p86 = por %p84, %p85
      %p87 = scmp.ne.s32.totalorder %s79, %s81
      %p88 = scmp.eq.s32.totalorder %s34, 2
      %p89 = por %p87, %p88
      %p90 = scmp.ne.s32.totalorder %s81, %s82
      %p91 = scmp.eq.s32.totalorder %s34, 0
      %p92 = por %p90, %p91
      %p93 = scmp.ne.s32.totalorder %s81, %s82
      %p94 = scmp.eq.s32.totalorder %s35, 2
      %p95 = por %p93, %p94
      %p97 = scmp.ne.s32.totalorder %s82, %s96
      %p98 = scmp.eq.s32.totalorder %s35, 0
      %p99 = por %p97, %p98
      %s101 = sadd.s32 %s100, 1
      %p104 = scmp.eq.s32.totalorder %s29, 2
      %p105 = scmp.ne.s32.totalorder %s100, %s102
      %p106 = scmp.eq.s32.totalorder %s29, 0
      %p107 = por %p105, %p106
      %p108 = scmp.ne.s32.totalorder %s100, %s102
      %p109 = scmp.eq.s32.totalorder %s34, 2
      %p110 = por %p108, %p109
      %p111 = scmp.ne.s32.totalorder %s102, %s103
      %p112 = scmp.eq.s32.totalorder %s34, 0
      %p113 = por %p111, %p112
      %p114 = scmp.ne.s32.totalorder %s102, %s103
      %p115 = scmp.eq.s32.totalorder %s35, 2
      %p116 = por %p114, %p115
      %p118 = scmp.ne.s32.totalorder %s103, %s117
      %p119 = scmp.eq.s32.totalorder %s35, 0
      %p120 = por %p118, %p119
      %s122 = sadd.s32 %s121, 1
      %p125 = scmp.eq.s32.totalorder %s29, 2
      %p126 = scmp.ne.s32.totalorder %s121, %s123
      %p127 = scmp.eq.s32.totalorder %s29, 0
      %p128 = por %p126, %p127
      %p129 = scmp.ne.s32.totalorder %s121, %s123
      %p130 = scmp.eq.s32.totalorder %s34, 2
      %p131 = por %p129, %p130
      %p132 = scmp.ne.s32.totalorder %s123, %s124
      %p133 = scmp.eq.s32.totalorder %s34, 0
      %p134 = por %p132, %p133
      %p135 = scmp.ne.s32.totalorder %s123, %s124
      %p136 = scmp.eq.s32.totalorder %s35, 2
      %p137 = por %p135, %p136
      %p139 = scmp.ne.s32.totalorder %s124, %s138
      %p140 = scmp.eq.s32.totalorder %s35, 0
      %p141 = por %p139, %p140
      %s143 = sadd.s32 %s142, 1
      %p146 = scmp.eq.s32.totalorder %s29, 2
      %p147 = scmp.ne.s32.totalorder %s142, %s144
      %p148 = scmp.eq.s32.totalorder %s29, 0
      %p149 = por %p147, %p148
      %p150 = scmp.ne.s32.totalorder %s142, %s144
      %p151 = scmp.eq.s32.totalorder %s34, 2
      %p152 = por %p150, %p151
      %p153 = scmp.ne.s32.totalorder %s144, %s145
      %p154 = scmp.eq.s32.totalorder %s34, 0
      %p155 = por %p153, %p154
      %p156 = scmp.ne.s32.totalorder %s144, %s145
      %p157 = scmp.eq.s32.totalorder %s35, 2
      %p158 = por %p156, %p157
      %p160 = scmp.ne.s32.totalorder %s145, %s159
      %p161 = scmp.eq.s32.totalorder %s35, 0
      %p162 = por %p160, %p161
      %s164 = sadd.s32 %s163, 1
      %p167 = scmp.eq.s32.totalorder %s29, 2
      %p168 = scmp.ne.s32.totalorder %s163, %s165
      %p169 = scmp.eq.s32.totalorder %s29, 0
      %p170 = por %p168, %p169
      %p171 = scmp.ne.s32.totalorder %s163, %s165
      %p172 = scmp.eq.s32.totalorder %s34, 2
      %p173 = por %p171, %p172
      %p174 = scmp.ne.s32.totalorder %s165, %s166
      %p175 = scmp.eq.s32.totalorder %s34, 0
      %p176 = por %p174, %p175
      %p177 = scmp.ne.s32.totalorder %s165, %s166
      %p178 = scmp.eq.s32.totalorder %s35, 2
      %p179 = por %p177, %p178
      %p181 = scmp.ne.s32.totalorder %s166, %s180
      %p182 = scmp.eq.s32.totalorder %s35, 0
      %p183 = por %p181, %p182
      %s185 = sadd.s32 %s184, 1
      %p188 = scmp.eq.s32.totalorder %s29, 2
      %p189 = scmp.ne.s32.totalorder %s184, %s186
      %p190 = scmp.eq.s32.totalorder %s29, 0
      %p191 = por %p189, %p190
      %p192 = scmp.ne.s32.totalorder %s184, %s186
      %p193 = scmp.eq.s32.totalorder %s34, 2
      %p194 = por %p192, %p193
      %p195 = scmp.ne.s32.totalorder %s186, %s187
      %p196 = scmp.eq.s32.totalorder %s34, 0
      %p197 = por %p195, %p196
      %p198 = scmp.ne.s32.totalorder %s186, %s187
      %p199 = scmp.eq.s32.totalorder %s35, 2
      %p200 = por %p198, %p199
      %p202 = scmp.ne.s32.totalorder %s187, %s201
      %p203 = scmp.eq.s32.totalorder %s35, 0
      %p204 = por %p202, %p203
      %s206 = sadd.s32 %s205, 1
      %p209 = scmp.eq.s32.totalorder %s29, 2
      %p210 = scmp.ne.s32.totalorder %s205, %s207
      %p211 = scmp.eq.s32.totalorder %s29, 0
      %p212 = por %p210, %p211
      %p213 = scmp.ne.s32.totalorder %s205, %s207
      %p214 = scmp.eq.s32.totalorder %s34, 2
      %p215 = por %p213, %p214
      %p216 = scmp.ne.s32.totalorder %s207, %s208
      %p217 = scmp.eq.s32.totalorder %s34, 0
      %p218 = por %p216, %p217
      %p219 = scmp.ne.s32.totalorder %s207, %s208
      %p220 = scmp.eq.s32.totalorder %s35, 2
      %p221 = por %p219, %p220
      %p223 = scmp.ne.s32.totalorder %s208, %s222
      %p224 = scmp.eq.s32.totalorder %s35, 0
      %p225 = por %p223, %p224
      %s227 = sadd.s32 %s226, 1
      %p230 = scmp.eq.s32.totalorder %s29, 2
      %p231 = scmp.ne.s32.totalorder %s226, %s228
      %p232 = scmp.eq.s32.totalorder %s29, 0
      %p233 = por %p231, %p232
      %p234 = scmp.ne.s32.totalorder %s226, %s228
      %p235 = scmp.eq.s32.totalorder %s34, 2
      %p236 = por %p234, %p235
      %p237 = scmp.ne.s32.totalorder %s228, %s229
      %p238 = scmp.eq.s32.totalorder %s34, 0
      %p239 = por %p237, %p238
      %p240 = scmp.ne.s32.totalorder %s228, %s229
      %p241 = scmp.eq.s32.totalorder %s35, 2
      %p242 = por %p240, %p241
      %p244 = scmp.ne.s32.totalorder %s229, %s243
      %p245 = scmp.eq.s32.totalorder %s35, 0
      %p246 = por %p244, %p245
      %s248 = sadd.s32 %s247, 1
      %p251 = scmp.eq.s32.totalorder %s29, 2
      %p252 = scmp.ne.s32.totalorder %s247, %s249
      %p253 = scmp.eq.s32.totalorder %s29, 0
      %p254 = por %p252, %p253
      %p255 = scmp.ne.s32.totalorder %s247, %s249
      %p256 = scmp.eq.s32.totalorder %s34, 2
      %p257 = por %p255, %p256
      %p258 = scmp.ne.s32.totalorder %s249, %s250
      %p259 = scmp.eq.s32.totalorder %s34, 0
      %p260 = por %p258, %p259
      %p261 = scmp.ne.s32.totalorder %s249, %s250
      %p262 = scmp.eq.s32.totalorder %s35, 2
      %p263 = por %p261, %p262
      %p265 = scmp.ne.s32.totalorder %s250, %s264
      %p266 = scmp.eq.s32.totalorder %s35, 0
      %p267 = por %p265, %p266
      %s269 = sadd.s32 %s268, 1
      %p272 = scmp.eq.s32.totalorder %s29, 2
      %p273 = scmp.ne.s32.totalorder %s268, %s270
      %p274 = scmp.eq.s32.totalorder %s29, 0
      %p275 = por %p273, %p274
      %p276 = scmp.ne.s32.totalorder %s268, %s270
      %p277 = scmp.eq.s32.totalorder %s34, 2
      %p278 = por %p276, %p277
      %p279 = scmp.ne.s32.totalorder %s270, %s271
      %p280 = scmp.eq.s32.totalorder %s34, 0
      %p281 = por %p279, %p280
      %p282 = scmp.ne.s32.totalorder %s270, %s271
      %p283 = scmp.eq.s32.totalorder %s35, 2
      %p284 = por %p282, %p283
      %p286 = scmp.ne.s32.totalorder %s271, %s285
      %p287 = scmp.eq.s32.totalorder %s35, 0
      %p288 = por %p286, %p287
      %s290 = sadd.s32 %s289, 1
      %p293 = scmp.eq.s32.totalorder %s29, 2
      %p294 = scmp.ne.s32.totalorder %s289, %s291
      %p295 = scmp.eq.s32.totalorder %s29, 0
      %p296 = por %p294, %p295
      %p297 = scmp.ne.s32.totalorder %s289, %s291
      %p298 = scmp.eq.s32.totalorder %s34, 2
      %p299 = por %p297, %p298
      %p300 = scmp.ne.s32.totalorder %s291, %s292
      %p301 = scmp.eq.s32.totalorder %s34, 0
      %p302 = por %p300, %p301
      %p303 = scmp.ne.s32.totalorder %s291, %s292
      %p304 = scmp.eq.s32.totalorder %s35, 2
      %p305 = por %p303, %p304
      %p307 = scmp.ne.s32.totalorder %s292, %s306
      %p308 = scmp.eq.s32.totalorder %s35, 0
      %p309 = por %p307, %p308
      %s311 = sadd.s32 %s310, 1
      %p314 = scmp.eq.s32.totalorder %s29, 2
      %p315 = scmp.ne.s32.totalorder %s310, %s312
      %p316 = scmp.eq.s32.totalorder %s29, 0
      %p317 = por %p315, %p316
      %p318 = scmp.ne.s32.totalorder %s310, %s312
      %p319 = scmp.eq.s32.totalorder %s34, 2
      %p320 = por %p318, %p319
      %p321 = scmp.ne.s32.totalorder %s312, %s313
      %p322 = scmp.eq.s32.totalorder %s34, 0
      %p323 = por %p321, %p322
      %p324 = scmp.ne.s32.totalorder %s312, %s313
      %p325 = scmp.eq.s32.totalorder %s35, 2
      %p326 = por %p324, %p325
      %p328 = scmp.ne.s32.totalorder %s313, %s327
      %p329 = scmp.eq.s32.totalorder %s35, 0
      %p330 = por %p328, %p329
      %s332 = sadd.s32 %s331, 1
      %p335 = scmp.eq.s32.totalorder %s29, 2
      %p336 = scmp.ne.s32.totalorder %s331, %s333
      %p337 = scmp.eq.s32.totalorder %s29, 0
      %p338 = por %p336, %p337
      %p339 = scmp.ne.s32.totalorder %s331, %s333
      %p340 = scmp.eq.s32.totalorder %s34, 2
      %p341 = por %p339, %p340
      %p342 = scmp.ne.s32.totalorder %s333, %s334
      %p343 = scmp.eq.s32.totalorder %s34, 0
      %p344 = por %p342, %p343
      %p345 = scmp.ne.s32.totalorder %s333, %s334
      %p346 = scmp.eq.s32.totalorder %s35, 2
      %p347 = por %p345, %p346
      %p349 = scmp.ne.s32.totalorder %s334, %s348
      %p350 = scmp.eq.s32.totalorder %s35, 0
      %p351 = por %p349, %p350
      %s352 = ssub.s32 %s29, %s36
      %p353 = scmp.eq.s32.totalorder %s352, 0
      %s355 = sadd.s32 %s354, 1
      %s356 = scalar_select %p353, %s354, %s355
      %p359 = pneg %p353
      %p360 = scmp.eq.s32.totalorder %s29, 2
      %p361 = por %p359, %p360
      %p362 = scmp.ne.s32.totalorder %s354, %s357
      %p363 = scmp.eq.s32.totalorder %s29, 0
      %p364 = por %p362, %p363
      %p365 = scmp.ne.s32.totalorder %s354, %s357
      %p366 = scmp.eq.s32.totalorder %s34, 2
      %p367 = por %p365, %p366
      %p368 = scmp.ne.s32.totalorder %s357, %s358
      %p369 = scmp.eq.s32.totalorder %s34, 0
      %p370 = por %p368, %p369
      %p371 = scmp.ne.s32.totalorder %s357, %s358
      %p372 = scmp.eq.s32.totalorder %s35, 2
      %p373 = por %p371, %p372
      %p375 = scmp.ne.s32.totalorder %s358, %s374
      %p376 = scmp.eq.s32.totalorder %s35, 0
      %p377 = por %p375, %p376
      %s378 = ssub.s32 %s29, %s36
      %p379 = scmp.eq.s32.totalorder %s378, 0
      %s381 = sadd.s32 %s380, 1
      %s382 = scalar_select %p379, %s380, %s381
      %p385 = pneg %p379
      %p386 = scmp.eq.s32.totalorder %s29, 2
      %p387 = por %p385, %p386
      %p388 = scmp.ne.s32.totalorder %s380, %s383
      %p389 = scmp.eq.s32.totalorder %s29, 0
      %p390 = por %p388, %p389
      %p391 = scmp.ne.s32.totalorder %s380, %s383
      %p392 = scmp.eq.s32.totalorder %s34, 2
      %p393 = por %p391, %p392
      %p394 = scmp.ne.s32.totalorder %s383, %s384
      %p395 = scmp.eq.s32.totalorder %s34, 0
      %p396 = por %p394, %p395
      %p397 = scmp.ne.s32.totalorder %s383, %s384
      %p398 = scmp.eq.s32.totalorder %s35, 2
      %p399 = por %p397, %p398
      %p401 = scmp.ne.s32.totalorder %s384, %s400
      %p402 = scmp.eq.s32.totalorder %s35, 0
      %p403 = por %p401, %p402
      %s405 = sadd.s32 %s404, 1
      %p408 = scmp.eq.s32.totalorder %s29, 2
      %p409 = scmp.ne.s32.totalorder %s404, %s406
      %p410 = scmp.eq.s32.totalorder %s29, 0
      %p411 = por %p409, %p410
      %p412 = scmp.ne.s32.totalorder %s404, %s406
      %p413 = scmp.eq.s32.totalorder %s34, 2
      %p414 = por %p412, %p413
      %p415 = scmp.ne.s32.totalorder %s406, %s407
      %p416 = scmp.eq.s32.totalorder %s34, 0
      %p417 = por %p415, %p416
      %p418 = scmp.ne.s32.totalorder %s406, %s407
      %p419 = scmp.eq.s32.totalorder %s35, 2
      %p420 = por %p418, %p419
      %p422 = scmp.ne.s32.totalorder %s407, %s421
      %p423 = scmp.eq.s32.totalorder %s35, 0
      %p424 = por %p422, %p423
      %s426 = sadd.s32 %s425, 1
      %p429 = scmp.eq.s32.totalorder %s29, 2
      %p430 = scmp.ne.s32.totalorder %s425, %s427
      %p431 = scmp.eq.s32.totalorder %s29, 0
      %p432 = por %p430, %p431
      %p433 = scmp.ne.s32.totalorder %s425, %s427
      %p434 = scmp.eq.s32.totalorder %s34, 2
      %p435 = por %p433, %p434
      %p436 = scmp.ne.s32.totalorder %s427, %s428
      %p437 = scmp.eq.s32.totalorder %s34, 0
      %p438 = por %p436, %p437
      %p439 = scmp.ne.s32.totalorder %s427, %s428
      %p440 = scmp.eq.s32.totalorder %s35, 2
      %p441 = por %p439, %p440
      %p443 = scmp.ne.s32.totalorder %s428, %s442
      %p444 = scmp.eq.s32.totalorder %s35, 0
      %p445 = por %p443, %p444
      %p446 = scmp.le.s32.totalorder 1, %s29
      %p447 = scmp.lt.s32.totalorder %s29, 4
      %p448 = pnand %p446, %p447
      %p449 = pneg %p448
      // Predicated region
      $region9: #{tpu_custom_call.1} parent=5 // pred_check
        _
      $region10: #{tpu_custom_call.1} parent=5 // pred_check_branch
        %451 = sbr.rel (%p448) target = $region12
      $region11: #{tpu_custom_call.1} parent=5 // pred_region
        %s452 = ssub.s32 %s29, 1
        // Predicated region
        $region13: #{tpu_custom_call.1} parent=11 // pred_check
          %p453 = pneg %p50
        $region14: #{tpu_custom_call.1} parent=11 // pred_check_branch
          %455 = sbr.rel (%p453) target = $region16
        $region15: #{tpu_custom_call.1} parent=11 // pred_region
          _
        $region16: #{tpu_custom_call.1} parent=11 // pred_fallthru
          _
        // Predicated region
        $region17: #{tpu_custom_call.1} parent=11 // pred_check
          %p456 = pneg %p71
        $region18: #{tpu_custom_call.1} parent=11 // pred_check_branch
          %458 = sbr.rel (%p456) target = $region20
        $region19: #{tpu_custom_call.1} parent=11 // pred_region
          _
        $region20: #{tpu_custom_call.1} parent=11 // pred_fallthru
          _
        // Predicated region
        $region21: #{tpu_custom_call.1} parent=11 // pred_check
          %p459 = pneg %p92
        $region22: #{tpu_custom_call.1} parent=11 // pred_check_branch
          %461 = sbr.rel (%p459) target = $region24
        $region23: #{tpu_custom_call.1} parent=11 // pred_region
          _
        $region24: #{tpu_custom_call.1} parent=11 // pred_fallthru
          _
        // Predicated region
        $region25: #{tpu_custom_call.1} parent=11 // pred_check
          %p462 = pneg %p113
        $region26: #{tpu_custom_call.1} parent=11 // pred_check_branch
          %464 = sbr.rel (%p462) target = $region28
        $region27: #{tpu_custom_call.1} parent=11 // pred_region
          _
        $region28: #{tpu_custom_call.1} parent=11 // pred_fallthru
          _
        // Predicated region
        $region29: #{tpu_custom_call.1} parent=11 // pred_check
          %p465 = pneg %p134
        $region30: #{tpu_custom_call.1} parent=11 // pred_check_branch
          %467 = sbr.rel (%p465) target = $region32
        $region31: #{tpu_custom_call.1} parent=11 // pred_region
          _
        $region32: #{tpu_custom_call.1} parent=11 // pred_fallthru
          _
        // Predicated region
        $region33: #{tpu_custom_call.1} parent=11 // pred_check
          %p468 = pneg %p155
        $region34: #{tpu_custom_call.1} parent=11 // pred_check_branch
          %470 = sbr.rel (%p468) target = $region36
        $region35: #{tpu_custom_call.1} parent=11 // pred_region
          _
        $region36: #{tpu_custom_call.1} parent=11 // pred_fallthru
          _
        // Predicated region
        $region37: #{tpu_custom_call.1} parent=11 // pred_check
          %p471 = pneg %p176
        $region38: #{tpu_custom_call.1} parent=11 // pred_check_branch
          %473 = sbr.rel (%p471) target = $region40
        $region39: #{tpu_custom_call.1} parent=11 // pred_region
          _
        $region40: #{tpu_custom_call.1} parent=11 // pred_fallthru
          _
        // Predicated region
        $region41: #{tpu_custom_call.1} parent=11 // pred_check
          %p474 = pneg %p197
        $region42: #{tpu_custom_call.1} parent=11 // pred_check_branch
          %476 = sbr.rel (%p474) target = $region44
        $region43: #{tpu_custom_call.1} parent=11 // pred_region
          _
        $region44: #{tpu_custom_call.1} parent=11 // pred_fallthru
          _
        // Predicated region
        $region45: #{tpu_custom_call.1} parent=11 // pred_check
          %p477 = pneg %p218
        $region46: #{tpu_custom_call.1} parent=11 // pred_check_branch
          %479 = sbr.rel (%p477) target = $region48
        $region47: #{tpu_custom_call.1} parent=11 // pred_region
          _
        $region48: #{tpu_custom_call.1} parent=11 // pred_fallthru
          _
        // Predicated region
        $region49: #{tpu_custom_call.1} parent=11 // pred_check
          %p480 = pneg %p239
        $region50: #{tpu_custom_call.1} parent=11 // pred_check_branch
          %482 = sbr.rel (%p480) target = $region52
        $region51: #{tpu_custom_call.1} parent=11 // pred_region
          _
        $region52: #{tpu_custom_call.1} parent=11 // pred_fallthru
          _
        // Predicated region
        $region53: #{tpu_custom_call.1} parent=11 // pred_check
          %p483 = pneg %p260
        $region54: #{tpu_custom_call.1} parent=11 // pred_check_branch
          %485 = sbr.rel (%p483) target = $region56
        $region55: #{tpu_custom_call.1} parent=11 // pred_region
          _
        $region56: #{tpu_custom_call.1} parent=11 // pred_fallthru
          _
        // Predicated region
        $region57: #{tpu_custom_call.1} parent=11 // pred_check
          %p486 = pneg %p281
        $region58: #{tpu_custom_call.1} parent=11 // pred_check_branch
          %488 = sbr.rel (%p486) target = $region60
        $region59: #{tpu_custom_call.1} parent=11 // pred_region
          _
        $region60: #{tpu_custom_call.1} parent=11 // pred_fallthru
          _
        // Predicated region
        $region61: #{tpu_custom_call.1} parent=11 // pred_check
          %p489 = pneg %p302
        $region62: #{tpu_custom_call.1} parent=11 // pred_check_branch
          %491 = sbr.rel (%p489) target = $region64
        $region63: #{tpu_custom_call.1} parent=11 // pred_region
          _
        $region64: #{tpu_custom_call.1} parent=11 // pred_fallthru
          _
        // Predicated region
        $region65: #{tpu_custom_call.1} parent=11 // pred_check
          %p492 = pneg %p323
        $region66: #{tpu_custom_call.1} parent=11 // pred_check_branch
          %494 = sbr.rel (%p492) target = $region68
        $region67: #{tpu_custom_call.1} parent=11 // pred_region
          _
        $region68: #{tpu_custom_call.1} parent=11 // pred_fallthru
          _
        // Predicated region
        $region69: #{tpu_custom_call.1} parent=11 // pred_check
          %p495 = pneg %p344
        $region70: #{tpu_custom_call.1} parent=11 // pred_check_branch
          %497 = sbr.rel (%p495) target = $region72
        $region71: #{tpu_custom_call.1} parent=11 // pred_region
          _
        $region72: #{tpu_custom_call.1} parent=11 // pred_fallthru
          _
      $region12: #{tpu_custom_call.1} parent=5 // pred_fallthru
        _
      %p498 = scmp.lt.s32.totalorder %s29, 3
      // Predicated region
      $region73: #{tpu_custom_call.1} parent=5 // pred_check
        %p499 = pneg %p498
      $region74: #{tpu_custom_call.1} parent=5 // pred_check_branch
        %501 = sbr.rel (%p499) target = $region76
      $region75: #{tpu_custom_call.1} parent=5 // pred_region
        _
      $region76: #{tpu_custom_call.1} parent=5 // pred_fallthru
        _
      %p502 = scmp.le.s32.totalorder 1, %s29
      %p503 = scmp.lt.s32.totalorder %s29, 4
      %p504 = pnand %p502, %p503
      %p505 = pneg %p504
      // Predicated region
      $region77: #{tpu_custom_call.1} parent=5 // pred_check
        _
      $region78: #{tpu_custom_call.1} parent=5 // pred_check_branch
        %507 = sbr.rel (%p504) target = $region80
      $region79: #{tpu_custom_call.1} parent=5 // pred_region
        %s508 = ssub.s32 %s29, 1
        %p509 = pneg %p50
        %p510 = pneg %p47
        %p511 = pneg %p71
        %p512 = pneg %p68
        %p513 = pneg %p92
        %p514 = pneg %p89
        %p515 = pneg %p113
        %p516 = pneg %p110
        %p517 = pneg %p134
        %p518 = pneg %p131
        %p519 = pneg %p155
        %p520 = pneg %p152
        %p521 = pneg %p176
        %p522 = pneg %p173
        %p523 = pneg %p197
        %p524 = pneg %p194
        %p525 = pneg %p218
        %p526 = pneg %p215
        %p527 = pneg %p239
        %p528 = pneg %p236
        %p529 = pneg %p260
        %p530 = pneg %p257
        %p531 = pneg %p281
        %p532 = pneg %p278
        %p533 = pneg %p302
        %p534 = pneg %p299
        %p535 = pneg %p323
        %p536 = pneg %p320
        %p537 = pneg %p344
        %p538 = pneg %p341
        %p539 = pneg %p370
        %p540 = pneg %p367
        %s541 = sand.u32 %s357, 1
        %s542 = scalar_lea.sflag [#allocation7], %s541
        %s543 = sand.u32 %s357, 1
        %s544 = smul.addr %s543, 2
        %s545 = scalar_lea.vmem [#allocation6], %s544
        %p546 = pneg %p396
        %p547 = pneg %p393
        %p548 = scmp.lt.s32.totalorder %s34, 2
        %s549 = scalar_select %p548, %s34, 2
        %s550 = smul.addr %s549, 2
        %s551 = scalar_lea.vmem %s16, %s550
        %p552 = pneg %p417
        %p553 = pneg %p414
        %p554 = pneg %p438
        %p555 = pneg %p435
        %p556 = scmp.lt.s32.totalorder %s34, 2
        %s557 = scalar_select %p556, %s34, 2
        %s558 = smul.addr %s557, 2
        %s559 = scalar_lea.vmem %s16, %s558
        %p561 = scmp.eq.s32.totalorder %s34, 0
        // Predicated region
        $region81: #{tpu_custom_call.1} parent=79 // pred_check
          %p562 = pneg %p561
        $region82: #{tpu_custom_call.1} parent=79 // pred_check_branch
          %564 = sbr.rel (%p562) target = $region84
        $region83: #{tpu_custom_call.1} parent=79 // pred_region
          %v565 = vld [vmem:[%s0] sm:$0x3]
          %vm566 = vcmask 254976
          %567 = vst.msk [vmem:[#allocation2] sm:$0x3] %vm566, %v565
          %v568 = vld [vmem:[%s1] sm:$0x3]
          %569 = vst.msk [vmem:[#allocation3] sm:$0x3] %vm566, %v568
          %v570 = vld [vmem:[%s2] sm:$0x3]
          %571 = vst.msk [vmem:[#allocation4] sm:$0x3] %vm566, %v570
          %v572 = vlaneseq
          %v573 = vand.u32 %v572, 127
          %vm574 = vcmp.ge.s32.totalorder %v573, 8
          %v575 = vsel %vm574, 1.0, 0.0
          %576 = vst [vmem:[#allocation5] sm:$0x3] %v575
        $region84: #{tpu_custom_call.1} parent=79 // pred_fallthru
          _
        %v577 = vld [vmem:[#allocation2] sm:$0x3]
        %v578 = vld [vmem:[#allocation3] sm:$0x3]
        %v579 = vld [vmem:[#allocation4] sm:$0x3]
        %v580 = vld [vmem:[#allocation5] sm:$0x3]
        %v581 = vpack.c.bf16 %v577, %v577
        %v582 = vpack.c.bf16 %v578, %v578
        %v583 = vld [vmem:[%s6] sm:$0xf]
        %v584 = vld [vmem:[%s6 + $0x4] sm:$0xf]
        %v585 = vld [vmem:[%s6 + $0x8] sm:$0xf]
        %v586 = vld [vmem:[%s6 + $0xc] sm:$0xf]
        %v587 = vld [vmem:[%s7] sm:$0xf]
        %v588 = vld [vmem:[%s7 + $0x4] sm:$0xf]
        %v589 = vld [vmem:[%s7 + $0x8] sm:$0xf]
        %v590 = vld [vmem:[%s7 + $0xc] sm:$0xf]
        %v595 = vunpack.c.l.b16 %v587
        %v596 = vunpack.c.l.b16 %v588
        %v597 = vunpack.c.l.b16 %v589
        %v598 = vunpack.c.l.b16 %v590
        %v599 = vpack.c.b16 %v596, %v595
        %v600 = vpack.c.b16 %v598, %v597
        %vm603 = vcmask 261120
        %v605 = vsel %vm603, %v582, 0
        %607 = vmatprep.subr.bf16.mxu0 0
        %608 = vmatpush1.bf16.msra.mxu0 0
        %609 = vmatprep.subr.bf16.mxu0 0
        %610 = vmatpush1.bf16.msra.mxu0 0
        %611 = vmatprep.subr.bf16.mxu0 0
        %612 = vmatpush1.bf16.msra.mxu0 0
        %613 = vmatprep.subr.bf16.mxu0 0
        %614 = vmatpush1.bf16.msra.mxu0 0
        %615 = vmatprep.subr.bf16.mxu0 0
        %616 = vmatpush1.bf16.msra.mxu0 0
        %617 = vmatprep.subr.bf16.mxu0 0
        %618 = vmatpush1.bf16.msra.mxu0 0
        %619 = vmatprep.subr.bf16.mxu0 0
        %620 = vmatpush1.bf16.msra.mxu0 %v600
        %621 = vmatprep.subr.bf16.mxu0 0
        %622 = vmatpush1.bf16.msra.mxu0 %v599
        %623 = vmatprep.subr.bf16.mxu0 0
        %624 = vmatpush2.bf16.msra.mxu0 0
        %625 = vmatprep.subr.bf16.mxu0 0
        %626 = vmatpush2.bf16.msra.mxu0 0
        %627 = vmatprep.subr.bf16.mxu0 0
        %628 = vmatpush2.bf16.msra.mxu0 0
        %629 = vmatprep.subr.bf16.mxu0 0
        %630 = vmatpush2.bf16.msra.mxu0 0
        %631 = vmatprep.subr.bf16.mxu0 0
        %632 = vmatpush2.bf16.msra.mxu0 0
        %633 = vmatprep.subr.bf16.mxu0 0
        %634 = vmatpush2.bf16.msra.mxu0 0
        %635 = vmatprep.subr.bf16.mxu0 0
        %636 = vmatpush2.bf16.msra.mxu0 0
        %637 = vmatprep.subr.bf16.mxu0 0
        %638 = vmatpush2.bf16.msra.mxu0 0
        %639 = vmatprep.mubr.bf16.mxu0 0
        %640 = vmatmul.mubr.bf16.gmra.mxu0 %v605
        %v641 = vpop.f32.mrf.mxu0
        %v642 = vadd.f32 0.0, %v641
        %v643 = vpop.f32.mrf.mxu0
        %v644 = vpop.f32.mrf.mxu0
        %v645 = vpop.f32.mrf.mxu0
        %646 = vdwg.mxu0
        %v651 = vunpack.c.l.b16 %v583
        %v652 = vunpack.c.l.b16 %v584
        %v653 = vunpack.c.l.b16 %v585
        %v654 = vunpack.c.l.b16 %v586
        %v655 = vpack.c.b16 %v652, %v651
        %v656 = vpack.c.b16 %v654, %v653
        %v660 = vsel %vm603, %v581, 0
        %662 = vmatprep.subr.bf16.mxu0 0
        %663 = vmatpush1.bf16.msra.mxu0 0
        %664 = vmatprep.subr.bf16.mxu0 0
        %665 = vmatpush1.bf16.msra.mxu0 0
        %666 = vmatprep.subr.bf16.mxu0 0
        %667 = vmatpush1.bf16.msra.mxu0 0
        %668 = vmatprep.subr.bf16.mxu0 0
        %669 = vmatpush1.bf16.msra.mxu0 0
        %670 = vmatprep.subr.bf16.mxu0 0
        %671 = vmatpush1.bf16.msra.mxu0 0
        %672 = vmatprep.subr.bf16.mxu0 0
        %673 = vmatpush1.bf16.msra.mxu0 0
        %674 = vmatprep.subr.bf16.mxu0 0
        %675 = vmatpush1.bf16.msra.mxu0 %v656
        %676 = vmatprep.subr.bf16.mxu0 0
        %677 = vmatpush1.bf16.msra.mxu0 %v655
        %678 = vmatprep.subr.bf16.mxu0 0
        %679 = vmatpush2.bf16.msra.mxu0 0
        %680 = vmatprep.subr.bf16.mxu0 0
        %681 = vmatpush2.bf16.msra.mxu0 0
        %682 = vmatprep.subr.bf16.mxu0 0
        %683 = vmatpush2.bf16.msra.mxu0 0
        %684 = vmatprep.subr.bf16.mxu0 0
        %685 = vmatpush2.bf16.msra.mxu0 0
        %686 = vmatprep.subr.bf16.mxu0 0
        %687 = vmatpush2.bf16.msra.mxu0 0
        %688 = vmatprep.subr.bf16.mxu0 0
        %689 = vmatpush2.bf16.msra.mxu0 0
        %690 = vmatprep.subr.bf16.mxu0 0
        %691 = vmatpush2.bf16.msra.mxu0 0
        %692 = vmatprep.subr.bf16.mxu0 0
        %693 = vmatpush2.bf16.msra.mxu0 0
        %694 = vmatprep.mubr.bf16.mxu0 0
        %695 = vmatmul.mubr.bf16.gmra.mxu0 %v660
        %v696 = vpop.f32.mrf.mxu0
        %v697 = vadd.f32 %v642, %v696
        %v698 = vpop.f32.mrf.mxu0
        %v699 = vpop.f32.mrf.mxu0
        %v700 = vpop.f32.mrf.mxu0
        %701 = vdwg.mxu0
        %v702 = vld [vmem:[%s8] sm:$0x1]
        %v704 = vlaneseq
        %v705 = vshrl.u32 %v704, 7
        %v706 = vsub.s32 0, %v705
        %v707 = vrot.slane %v702, %v706
        %v709 = vadd.f32 %v697, %v707
        %s710 = scalar_lea.vmem %s6, 16
        %v711 = vld [vmem:[%s710] sm:$0xf]
        %v712 = vld [vmem:[%s710 + $0x4] sm:$0xf]
        %v713 = vld [vmem:[%s710 + $0x8] sm:$0xf]
        %v714 = vld [vmem:[%s710 + $0xc] sm:$0xf]
        %s715 = scalar_lea.vmem %s7, 16
        %v716 = vld [vmem:[%s715] sm:$0xf]
        %v717 = vld [vmem:[%s715 + $0x4] sm:$0xf]
        %v718 = vld [vmem:[%s715 + $0x8] sm:$0xf]
        %v719 = vld [vmem:[%s715 + $0xc] sm:$0xf]
        %v724 = vunpack.c.l.b16 %v716
        %v725 = vunpack.c.l.b16 %v717
        %v726 = vunpack.c.l.b16 %v718
        %v727 = vunpack.c.l.b16 %v719
        %v728 = vpack.c.b16 %v725, %v724
        %v729 = vpack.c.b16 %v727, %v726
        %732 = vmatprep.subr.bf16.mxu0 0
        %733 = vmatpush1.bf16.msra.mxu0 0
        %734 = vmatprep.subr.bf16.mxu0 0
        %735 = vmatpush1.bf16.msra.mxu0 0
        %736 = vmatprep.subr.bf16.mxu0 0
        %737 = vmatpush1.bf16.msra.mxu0 0
        %738 = vmatprep.subr.bf16.mxu0 0
        %739 = vmatpush1.bf16.msra.mxu0 0
        %740 = vmatprep.subr.bf16.mxu0 0
        %741 = vmatpush1.bf16.msra.mxu0 0
        %742 = vmatprep.subr.bf16.mxu0 0
        %743 = vmatpush1.bf16.msra.mxu0 0
        %744 = vmatprep.subr.bf16.mxu0 0
        %745 = vmatpush1.bf16.msra.mxu0 %v729
        %746 = vmatprep.subr.bf16.mxu0 0
        %747 = vmatpush1.bf16.msra.mxu0 %v728
        %748 = vmatprep.subr.bf16.mxu0 0
        %749 = vmatpush2.bf16.msra.mxu0 0
        %750 = vmatprep.subr.bf16.mxu0 0
        %751 = vmatpush2.bf16.msra.mxu0 0
        %752 = vmatprep.subr.bf16.mxu0 0
        %753 = vmatpush2.bf16.msra.mxu0 0
        %754 = vmatprep.subr.bf16.mxu0 0
        %755 = vmatpush2.bf16.msra.mxu0 0
        %756 = vmatprep.subr.bf16.mxu0 0
        %757 = vmatpush2.bf16.msra.mxu0 0
        %758 = vmatprep.subr.bf16.mxu0 0
        %759 = vmatpush2.bf16.msra.mxu0 0
        %760 = vmatprep.subr.bf16.mxu0 0
        %761 = vmatpush2.bf16.msra.mxu0 0
        %762 = vmatprep.subr.bf16.mxu0 0
        %763 = vmatpush2.bf16.msra.mxu0 0
        %764 = vmatprep.mubr.bf16.mxu0 0
        %765 = vmatmul.mubr.bf16.gmra.mxu0 %v605
        %v766 = vpop.f32.mrf.mxu0
        %v767 = vadd.f32 0.0, %v766
        %v768 = vpop.f32.mrf.mxu0
        %v769 = vpop.f32.mrf.mxu0
        %v770 = vpop.f32.mrf.mxu0
        %771 = vdwg.mxu0
        %v776 = vunpack.c.l.b16 %v711
        %v777 = vunpack.c.l.b16 %v712
        %v778 = vunpack.c.l.b16 %v713
        %v779 = vunpack.c.l.b16 %v714
        %v780 = vpack.c.b16 %v777, %v776
        %v781 = vpack.c.b16 %v779, %v778
        %784 = vmatprep.subr.bf16.mxu0 0
        %785 = vmatpush1.bf16.msra.mxu0 0
        %786 = vmatprep.subr.bf16.mxu0 0
        %787 = vmatpush1.bf16.msra.mxu0 0
        %788 = vmatprep.subr.bf16.mxu0 0
        %789 = vmatpush1.bf16.msra.mxu0 0
        %790 = vmatprep.subr.bf16.mxu0 0
        %791 = vmatpush1.bf16.msra.mxu0 0
        %792 = vmatprep.subr.bf16.mxu0 0
        %793 = vmatpush1.bf16.msra.mxu0 0
        %794 = vmatprep.subr.bf16.mxu0 0
        %795 = vmatpush1.bf16.msra.mxu0 0
        %796 = vmatprep.subr.bf16.mxu0 0
        %797 = vmatpush1.bf16.msra.mxu0 %v781
        %798 = vmatprep.subr.bf16.mxu0 0
        %799 = vmatpush1.bf16.msra.mxu0 %v780
        %800 = vmatprep.subr.bf16.mxu0 0
        %801 = vmatpush2.bf16.msra.mxu0 0
        %802 = vmatprep.subr.bf16.mxu0 0
        %803 = vmatpush2.bf16.msra.mxu0 0
        %804 = vmatprep.subr.bf16.mxu0 0
        %805 = vmatpush2.bf16.msra.mxu0 0
        %806 = vmatprep.subr.bf16.mxu0 0
        %807 = vmatpush2.bf16.msra.mxu0 0
        %808 = vmatprep.subr.bf16.mxu0 0
        %809 = vmatpush2.bf16.msra.mxu0 0
        %810 = vmatprep.subr.bf16.mxu0 0
        %811 = vmatpush2.bf16.msra.mxu0 0
        %812 = vmatprep.subr.bf16.mxu0 0
        %813 = vmatpush2.bf16.msra.mxu0 0
        %814 = vmatprep.subr.bf16.mxu0 0
        %815 = vmatpush2.bf16.msra.mxu0 0
        %816 = vmatprep.mubr.bf16.mxu0 0
        %817 = vmatmul.mubr.bf16.gmra.mxu0 %v660
        %v818 = vpop.f32.mrf.mxu0
        %v819 = vadd.f32 %v767, %v818
        %v820 = vpop.f32.mrf.mxu0
        %v821 = vpop.f32.mrf.mxu0
        %v822 = vpop.f32.mrf.mxu0
        %823 = vdwg.mxu0
        %s824 = scalar_lea.vmem %s8, 1
        %v825 = vld [vmem:[%s824] sm:$0x1]
        %v827 = vlaneseq
        %v828 = vshrl.u32 %v827, 7
        %v829 = vsub.s32 0, %v828
        %v830 = vrot.slane %v825, %v829
        %v832 = vadd.f32 %v819, %v830
        %s833 = scalar_lea.vmem %s6, 32
        %v834 = vld [vmem:[%s833] sm:$0xf]
        %v835 = vld [vmem:[%s833 + $0x4] sm:$0xf]
        %v836 = vld [vmem:[%s833 + $0x8] sm:$0xf]
        %v837 = vld [vmem:[%s833 + $0xc] sm:$0xf]
        %s838 = scalar_lea.vmem %s7, 32
        %v839 = vld [vmem:[%s838] sm:$0xf]
        %v840 = vld [vmem:[%s838 + $0x4] sm:$0xf]
        %v841 = vld [vmem:[%s838 + $0x8] sm:$0xf]
        %v842 = vld [vmem:[%s838 + $0xc] sm:$0xf]
        %v847 = vunpack.c.l.b16 %v839
        %v848 = vunpack.c.l.b16 %v840
        %v849 = vunpack.c.l.b16 %v841
        %v850 = vunpack.c.l.b16 %v842
        %v851 = vpack.c.b16 %v848, %v847
        %v852 = vpack.c.b16 %v850, %v849
        %855 = vmatprep.subr.bf16.mxu0 0
        %856 = vmatpush1.bf16.msra.mxu0 0
        %857 = vmatprep.subr.bf16.mxu0 0
        %858 = vmatpush1.bf16.msra.mxu0 0
        %859 = vmatprep.subr.bf16.mxu0 0
        %860 = vmatpush1.bf16.msra.mxu0 0
        %861 = vmatprep.subr.bf16.mxu0 0
        %862 = vmatpush1.bf16.msra.mxu0 0
        %863 = vmatprep.subr.bf16.mxu0 0
        %864 = vmatpush1.bf16.msra.mxu0 0
        %865 = vmatprep.subr.bf16.mxu0 0
        %866 = vmatpush1.bf16.msra.mxu0 0
        %867 = vmatprep.subr.bf16.mxu0 0
        %868 = vmatpush1.bf16.msra.mxu0 %v852
        %869 = vmatprep.subr.bf16.mxu0 0
        %870 = vmatpush1.bf16.msra.mxu0 %v851
        %871 = vmatprep.subr.bf16.mxu0 0
        %872 = vmatpush2.bf16.msra.mxu0 0
        %873 = vmatprep.subr.bf16.mxu0 0
        %874 = vmatpush2.bf16.msra.mxu0 0
        %875 = vmatprep.subr.bf16.mxu0 0
        %876 = vmatpush2.bf16.msra.mxu0 0
        %877 = vmatprep.subr.bf16.mxu0 0
        %878 = vmatpush2.bf16.msra.mxu0 0
        %879 = vmatprep.subr.bf16.mxu0 0
        %880 = vmatpush2.bf16.msra.mxu0 0
        %881 = vmatprep.subr.bf16.mxu0 0
        %882 = vmatpush2.bf16.msra.mxu0 0
        %883 = vmatprep.subr.bf16.mxu0 0
        %884 = vmatpush2.bf16.msra.mxu0 0
        %885 = vmatprep.subr.bf16.mxu0 0
        %886 = vmatpush2.bf16.msra.mxu0 0
        %887 = vmatprep.mubr.bf16.mxu0 0
        %888 = vmatmul.mubr.bf16.gmra.mxu0 %v605
        %v889 = vpop.f32.mrf.mxu0
        %v890 = vadd.f32 0.0, %v889
        %v891 = vpop.f32.mrf.mxu0
        %v892 = vpop.f32.mrf.mxu0
        %v893 = vpop.f32.mrf.mxu0
        %894 = vdwg.mxu0
        %v899 = vunpack.c.l.b16 %v834
        %v900 = vunpack.c.l.b16 %v835
        %v901 = vunpack.c.l.b16 %v836
        %v902 = vunpack.c.l.b16 %v837
        %v903 = vpack.c.b16 %v900, %v899
        %v904 = vpack.c.b16 %v902, %v901
        %907 = vmatprep.subr.bf16.mxu0 0
        %908 = vmatpush1.bf16.msra.mxu0 0
        %909 = vmatprep.subr.bf16.mxu0 0
        %910 = vmatpush1.bf16.msra.mxu0 0
        %911 = vmatprep.subr.bf16.mxu0 0
        %912 = vmatpush1.bf16.msra.mxu0 0
        %913 = vmatprep.subr.bf16.mxu0 0
        %914 = vmatpush1.bf16.msra.mxu0 0
        %915 = vmatprep.subr.bf16.mxu0 0
        %916 = vmatpush1.bf16.msra.mxu0 0
        %917 = vmatprep.subr.bf16.mxu0 0
        %918 = vmatpush1.bf16.msra.mxu0 0
        %919 = vmatprep.subr.bf16.mxu0 0
        %920 = vmatpush1.bf16.msra.mxu0 %v904
        %921 = vmatprep.subr.bf16.mxu0 0
        %922 = vmatpush1.bf16.msra.mxu0 %v903
        %923 = vmatprep.subr.bf16.mxu0 0
        %924 = vmatpush2.bf16.msra.mxu0 0
        %925 = vmatprep.subr.bf16.mxu0 0
        %926 = vmatpush2.bf16.msra.mxu0 0
        %927 = vmatprep.subr.bf16.mxu0 0
        %928 = vmatpush2.bf16.msra.mxu0 0
        %929 = vmatprep.subr.bf16.mxu0 0
        %930 = vmatpush2.bf16.msra.mxu0 0
        %931 = vmatprep.subr.bf16.mxu0 0
        %932 = vmatpush2.bf16.msra.mxu0 0
        %933 = vmatprep.subr.bf16.mxu0 0
        %934 = vmatpush2.bf16.msra.mxu0 0
        %935 = vmatprep.subr.bf16.mxu0 0
        %936 = vmatpush2.bf16.msra.mxu0 0
        %937 = vmatprep.subr.bf16.mxu0 0
        %938 = vmatpush2.bf16.msra.mxu0 0
        %939 = vmatprep.mubr.bf16.mxu0 0
        %940 = vmatmul.mubr.bf16.gmra.mxu0 %v660
        %v941 = vpop.f32.mrf.mxu0
        %v942 = vadd.f32 %v890, %v941
        %v943 = vpop.f32.mrf.mxu0
        %v944 = vpop.f32.mrf.mxu0
        %v945 = vpop.f32.mrf.mxu0
        %946 = vdwg.mxu0
        %s947 = scalar_lea.vmem %s8, 2
        %v948 = vld [vmem:[%s947] sm:$0x1]
        %v950 = vlaneseq
        %v951 = vshrl.u32 %v950, 7
        %v952 = vsub.s32 0, %v951
        %v953 = vrot.slane %v948, %v952
        %v955 = vadd.f32 %v942, %v953
        %s956 = scalar_lea.vmem %s6, 48
        %v957 = vld [vmem:[%s956] sm:$0xf]
        %v958 = vld [vmem:[%s956 + $0x4] sm:$0xf]
        %v959 = vld [vmem:[%s956 + $0x8] sm:$0xf]
        %v960 = vld [vmem:[%s956 + $0xc] sm:$0xf]
        %s961 = scalar_lea.vmem %s7, 48
        %v962 = vld [vmem:[%s961] sm:$0xf]
        %v963 = vld [vmem:[%s961 + $0x4] sm:$0xf]
        %v964 = vld [vmem:[%s961 + $0x8] sm:$0xf]
        %v965 = vld [vmem:[%s961 + $0xc] sm:$0xf]
        %v970 = vunpack.c.l.b16 %v962
        %v971 = vunpack.c.l.b16 %v963
        %v972 = vunpack.c.l.b16 %v964
        %v973 = vunpack.c.l.b16 %v965
        %v974 = vpack.c.b16 %v971, %v970
        %v975 = vpack.c.b16 %v973, %v972
        %978 = vmatprep.subr.bf16.mxu0 0
        %979 = vmatpush1.bf16.msra.mxu0 0
        %980 = vmatprep.subr.bf16.mxu0 0
        %981 = vmatpush1.bf16.msra.mxu0 0
        %982 = vmatprep.subr.bf16.mxu0 0
        %983 = vmatpush1.bf16.msra.mxu0 0
        %984 = vmatprep.subr.bf16.mxu0 0
        %985 = vmatpush1.bf16.msra.mxu0 0
        %986 = vmatprep.subr.bf16.mxu0 0
        %987 = vmatpush1.bf16.msra.mxu0 0
        %988 = vmatprep.subr.bf16.mxu0 0
        %989 = vmatpush1.bf16.msra.mxu0 0
        %990 = vmatprep.subr.bf16.mxu0 0
        %991 = vmatpush1.bf16.msra.mxu0 %v975
        %992 = vmatprep.subr.bf16.mxu0 0
        %993 = vmatpush1.bf16.msra.mxu0 %v974
        %994 = vmatprep.subr.bf16.mxu0 0
        %995 = vmatpush2.bf16.msra.mxu0 0
        %996 = vmatprep.subr.bf16.mxu0 0
        %997 = vmatpush2.bf16.msra.mxu0 0
        %998 = vmatprep.subr.bf16.mxu0 0
        %999 = vmatpush2.bf16.msra.mxu0 0
        %1000 = vmatprep.subr.bf16.mxu0 0
        %1001 = vmatpush2.bf16.msra.mxu0 0
        %1002 = vmatprep.subr.bf16.mxu0 0
        %1003 = vmatpush2.bf16.msra.mxu0 0
        %1004 = vmatprep.subr.bf16.mxu0 0
        %1005 = vmatpush2.bf16.msra.mxu0 0
        %1006 = vmatprep.subr.bf16.mxu0 0
        %1007 = vmatpush2.bf16.msra.mxu0 0
        %1008 = vmatprep.subr.bf16.mxu0 0
        %1009 = vmatpush2.bf16.msra.mxu0 0
        %1010 = vmatprep.mubr.bf16.mxu0 0
        %1011 = vmatmul.mubr.bf16.gmra.mxu0 %v605
        %v1012 = vpop.f32.mrf.mxu0
        %v1013 = vadd.f32 0.0, %v1012
        %v1014 = vpop.f32.mrf.mxu0
        %v1015 = vpop.f32.mrf.mxu0
        %v1016 = vpop.f32.mrf.mxu0
        %1017 = vdwg.mxu0
        %v1022 = vunpack.c.l.b16 %v957
        %v1023 = vunpack.c.l.b16 %v958
        %v1024 = vunpack.c.l.b16 %v959
        %v1025 = vunpack.c.l.b16 %v960
        %v1026 = vpack.c.b16 %v1023, %v1022
        %v1027 = vpack.c.b16 %v1025, %v1024
        %1030 = vmatprep.subr.bf16.mxu0 0
        %1031 = vmatpush1.bf16.msra.mxu0 0
        %1032 = vmatprep.subr.bf16.mxu0 0
        %1033 = vmatpush1.bf16.msra.mxu0 0
        %1034 = vmatprep.subr.bf16.mxu0 0
        %1035 = vmatpush1.bf16.msra.mxu0 0
        %1036 = vmatprep.subr.bf16.mxu0 0
        %1037 = vmatpush1.bf16.msra.mxu0 0
        %1038 = vmatprep.subr.bf16.mxu0 0
        %1039 = vmatpush1.bf16.msra.mxu0 0
        %1040 = vmatprep.subr.bf16.mxu0 0
        %1041 = vmatpush1.bf16.msra.mxu0 0
        %1042 = vmatprep.subr.bf16.mxu0 0
        %1043 = vmatpush1.bf16.msra.mxu0 %v1027
        %1044 = vmatprep.subr.bf16.mxu0 0
        %1045 = vmatpush1.bf16.msra.mxu0 %v1026
        %1046 = vmatprep.subr.bf16.mxu0 0
        %1047 = vmatpush2.bf16.msra.mxu0 0
        %1048 = vmatprep.subr.bf16.mxu0 0
        %1049 = vmatpush2.bf16.msra.mxu0 0
        %1050 = vmatprep.subr.bf16.mxu0 0
        %1051 = vmatpush2.bf16.msra.mxu0 0
        %1052 = vmatprep.subr.bf16.mxu0 0
        %1053 = vmatpush2.bf16.msra.mxu0 0
        %1054 = vmatprep.subr.bf16.mxu0 0
        %1055 = vmatpush2.bf16.msra.mxu0 0
        %1056 = vmatprep.subr.bf16.mxu0 0
        %1057 = vmatpush2.bf16.msra.mxu0 0
        %1058 = vmatprep.subr.bf16.mxu0 0
        %1059 = vmatpush2.bf16.msra.mxu0 0
        %1060 = vmatprep.subr.bf16.mxu0 0
        %1061 = vmatpush2.bf16.msra.mxu0 0
        %1062 = vmatprep.mubr.bf16.mxu0 0
        %1063 = vmatmul.mubr.bf16.gmra.mxu0 %v660
        %v1064 = vpop.f32.mrf.mxu0
        %v1065 = vadd.f32 %v1013, %v1064
        %v1066 = vpop.f32.mrf.mxu0
        %v1067 = vpop.f32.mrf.mxu0
        %v1068 = vpop.f32.mrf.mxu0
        %1069 = vdwg.mxu0
        %s1070 = scalar_lea.vmem %s8, 3
        %v1071 = vld [vmem:[%s1070] sm:$0x1]
        %v1073 = vlaneseq
        %v1074 = vshrl.u32 %v1073, 7
        %v1075 = vsub.s32 0, %v1074
        %v1076 = vrot.slane %v1071, %v1075
        %v1078 = vadd.f32 %v1065, %v1076
        %v1079 = vxor.u32 %v709, 2147483648
        %v1080 = vmul.f32 %v1079, 1.442695
        %v1081 = vpow.pop %v1080
        %v1082 = vadd.f32 %v1081, 1.0
        %v1083 = vrcp.pop %v1082
        %v1084 = vmul.f32 1.0, %v1083
        %v1085 = vxor.u32 %v832, 2147483648
        %v1086 = vmul.f32 %v1085, 1.442695
        %v1087 = vpow.pop %v1086
        %v1088 = vadd.f32 %v1087, 1.0
        %v1089 = vrcp.pop %v1088
        %v1090 = vmul.f32 1.0, %v1089
        %v1091 = vtanh.pop %v955
        %v1092 = vxor.u32 %v1078, 2147483648
        %v1093 = vmul.f32 %v1092, 1.442695
        %v1094 = vpow.pop %v1093
        %v1095 = vadd.f32 %v1094, 1.0
        %v1096 = vrcp.pop %v1095
        %v1097 = vmul.f32 1.0, %v1096
        %v1098 = vmul.f32 %v1090, %v579
        %v1099 = vmul.f32 %v1084, %v1091
        %v1100 = vadd.f32 %v1098, %v1099
        %v1101 = vtanh.pop %v1100
        %v1102 = vmul.f32 %v1097, %v1101
        %v1103 = vld [vmem:[%s4] sm:$0xff]
        %v1104 = vld [vmem:[%s4 + $0x8] sm:$0xff]
        %v1105 = vld [vmem:[%s4 + $0x10] sm:$0xff]
        %v1106 = vld [vmem:[%s4 + $0x18] sm:$0xff]
        %v1107 = vld [vmem:[%s4 + $0x20] sm:$0xff]
        %v1108 = vld [vmem:[%s4 + $0x28] sm:$0xff]
        %v1109 = vld [vmem:[%s4 + $0x30] sm:$0xff]
        %v1110 = vld [vmem:[%s4 + $0x38] sm:$0xff]
        %v1111 = vld [vmem:[%s4 + $0x40] sm:$0xff]
        %v1112 = vld [vmem:[%s4 + $0x48] sm:$0xff]
        %v1113 = vld [vmem:[%s4 + $0x50] sm:$0xff]
        %v1114 = vld [vmem:[%s4 + $0x58] sm:$0xff]
        %v1115 = vld [vmem:[%s4 + $0x60] sm:$0xff]
        %v1116 = vld [vmem:[%s4 + $0x68] sm:$0xff]
        %v1117 = vld [vmem:[%s4 + $0x70] sm:$0xff]
        %v1118 = vld [vmem:[%s4 + $0x78] sm:$0xff]
        %v1119 = vld [vmem:[%s4 + $0x80] sm:$0xff]
        %v1120 = vld [vmem:[%s4 + $0x88] sm:$0xff]
        %v1121 = vld [vmem:[%s4 + $0x90] sm:$0xff]
        %v1122 = vld [vmem:[%s4 + $0x98] sm:$0xff]
        %v1123 = vld [vmem:[%s4 + $0xa0] sm:$0xff]
        %v1124 = vld [vmem:[%s4 + $0xa8] sm:$0xff]
        %v1125 = vld [vmem:[%s4 + $0xb0] sm:$0xff]
        %v1126 = vld [vmem:[%s4 + $0xb8] sm:$0xff]
        %v1127 = vld [vmem:[%s4 + $0xc0] sm:$0xff]
        %v1128 = vld [vmem:[%s4 + $0xc8] sm:$0xff]
        %v1129 = vld [vmem:[%s4 + $0xd0] sm:$0xff]
        %v1130 = vld [vmem:[%s4 + $0xd8] sm:$0xff]
        %v1131 = vld [vmem:[%s4 + $0xe0] sm:$0xff]
        %v1132 = vld [vmem:[%s4 + $0xe8] sm:$0xff]
        %v1133 = vld [vmem:[%s4 + $0xf0] sm:$0xff]
        %v1134 = vld [vmem:[%s4 + $0xf8] sm:$0xff]
        %v1135 = vld [vmem:[%s9] sm:$0xf]
        %v1136 = vld [vmem:[%s9 + $0x4] sm:$0xf]
        %v1137 = vld [vmem:[%s9 + $0x8] sm:$0xf]
        %v1138 = vld [vmem:[%s9 + $0xc] sm:$0xf]
        %v1139 = vld [vmem:[%s10] sm:$0x1]
        %v1140 = vld [vmem:[%s11] sm:$0x1]
        %v1141 = vpack.c.bf16 %v1102, %v1102
        %v1143 = vlaneseq
        %v1144 = vshrl.u32 %v1143, 7
        %v1145 = vsub.s32 0, %v1144
        %v1146 = vrot.slane %v1139, %v1145
        %v1152 = vunpack.c.l.b16 %v1135
        %v1153 = vunpack.c.l.b16 %v1136
        %v1154 = vunpack.c.l.b16 %v1137
        %v1155 = vunpack.c.l.b16 %v1138
        %v1156 = vpack.c.b16 %v1153, %v1152
        %v1157 = vpack.c.b16 %v1155, %v1154
        %v1161 = vsel %vm603, %v1141, 0
        %1163 = vmatprep.subr.bf16.mxu0 0
        %1164 = vmatpush1.bf16.msra.mxu0 0
        %1165 = vmatprep.subr.bf16.mxu0 0
        %1166 = vmatpush1.bf16.msra.mxu0 0
        %1167 = vmatprep.subr.bf16.mxu0 0
        %1168 = vmatpush1.bf16.msra.mxu0 0
        %1169 = vmatprep.subr.bf16.mxu0 0
        %1170 = vmatpush1.bf16.msra.mxu0 0
        %1171 = vmatprep.subr.bf16.mxu0 0
        %1172 = vmatpush1.bf16.msra.mxu0 0
        %1173 = vmatprep.subr.bf16.mxu0 0
        %1174 = vmatpush1.bf16.msra.mxu0 0
        %1175 = vmatprep.subr.bf16.mxu0 0
        %1176 = vmatpush1.bf16.msra.mxu0 %v1157
        %1177 = vmatprep.subr.bf16.mxu0 0
        %1178 = vmatpush1.bf16.msra.mxu0 %v1156
        %1179 = vmatprep.subr.bf16.mxu0 0
        %1180 = vmatpush2.bf16.msra.mxu0 0
        %1181 = vmatprep.subr.bf16.mxu0 0
        %1182 = vmatpush2.bf16.msra.mxu0 0
        %1183 = vmatprep.subr.bf16.mxu0 0
        %1184 = vmatpush2.bf16.msra.mxu0 0
        %1185 = vmatprep.subr.bf16.mxu0 0
        %1186 = vmatpush2.bf16.msra.mxu0 0
        %1187 = vmatprep.subr.bf16.mxu0 0
        %1188 = vmatpush2.bf16.msra.mxu0 0
        %1189 = vmatprep.subr.bf16.mxu0 0
        %1190 = vmatpush2.bf16.msra.mxu0 0
        %1191 = vmatprep.subr.bf16.mxu0 0
        %1192 = vmatpush2.bf16.msra.mxu0 0
        %1193 = vmatprep.subr.bf16.mxu0 0
        %1194 = vmatpush2.bf16.msra.mxu0 0
        %1195 = vmatprep.mubr.bf16.mxu0 0
        %1196 = vmatmul.mubr.bf16.gmra.mxu0 %v1161
        %v1197 = vpop.f32.mrf.mxu0
        %v1198 = vadd.f32 %v1146, %v1197
        %v1199 = vpop.f32.mrf.mxu0
        %v1200 = vpop.f32.mrf.mxu0
        %v1201 = vpop.f32.mrf.mxu0
        %1202 = vdwg.mxu0
        %v1205 = vunpack.c.l.s4 1966171168
        %v1206 = vunpack.c.0.s8 %v1205
        %v1207 = vlaneseq
        %v1208 = vshrl.u32 %v1207, 7
        %v1209 = vsub.s32 %v1206, %v1208
        %v1210 = vrot.slane %v1198, %v1209
        %v1211 = vcombine.high %v1210, %v1210
        %v1213 = vunpack.c.l.s4 1966171168
        %v1214 = vunpack.c.0.s8 %v1213
        %v1215 = vlaneseq
        %v1216 = vshrl.u32 %v1215, 7
        %v1217 = vsub.s32 %v1214, %v1216
        %v1218 = vrot.slane %v1210, %v1217
        %v1220 = vunpack.c.l.s4 1966171168
        %v1221 = vunpack.c.0.s8 %v1220
        %v1222 = vlaneseq
        %v1223 = vshrl.u32 %v1222, 7
        %v1224 = vsub.s32 %v1221, %v1223
        %v1225 = vrot.slane %v1211, %v1224
        %v1226 = vlaneseq
        %v1227 = vshrl.u32 %v1226, 7
        %v1228 = vsub.s32 0, %v1227
        %v1229 = vrot.slane %v1218, %v1228
        %v1230 = vlaneseq
        %v1231 = vshrl.u32 %v1230, 7
        %v1232 = vsub.s32 0, %v1231
        %v1233 = vrot.slane %v1225, %v1232
        %v1236 = vadd.f32 %v1229, %v1103
        %v1237 = vadd.f32 %v1229, %v1104
        %v1238 = vadd.f32 %v1229, %v1105
        %v1239 = vadd.f32 %v1229, %v1106
        %v1240 = vadd.f32 %v1229, %v1107
        %v1241 = vadd.f32 %v1229, %v1108
        %v1242 = vadd.f32 %v1229, %v1109
        %v1243 = vadd.f32 %v1229, %v1110
        %v1244 = vadd.f32 %v1229, %v1111
        %v1245 = vadd.f32 %v1229, %v1112
        %v1246 = vadd.f32 %v1229, %v1113
        %v1247 = vadd.f32 %v1229, %v1114
        %v1248 = vadd.f32 %v1229, %v1115
        %v1249 = vadd.f32 %v1229, %v1116
        %v1250 = vadd.f32 %v1229, %v1117
        %v1251 = vadd.f32 %v1229, %v1118
        %v1252 = vadd.f32 %v1233, %v1119
        %v1253 = vadd.f32 %v1233, %v1120
        %v1254 = vadd.f32 %v1233, %v1121
        %v1255 = vadd.f32 %v1233, %v1122
        %v1256 = vadd.f32 %v1233, %v1123
        %v1257 = vadd.f32 %v1233, %v1124
        %v1258 = vadd.f32 %v1233, %v1125
        %v1259 = vadd.f32 %v1233, %v1126
        %v1260 = vadd.f32 %v1233, %v1127
        %v1261 = vadd.f32 %v1233, %v1128
        %v1262 = vadd.f32 %v1233, %v1129
        %v1263 = vadd.f32 %v1233, %v1130
        %v1264 = vadd.f32 %v1233, %v1131
        %v1265 = vadd.f32 %v1233, %v1132
        %v1266 = vadd.f32 %v1233, %v1133
        %v1267 = vadd.f32 %v1233, %v1134
        %v1268 = vtanh.pop %v1236
        %v1269 = vtanh.pop %v1237
        %v1270 = vtanh.pop %v1238
        %v1271 = vtanh.pop %v1239
        %v1272 = vtanh.pop %v1240
        %v1273 = vtanh.pop %v1241
        %v1274 = vtanh.pop %v1242
        %v1275 = vtanh.pop %v1243
        %v1276 = vtanh.pop %v1244
        %v1277 = vtanh.pop %v1245
        %v1278 = vtanh.pop %v1246
        %v1279 = vtanh.pop %v1247
        %v1280 = vtanh.pop %v1248
        %v1281 = vtanh.pop %v1249
        %v1282 = vtanh.pop %v1250
        %v1283 = vtanh.pop %v1251
        %v1284 = vtanh.pop %v1252
        %v1285 = vtanh.pop %v1253
        %v1286 = vtanh.pop %v1254
        %v1287 = vtanh.pop %v1255
        %v1288 = vtanh.pop %v1256
        %v1289 = vtanh.pop %v1257
        %v1290 = vtanh.pop %v1258
        %v1291 = vtanh.pop %v1259
        %v1292 = vtanh.pop %v1260
        %v1293 = vtanh.pop %v1261
        %v1294 = vtanh.pop %v1262
        %v1295 = vtanh.pop %v1263
        %v1296 = vtanh.pop %v1264
        %v1297 = vtanh.pop %v1265
        %v1298 = vtanh.pop %v1266
        %v1299 = vtanh.pop %v1267
        %v1301 = vlaneseq
        %v1302 = vshrl.u32 %v1301, 7
        %v1303 = vsub.s32 0, %v1302
        %v1304 = vrot.slane %v1140, %v1303
        %v1306 = vmul.f32 %v1268, %v1304
        %v1307 = vmul.f32 %v1269, %v1304
        %v1308 = vmul.f32 %v1270, %v1304
        %v1309 = vmul.f32 %v1271, %v1304
        %v1310 = vmul.f32 %v1272, %v1304
        %v1311 = vmul.f32 %v1273, %v1304
        %v1312 = vmul.f32 %v1274, %v1304
        %v1313 = vmul.f32 %v1275, %v1304
        %v1314 = vmul.f32 %v1276, %v1304
        %v1315 = vmul.f32 %v1277, %v1304
        %v1316 = vmul.f32 %v1278, %v1304
        %v1317 = vmul.f32 %v1279, %v1304
        %v1318 = vmul.f32 %v1280, %v1304
        %v1319 = vmul.f32 %v1281, %v1304
        %v1320 = vmul.f32 %v1282, %v1304
        %v1321 = vmul.f32 %v1283, %v1304
        %v1322 = vmul.f32 %v1284, %v1304
        %v1323 = vmul.f32 %v1285, %v1304
        %v1324 = vmul.f32 %v1286, %v1304
        %v1325 = vmul.f32 %v1287, %v1304
        %v1326 = vmul.f32 %v1288, %v1304
        %v1327 = vmul.f32 %v1289, %v1304
        %v1328 = vmul.f32 %v1290, %v1304
        %v1329 = vmul.f32 %v1291, %v1304
        %v1330 = vmul.f32 %v1292, %v1304
        %v1331 = vmul.f32 %v1293, %v1304
        %v1332 = vmul.f32 %v1294, %v1304
        %v1333 = vmul.f32 %v1295, %v1304
        %v1334 = vmul.f32 %v1296, %v1304
        %v1335 = vmul.f32 %v1297, %v1304
        %v1336 = vmul.f32 %v1298, %v1304
        %v1337 = vmul.f32 %v1299, %v1304
        %v1338 = vsel %vm603, %v1306, 0.0
        %1339 = vadd.xlane.f32.xlu0 %v1338
        %v1340 = vpop.xlane.xlu0 %1339
        %v1341 = vsel %vm603, %v1307, 0.0
        %1342 = vadd.xlane.f32.xlu0 %v1341
        %v1343 = vpop.xlane.xlu0 %1342
        %v1344 = vsel %vm603, %v1308, 0.0
        %1345 = vadd.xlane.f32.xlu0 %v1344
        %v1346 = vpop.xlane.xlu0 %1345
        %v1347 = vsel %vm603, %v1309, 0.0
        %1348 = vadd.xlane.f32.xlu0 %v1347
        %v1349 = vpop.xlane.xlu0 %1348
        %v1350 = vsel %vm603, %v1310, 0.0
        %1351 = vadd.xlane.f32.xlu0 %v1350
        %v1352 = vpop.xlane.xlu0 %1351
        %v1353 = vsel %vm603, %v1311, 0.0
        %1354 = vadd.xlane.f32.xlu0 %v1353
        %v1355 = vpop.xlane.xlu0 %1354
        %v1356 = vsel %vm603, %v1312, 0.0
        %1357 = vadd.xlane.f32.xlu0 %v1356
        %v1358 = vpop.xlane.xlu0 %1357
        %v1359 = vsel %vm603, %v1313, 0.0
        %1360 = vadd.xlane.f32.xlu0 %v1359
        %v1361 = vpop.xlane.xlu0 %1360
        %v1362 = vsel %vm603, %v1314, 0.0
        %1363 = vadd.xlane.f32.xlu0 %v1362
        %v1364 = vpop.xlane.xlu0 %1363
        %v1365 = vsel %vm603, %v1315, 0.0
        %1366 = vadd.xlane.f32.xlu0 %v1365
        %v1367 = vpop.xlane.xlu0 %1366
        %v1368 = vsel %vm603, %v1316, 0.0
        %1369 = vadd.xlane.f32.xlu0 %v1368
        %v1370 = vpop.xlane.xlu0 %1369
        %v1371 = vsel %vm603, %v1317, 0.0
        %1372 = vadd.xlane.f32.xlu0 %v1371
        %v1373 = vpop.xlane.xlu0 %1372
        %v1374 = vsel %vm603, %v1318, 0.0
        %1375 = vadd.xlane.f32.xlu0 %v1374
        %v1376 = vpop.xlane.xlu0 %1375
        %v1377 = vsel %vm603, %v1319, 0.0
        %1378 = vadd.xlane.f32.xlu0 %v1377
        %v1379 = vpop.xlane.xlu0 %1378
        %v1380 = vsel %vm603, %v1320, 0.0
        %1381 = vadd.xlane.f32.xlu0 %v1380
        %v1382 = vpop.xlane.xlu0 %1381
        %v1383 = vsel %vm603, %v1321, 0.0
        %1384 = vadd.xlane.f32.xlu0 %v1383
        %v1385 = vpop.xlane.xlu0 %1384
        %v1386 = vsel %vm603, %v1322, 0.0
        %1387 = vadd.xlane.f32.xlu0 %v1386
        %v1388 = vpop.xlane.xlu0 %1387
        %v1389 = vsel %vm603, %v1323, 0.0
        %1390 = vadd.xlane.f32.xlu0 %v1389
        %v1391 = vpop.xlane.xlu0 %1390
        %v1392 = vsel %vm603, %v1324, 0.0
        %1393 = vadd.xlane.f32.xlu0 %v1392
        %v1394 = vpop.xlane.xlu0 %1393
        %v1395 = vsel %vm603, %v1325, 0.0
        %1396 = vadd.xlane.f32.xlu0 %v1395
        %v1397 = vpop.xlane.xlu0 %1396
        %v1398 = vsel %vm603, %v1326, 0.0
        %1399 = vadd.xlane.f32.xlu0 %v1398
        %v1400 = vpop.xlane.xlu0 %1399
        %v1401 = vsel %vm603, %v1327, 0.0
        %1402 = vadd.xlane.f32.xlu0 %v1401
        %v1403 = vpop.xlane.xlu0 %1402
        %v1404 = vsel %vm603, %v1328, 0.0
        %1405 = vadd.xlane.f32.xlu0 %v1404
        %v1406 = vpop.xlane.xlu0 %1405
        %v1407 = vsel %vm603, %v1329, 0.0
        %1408 = vadd.xlane.f32.xlu0 %v1407
        %v1409 = vpop.xlane.xlu0 %1408
        %v1410 = vsel %vm603, %v1330, 0.0
        %1411 = vadd.xlane.f32.xlu0 %v1410
        %v1412 = vpop.xlane.xlu0 %1411
        %v1413 = vsel %vm603, %v1331, 0.0
        %1414 = vadd.xlane.f32.xlu0 %v1413
        %v1415 = vpop.xlane.xlu0 %1414
        %v1416 = vsel %vm603, %v1332, 0.0
        %1417 = vadd.xlane.f32.xlu0 %v1416
        %v1418 = vpop.xlane.xlu0 %1417
        %v1419 = vsel %vm603, %v1333, 0.0
        %1420 = vadd.xlane.f32.xlu0 %v1419
        %v1421 = vpop.xlane.xlu0 %1420
        %v1422 = vsel %vm603, %v1334, 0.0
        %1423 = vadd.xlane.f32.xlu0 %v1422
        %v1424 = vpop.xlane.xlu0 %1423
        %v1425 = vsel %vm603, %v1335, 0.0
        %1426 = vadd.xlane.f32.xlu0 %v1425
        %v1427 = vpop.xlane.xlu0 %1426
        %v1428 = vsel %vm603, %v1336, 0.0
        %1429 = vadd.xlane.f32.xlu0 %v1428
        %v1430 = vpop.xlane.xlu0 %1429
        %v1431 = vsel %vm603, %v1337, 0.0
        %1432 = vadd.xlane.f32.xlu0 %v1431
        %v1433 = vpop.xlane.xlu0 %1432
        %vm1434 = vcmp.gt.f32.partialorder %v580, 0.0
        %v1467 = vlaneseq
        %v1468 = vand.u32 %v1467, 127
        %v1469 = vlaneseq
        %v1470 = vshrl.u32 %v1469, 7
        %v1471 = vsub.s32 %v1468, %v1470
        %v1472 = vrot.slane %v1340, %v1471
        %v1473 = vadd.s32 %v1468, 4294967288
        %v1474 = vlaneseq
        %v1475 = vshrl.u32 %v1474, 7
        %v1476 = vsub.s32 %v1473, %v1475
        %v1477 = vrot.slane %v1343, %v1476
        %vm1478 = vcmask 130112
        %v1479 = vsel %vm1478, %v1477, %v1472
        %v1480 = vadd.s32 %v1468, 4294967280
        %v1481 = vlaneseq
        %v1482 = vshrl.u32 %v1481, 7
        %v1483 = vsub.s32 %v1480, %v1482
        %v1484 = vrot.slane %v1346, %v1483
        %vm1485 = vcmask 195712
        %v1486 = vsel %vm1485, %v1484, %v1479
        %v1487 = vadd.s32 %v1468, 4294967272
        %v1488 = vlaneseq
        %v1489 = vshrl.u32 %v1488, 7
        %v1490 = vsub.s32 %v1487, %v1489
        %v1491 = vrot.slane %v1349, %v1490
        %vm1492 = vcmask 261312
        %v1493 = vsel %vm1492, %v1491, %v1486
        %v1494 = vadd.s32 %v1468, 4294967264
        %v1495 = vlaneseq
        %v1496 = vshrl.u32 %v1495, 7
        %v1497 = vsub.s32 %v1494, %v1496
        %v1498 = vrot.slane %v1352, %v1497
        %vm1499 = vcmask 326912
        %v1500 = vsel %vm1499, %v1498, %v1493
        %v1501 = vadd.s32 %v1468, 4294967256
        %v1502 = vlaneseq
        %v1503 = vshrl.u32 %v1502, 7
        %v1504 = vsub.s32 %v1501, %v1503
        %v1505 = vrot.slane %v1355, %v1504
        %vm1506 = vcmask 392512
        %v1507 = vsel %vm1506, %v1505, %v1500
        %v1508 = vadd.s32 %v1468, 4294967248
        %v1509 = vlaneseq
        %v1510 = vshrl.u32 %v1509, 7
        %v1511 = vsub.s32 %v1508, %v1510
        %v1512 = vrot.slane %v1358, %v1511
        %vm1513 = vcmask 458112
        %v1514 = vsel %vm1513, %v1512, %v1507
        %v1515 = vadd.s32 %v1468, 4294967240
        %v1516 = vlaneseq
        %v1517 = vshrl.u32 %v1516, 7
        %v1518 = vsub.s32 %v1515, %v1517
        %v1519 = vrot.slane %v1361, %v1518
        %vm1520 = vcmask 523712
        %v1521 = vsel %vm1520, %v1519, %v1514
        %v1522 = vadd.s32 %v1468, 4294967232
        %v1523 = vlaneseq
        %v1524 = vshrl.u32 %v1523, 7
        %v1525 = vsub.s32 %v1522, %v1524
        %v1526 = vrot.slane %v1364, %v1525
        %vm1527 = vcmask 589312
        %v1528 = vsel %vm1527, %v1526, %v1521
        %v1529 = vadd.s32 %v1468, 4294967224
        %v1530 = vlaneseq
        %v1531 = vshrl.u32 %v1530, 7
        %v1532 = vsub.s32 %v1529, %v1531
        %v1533 = vrot.slane %v1367, %v1532
        %vm1534 = vcmask 654912
        %v1535 = vsel %vm1534, %v1533, %v1528
        %v1536 = vadd.s32 %v1468, 4294967216
        %v1537 = vlaneseq
        %v1538 = vshrl.u32 %v1537, 7
        %v1539 = vsub.s32 %v1536, %v1538
        %v1540 = vrot.slane %v1370, %v1539
        %vm1541 = vcmask 720512
        %v1542 = vsel %vm1541, %v1540, %v1535
        %v1543 = vadd.s32 %v1468, 4294967208
        %v1544 = vlaneseq
        %v1545 = vshrl.u32 %v1544, 7
        %v1546 = vsub.s32 %v1543, %v1545
        %v1547 = vrot.slane %v1373, %v1546
        %vm1548 = vcmask 786112
        %v1549 = vsel %vm1548, %v1547, %v1542
        %v1550 = vadd.s32 %v1468, 4294967200
        %v1551 = vlaneseq
        %v1552 = vshrl.u32 %v1551, 7
        %v1553 = vsub.s32 %v1550, %v1552
        %v1554 = vrot.slane %v1376, %v1553
        %vm1555 = vcmask 851712
        %v1556 = vsel %vm1555, %v1554, %v1549
        %v1557 = vadd.s32 %v1468, 4294967192
        %v1558 = vlaneseq
        %v1559 = vshrl.u32 %v1558, 7
        %v1560 = vsub.s32 %v1557, %v1559
        %v1561 = vrot.slane %v1379, %v1560
        %vm1562 = vcmask 917312
        %v1563 = vsel %vm1562, %v1561, %v1556
        %v1564 = vadd.s32 %v1468, 4294967184
        %v1565 = vlaneseq
        %v1566 = vshrl.u32 %v1565, 7
        %v1567 = vsub.s32 %v1564, %v1566
        %v1568 = vrot.slane %v1382, %v1567
        %vm1569 = vcmask 982912
        %v1570 = vsel %vm1569, %v1568, %v1563
        %v1571 = vadd.s32 %v1468, 4294967176
        %v1572 = vlaneseq
        %v1573 = vshrl.u32 %v1572, 7
        %v1574 = vsub.s32 %v1571, %v1573
        %v1575 = vrot.slane %v1385, %v1574
        %vm1576 = vcmask 1048512
        %v1577 = vsel %vm1576, %v1575, %v1570
        %v1578 = vlaneseq
        %v1579 = vshrl.u32 %v1578, 7
        %v1580 = vsub.s32 %v1468, %v1579
        %v1581 = vrot.slane %v1388, %v1580
        %v1582 = vlaneseq
        %v1583 = vshrl.u32 %v1582, 7
        %v1584 = vsub.s32 %v1473, %v1583
        %v1585 = vrot.slane %v1391, %v1584
        %v1586 = vsel %vm1478, %v1585, %v1581
        %v1587 = vlaneseq
        %v1588 = vshrl.u32 %v1587, 7
        %v1589 = vsub.s32 %v1480, %v1588
        %v1590 = vrot.slane %v1394, %v1589
        %v1591 = vsel %vm1485, %v1590, %v1586
        %v1592 = vlaneseq
        %v1593 = vshrl.u32 %v1592, 7
        %v1594 = vsub.s32 %v1487, %v1593
        %v1595 = vrot.slane %v1397, %v1594
        %v1596 = vsel %vm1492, %v1595, %v1591
        %v1597 = vlaneseq
        %v1598 = vshrl.u32 %v1597, 7
        %v1599 = vsub.s32 %v1494, %v1598
        %v1600 = vrot.slane %v1400, %v1599
        %v1601 = vsel %vm1499, %v1600, %v1596
        %v1602 = vlaneseq
        %v1603 = vshrl.u32 %v1602, 7
        %v1604 = vsub.s32 %v1501, %v1603
        %v1605 = vrot.slane %v1403, %v1604
        %v1606 = vsel %vm1506, %v1605, %v1601
        %v1607 = vlaneseq
        %v1608 = vshrl.u32 %v1607, 7
        %v1609 = vsub.s32 %v1508, %v1608
        %v1610 = vrot.slane %v1406, %v1609
        %v1611 = vsel %vm1513, %v1610, %v1606
        %v1612 = vlaneseq
        %v1613 = vshrl.u32 %v1612, 7
        %v1614 = vsub.s32 %v1515, %v1613
        %v1615 = vrot.slane %v1409, %v1614
        %v1616 = vsel %vm1520, %v1615, %v1611
        %v1617 = vlaneseq
        %v1618 = vshrl.u32 %v1617, 7
        %v1619 = vsub.s32 %v1522, %v1618
        %v1620 = vrot.slane %v1412, %v1619
        %v1621 = vsel %vm1527, %v1620, %v1616
        %v1622 = vlaneseq
        %v1623 = vshrl.u32 %v1622, 7
        %v1624 = vsub.s32 %v1529, %v1623
        %v1625 = vrot.slane %v1415, %v1624
        %v1626 = vsel %vm1534, %v1625, %v1621
        %v1627 = vlaneseq
        %v1628 = vshrl.u32 %v1627, 7
        %v1629 = vsub.s32 %v1536, %v1628
        %v1630 = vrot.slane %v1418, %v1629
        %v1631 = vsel %vm1541, %v1630, %v1626
        %v1632 = vlaneseq
        %v1633 = vshrl.u32 %v1632, 7
        %v1634 = vsub.s32 %v1543, %v1633
        %v1635 = vrot.slane %v1421, %v1634
        %v1636 = vsel %vm1548, %v1635, %v1631
        %v1637 = vlaneseq
        %v1638 = vshrl.u32 %v1637, 7
        %v1639 = vsub.s32 %v1550, %v1638
        %v1640 = vrot.slane %v1424, %v1639
        %v1641 = vsel %vm1555, %v1640, %v1636
        %v1642 = vlaneseq
        %v1643 = vshrl.u32 %v1642, 7
        %v1644 = vsub.s32 %v1557, %v1643
        %v1645 = vrot.slane %v1427, %v1644
        %v1646 = vsel %vm1562, %v1645, %v1641
        %v1647 = vlaneseq
        %v1648 = vshrl.u32 %v1647, 7
        %v1649 = vsub.s32 %v1564, %v1648
        %v1650 = vrot.slane %v1430, %v1649
        %v1651 = vsel %vm1569, %v1650, %v1646
        %v1652 = vlaneseq
        %v1653 = vshrl.u32 %v1652, 7
        %v1654 = vsub.s32 %v1571, %v1653
        %v1655 = vrot.slane %v1433, %v1654
        %v1656 = vsel %vm1576, %v1655, %v1651
        %vm1657 = vcmask 1041409
        %v1658 = vsel %vm1657, %v1656, %v1577
        %v1660 = vsel %vm1434, -1e+30, %v1658
        %vm1661 = vcmask 1041408
        %v1662 = vsel %vm1661, %v1660, -inf
        %1663 = vmax.xlane.f32.xlu0 %v1662
        %v1664 = vpop.xlane.xlu0 %1663
        %v1665 = vsub.f32 %v1660, %v1664
        %v1666 = vmul.f32 %v1665, 1.442695
        %v1667 = vpow.pop %v1666
        %v1668 = vsel %vm1661, %v1667, 0.0
        %1669 = vadd.xlane.f32.xlu0 %v1668
        %v1670 = vpop.xlane.xlu0 %1669
        %v1671 = vrcp.pop %v1670
        %v1672 = vmul.f32 %v1667, %v1671
        %v1673 = vlaneseq
        %v1674 = vshrl.u32 %v1673, 7
        %v1675 = vsub.s32 0, %v1674
        %v1676 = vrot.slane %v1672, %v1675
        %1678 = vbcast.lane.b32.xlu0 %v1676, 256
        %v1679 = vpop.permute.xlu0 %1678
        %s1681 = sor.u32 256, 8
        %1682 = vbcast.lane.b32.xlu0 %v1676, %s1681
        %v1683 = vpop.permute.xlu0 %1682
        %s1685 = sor.u32 256, 16
        %1686 = vbcast.lane.b32.xlu0 %v1676, %s1685
        %v1687 = vpop.permute.xlu0 %1686
        %s1689 = sor.u32 256, 24
        %1690 = vbcast.lane.b32.xlu0 %v1676, %s1689
        %v1691 = vpop.permute.xlu0 %1690
        %s1693 = sor.u32 256, 32
        %1694 = vbcast.lane.b32.xlu0 %v1676, %s1693
        %v1695 = vpop.permute.xlu0 %1694
        %s1697 = sor.u32 256, 40
        %1698 = vbcast.lane.b32.xlu0 %v1676, %s1697
        %v1699 = vpop.permute.xlu0 %1698
        %s1701 = sor.u32 256, 48
        %1702 = vbcast.lane.b32.xlu0 %v1676, %s1701
        %v1703 = vpop.permute.xlu0 %1702
        %s1705 = sor.u32 256, 56
        %1706 = vbcast.lane.b32.xlu0 %v1676, %s1705
        %v1707 = vpop.permute.xlu0 %1706
        %s1709 = sor.u32 256, 64
        %1710 = vbcast.lane.b32.xlu0 %v1676, %s1709
        %v1711 = vpop.permute.xlu0 %1710
        %s1713 = sor.u32 256, 72
        %1714 = vbcast.lane.b32.xlu0 %v1676, %s1713
        %v1715 = vpop.permute.xlu0 %1714
        %s1717 = sor.u32 256, 80
        %1718 = vbcast.lane.b32.xlu0 %v1676, %s1717
        %v1719 = vpop.permute.xlu0 %1718
        %s1721 = sor.u32 256, 88
        %1722 = vbcast.lane.b32.xlu0 %v1676, %s1721
        %v1723 = vpop.permute.xlu0 %1722
        %s1725 = sor.u32 256, 96
        %1726 = vbcast.lane.b32.xlu0 %v1676, %s1725
        %v1727 = vpop.permute.xlu0 %1726
        %s1729 = sor.u32 256, 104
        %1730 = vbcast.lane.b32.xlu0 %v1676, %s1729
        %v1731 = vpop.permute.xlu0 %1730
        %s1733 = sor.u32 256, 112
        %1734 = vbcast.lane.b32.xlu0 %v1676, %s1733
        %v1735 = vpop.permute.xlu0 %1734
        %s1737 = sor.u32 256, 120
        %1738 = vbcast.lane.b32.xlu0 %v1676, %s1737
        %v1739 = vpop.permute.xlu0 %1738
        %v1740 = vlaneseq
        %v1741 = vshrl.u32 %v1740, 7
        %v1742 = vsub.s32 1, %v1741
        %v1743 = vrot.slane %v1672, %v1742
        %1745 = vbcast.lane.b32.xlu0 %v1743, 256
        %v1746 = vpop.permute.xlu0 %1745
        %s1748 = sor.u32 256, 8
        %1749 = vbcast.lane.b32.xlu0 %v1743, %s1748
        %v1750 = vpop.permute.xlu0 %1749
        %s1752 = sor.u32 256, 16
        %1753 = vbcast.lane.b32.xlu0 %v1743, %s1752
        %v1754 = vpop.permute.xlu0 %1753
        %s1756 = sor.u32 256, 24
        %1757 = vbcast.lane.b32.xlu0 %v1743, %s1756
        %v1758 = vpop.permute.xlu0 %1757
        %s1760 = sor.u32 256, 32
        %1761 = vbcast.lane.b32.xlu0 %v1743, %s1760
        %v1762 = vpop.permute.xlu0 %1761
        %s1764 = sor.u32 256, 40
        %1765 = vbcast.lane.b32.xlu0 %v1743, %s1764
        %v1766 = vpop.permute.xlu0 %1765
        %s1768 = sor.u32 256, 48
        %1769 = vbcast.lane.b32.xlu0 %v1743, %s1768
        %v1770 = vpop.permute.xlu0 %1769
        %s1772 = sor.u32 256, 56
        %1773 = vbcast.lane.b32.xlu0 %v1743, %s1772
        %v1774 = vpop.permute.xlu0 %1773
        %s1776 = sor.u32 256, 64
        %1777 = vbcast.lane.b32.xlu0 %v1743, %s1776
        %v1778 = vpop.permute.xlu0 %1777
        %s1780 = sor.u32 256, 72
        %1781 = vbcast.lane.b32.xlu0 %v1743, %s1780
        %v1782 = vpop.permute.xlu0 %1781
        %s1784 = sor.u32 256, 80
        %1785 = vbcast.lane.b32.xlu0 %v1743, %s1784
        %v1786 = vpop.permute.xlu0 %1785
        %s1788 = sor.u32 256, 88
        %1789 = vbcast.lane.b32.xlu0 %v1743, %s1788
        %v1790 = vpop.permute.xlu0 %1789
        %s1792 = sor.u32 256, 96
        %1793 = vbcast.lane.b32.xlu0 %v1743, %s1792
        %v1794 = vpop.permute.xlu0 %1793
        %s1796 = sor.u32 256, 104
        %1797 = vbcast.lane.b32.xlu0 %v1743, %s1796
        %v1798 = vpop.permute.xlu0 %1797
        %s1800 = sor.u32 256, 112
        %1801 = vbcast.lane.b32.xlu0 %v1743, %s1800
        %v1802 = vpop.permute.xlu0 %1801
        %s1804 = sor.u32 256, 120
        %1805 = vbcast.lane.b32.xlu0 %v1743, %s1804
        %v1806 = vpop.permute.xlu0 %1805
        %v1807 = vmul.f32 %v1679, %v1103
        %v1808 = vmul.f32 %v1683, %v1104
        %v1809 = vmul.f32 %v1687, %v1105
        %v1810 = vmul.f32 %v1691, %v1106
        %v1811 = vmul.f32 %v1695, %v1107
        %v1812 = vmul.f32 %v1699, %v1108
        %v1813 = vmul.f32 %v1703, %v1109
        %v1814 = vmul.f32 %v1707, %v1110
        %v1815 = vmul.f32 %v1711, %v1111
        %v1816 = vmul.f32 %v1715, %v1112
        %v1817 = vmul.f32 %v1719, %v1113
        %v1818 = vmul.f32 %v1723, %v1114
        %v1819 = vmul.f32 %v1727, %v1115
        %v1820 = vmul.f32 %v1731, %v1116
        %v1821 = vmul.f32 %v1735, %v1117
        %v1822 = vmul.f32 %v1739, %v1118
        %v1823 = vmul.f32 %v1746, %v1119
        %v1824 = vmul.f32 %v1750, %v1120
        %v1825 = vmul.f32 %v1754, %v1121
        %v1826 = vmul.f32 %v1758, %v1122
        %v1827 = vmul.f32 %v1762, %v1123
        %v1828 = vmul.f32 %v1766, %v1124
        %v1829 = vmul.f32 %v1770, %v1125
        %v1830 = vmul.f32 %v1774, %v1126
        %v1831 = vmul.f32 %v1778, %v1127
        %v1832 = vmul.f32 %v1782, %v1128
        %v1833 = vmul.f32 %v1786, %v1129
        %v1834 = vmul.f32 %v1790, %v1130
        %v1835 = vmul.f32 %v1794, %v1131
        %v1836 = vmul.f32 %v1798, %v1132
        %v1837 = vmul.f32 %v1802, %v1133
        %v1838 = vmul.f32 %v1806, %v1134
        %v1839 = vsel %vm603, %v1807, 0.0
        %v1840 = vsel %vm603, %v1808, 0.0
        %v1841 = vadd.f32 %v1839, %v1840
        %v1842 = vsel %vm603, %v1809, 0.0
        %v1843 = vadd.f32 %v1841, %v1842
        %v1844 = vsel %vm603, %v1810, 0.0
        %v1845 = vadd.f32 %v1843, %v1844
        %v1846 = vsel %vm603, %v1811, 0.0
        %v1847 = vadd.f32 %v1845, %v1846
        %v1848 = vsel %vm603, %v1812, 0.0
        %v1849 = vadd.f32 %v1847, %v1848
        %v1850 = vsel %vm603, %v1813, 0.0
        %v1851 = vadd.f32 %v1849, %v1850
        %v1852 = vsel %vm603, %v1814, 0.0
        %v1853 = vadd.f32 %v1851, %v1852
        %v1854 = vsel %vm603, %v1815, 0.0
        %v1855 = vadd.f32 %v1853, %v1854
        %v1856 = vsel %vm603, %v1816, 0.0
        %v1857 = vadd.f32 %v1855, %v1856
        %v1858 = vsel %vm603, %v1817, 0.0
        %v1859 = vadd.f32 %v1857, %v1858
        %v1860 = vsel %vm603, %v1818, 0.0
        %v1861 = vadd.f32 %v1859, %v1860
        %v1862 = vsel %vm603, %v1819, 0.0
        %v1863 = vadd.f32 %v1861, %v1862
        %v1864 = vsel %vm603, %v1820, 0.0
        %v1865 = vadd.f32 %v1863, %v1864
        %v1866 = vsel %vm603, %v1821, 0.0
        %v1867 = vadd.f32 %v1865, %v1866
        %v1868 = vsel %vm603, %v1822, 0.0
        %v1869 = vadd.f32 %v1867, %v1868
        %v1870 = vrot.slane %v1869, 4
        %v1871 = vadd.f32 %v1869, %v1870
        %v1872 = vrot.slane %v1871, 2
        %v1873 = vadd.f32 %v1871, %v1872
        %v1874 = vrot.slane %v1873, 1
        %v1875 = vadd.f32 %v1873, %v1874
        %v1876 = vsel %vm603, %v1823, 0.0
        %v1877 = vsel %vm603, %v1824, 0.0
        %v1878 = vadd.f32 %v1876, %v1877
        %v1879 = vsel %vm603, %v1825, 0.0
        %v1880 = vadd.f32 %v1878, %v1879
        %v1881 = vsel %vm603, %v1826, 0.0
        %v1882 = vadd.f32 %v1880, %v1881
        %v1883 = vsel %vm603, %v1827, 0.0
        %v1884 = vadd.f32 %v1882, %v1883
        %v1885 = vsel %vm603, %v1828, 0.0
        %v1886 = vadd.f32 %v1884, %v1885
        %v1887 = vsel %vm603, %v1829, 0.0
        %v1888 = vadd.f32 %v1886, %v1887
        %v1889 = vsel %vm603, %v1830, 0.0
        %v1890 = vadd.f32 %v1888, %v1889
        %v1891 = vsel %vm603, %v1831, 0.0
        %v1892 = vadd.f32 %v1890, %v1891
        %v1893 = vsel %vm603, %v1832, 0.0
        %v1894 = vadd.f32 %v1892, %v1893
        %v1895 = vsel %vm603, %v1833, 0.0
        %v1896 = vadd.f32 %v1894, %v1895
        %v1897 = vsel %vm603, %v1834, 0.0
        %v1898 = vadd.f32 %v1896, %v1897
        %v1899 = vsel %vm603, %v1835, 0.0
        %v1900 = vadd.f32 %v1898, %v1899
        %v1901 = vsel %vm603, %v1836, 0.0
        %v1902 = vadd.f32 %v1900, %v1901
        %v1903 = vsel %vm603, %v1837, 0.0
        %v1904 = vadd.f32 %v1902, %v1903
        %v1905 = vsel %vm603, %v1838, 0.0
        %v1906 = vadd.f32 %v1904, %v1905
        %v1907 = vrot.slane %v1906, 4
        %v1908 = vadd.f32 %v1906, %v1907
        %v1909 = vrot.slane %v1908, 2
        %v1910 = vadd.f32 %v1908, %v1909
        %v1911 = vrot.slane %v1910, 1
        %v1912 = vadd.f32 %v1910, %v1911
        %v1913 = vld [vmem:[%s5] sm:$0xff]
        %v1914 = vld [vmem:[%s5 + $0x8] sm:$0xff]
        %v1915 = vld [vmem:[%s5 + $0x10] sm:$0xff]
        %v1916 = vld [vmem:[%s5 + $0x18] sm:$0xff]
        %v1917 = vld [vmem:[%s5 + $0x20] sm:$0xff]
        %v1918 = vld [vmem:[%s5 + $0x28] sm:$0xff]
        %v1919 = vld [vmem:[%s5 + $0x30] sm:$0xff]
        %v1920 = vld [vmem:[%s5 + $0x38] sm:$0xff]
        %v1921 = vld [vmem:[%s5 + $0x40] sm:$0xff]
        %v1922 = vld [vmem:[%s5 + $0x48] sm:$0xff]
        %v1923 = vld [vmem:[%s5 + $0x50] sm:$0xff]
        %v1924 = vld [vmem:[%s5 + $0x58] sm:$0xff]
        %v1925 = vld [vmem:[%s5 + $0x60] sm:$0xff]
        %v1926 = vld [vmem:[%s5 + $0x68] sm:$0xff]
        %v1927 = vld [vmem:[%s5 + $0x70] sm:$0xff]
        %v1928 = vld [vmem:[%s5 + $0x78] sm:$0xff]
        %v1929 = vld [vmem:[%s5 + $0x80] sm:$0xff]
        %v1930 = vld [vmem:[%s5 + $0x88] sm:$0xff]
        %v1931 = vld [vmem:[%s5 + $0x90] sm:$0xff]
        %v1932 = vld [vmem:[%s5 + $0x98] sm:$0xff]
        %v1933 = vld [vmem:[%s5 + $0xa0] sm:$0xff]
        %v1934 = vld [vmem:[%s5 + $0xa8] sm:$0xff]
        %v1935 = vld [vmem:[%s5 + $0xb0] sm:$0xff]
        %v1936 = vld [vmem:[%s5 + $0xb8] sm:$0xff]
        %v1937 = vld [vmem:[%s5 + $0xc0] sm:$0xff]
        %v1938 = vld [vmem:[%s5 + $0xc8] sm:$0xff]
        %v1939 = vld [vmem:[%s5 + $0xd0] sm:$0xff]
        %v1940 = vld [vmem:[%s5 + $0xd8] sm:$0xff]
        %v1941 = vld [vmem:[%s5 + $0xe0] sm:$0xff]
        %v1942 = vld [vmem:[%s5 + $0xe8] sm:$0xff]
        %v1943 = vld [vmem:[%s5 + $0xf0] sm:$0xff]
        %v1944 = vld [vmem:[%s5 + $0xf8] sm:$0xff]
        %v1945 = vld [vmem:[%s12] sm:$0xf]
        %v1946 = vld [vmem:[%s12 + $0x4] sm:$0xf]
        %v1947 = vld [vmem:[%s12 + $0x8] sm:$0xf]
        %v1948 = vld [vmem:[%s12 + $0xc] sm:$0xf]
        %v1949 = vld [vmem:[%s13] sm:$0x1]
        %v1950 = vld [vmem:[%s14] sm:$0x1]
        %v1951 = vpack.c.bf16 %v1875, %v1875
        %v1952 = vpack.c.bf16 %v1912, %v1912
        %v1954 = vlaneseq
        %v1955 = vshrl.u32 %v1954, 7
        %v1956 = vsub.s32 0, %v1955
        %v1957 = vrot.slane %v1949, %v1956
        %v1961 = vunpack.c.l.b16 %v1951
        %v1962 = vunpack.c.l.b16 %v1952
        %v1963 = vsel %vm1657, %v1962, %v1961
        %v1964 = vpack.c.b16 %v1963, %v1963
        %v1969 = vunpack.c.l.b16 %v1945
        %v1970 = vunpack.c.l.b16 %v1946
        %v1971 = vunpack.c.l.b16 %v1947
        %v1972 = vunpack.c.l.b16 %v1948
        %v1973 = vpack.c.b16 %v1970, %v1969
        %v1974 = vpack.c.b16 %v1972, %v1971
        %v1978 = vsel %vm603, %v1964, 0
        %1980 = vmatprep.subr.bf16.mxu0 0
        %1981 = vmatpush1.bf16.msra.mxu0 0
        %1982 = vmatprep.subr.bf16.mxu0 0
        %1983 = vmatpush1.bf16.msra.mxu0 0
        %1984 = vmatprep.subr.bf16.mxu0 0
        %1985 = vmatpush1.bf16.msra.mxu0 0
        %1986 = vmatprep.subr.bf16.mxu0 0
        %1987 = vmatpush1.bf16.msra.mxu0 0
        %1988 = vmatprep.subr.bf16.mxu0 0
        %1989 = vmatpush1.bf16.msra.mxu0 0
        %1990 = vmatprep.subr.bf16.mxu0 0
        %1991 = vmatpush1.bf16.msra.mxu0 0
        %1992 = vmatprep.subr.bf16.mxu0 0
        %1993 = vmatpush1.bf16.msra.mxu0 %v1974
        %1994 = vmatprep.subr.bf16.mxu0 0
        %1995 = vmatpush1.bf16.msra.mxu0 %v1973
        %1996 = vmatprep.subr.bf16.mxu0 0
        %1997 = vmatpush2.bf16.msra.mxu0 0
        %1998 = vmatprep.subr.bf16.mxu0 0
        %1999 = vmatpush2.bf16.msra.mxu0 0
        %2000 = vmatprep.subr.bf16.mxu0 0
        %2001 = vmatpush2.bf16.msra.mxu0 0
        %2002 = vmatprep.subr.bf16.mxu0 0
        %2003 = vmatpush2.bf16.msra.mxu0 0
        %2004 = vmatprep.subr.bf16.mxu0 0
        %2005 = vmatpush2.bf16.msra.mxu0 0
        %2006 = vmatprep.subr.bf16.mxu0 0
        %2007 = vmatpush2.bf16.msra.mxu0 0
        %2008 = vmatprep.subr.bf16.mxu0 0
        %2009 = vmatpush2.bf16.msra.mxu0 0
        %2010 = vmatprep.subr.bf16.mxu0 0
        %2011 = vmatpush2.bf16.msra.mxu0 0
        %2012 = vmatprep.mubr.bf16.mxu0 0
        %2013 = vmatmul.mubr.bf16.gmra.mxu0 %v1978
        %v2014 = vpop.f32.mrf.mxu0
        %v2015 = vadd.f32 %v1957, %v2014
        %v2016 = vpop.f32.mrf.mxu0
        %v2017 = vpop.f32.mrf.mxu0
        %v2018 = vpop.f32.mrf.mxu0
        %2019 = vdwg.mxu0
        %v2022 = vunpack.c.l.s4 1966171168
        %v2023 = vunpack.c.0.s8 %v2022
        %v2024 = vlaneseq
        %v2025 = vshrl.u32 %v2024, 7
        %v2026 = vsub.s32 %v2023, %v2025
        %v2027 = vrot.slane %v2015, %v2026
        %v2028 = vcombine.high %v2027, %v2027
        %v2030 = vunpack.c.l.s4 1966171168
        %v2031 = vunpack.c.0.s8 %v2030
        %v2032 = vlaneseq
        %v2033 = vshrl.u32 %v2032, 7
        %v2034 = vsub.s32 %v2031, %v2033
        %v2035 = vrot.slane %v2027, %v2034
        %v2037 = vunpack.c.l.s4 1966171168
        %v2038 = vunpack.c.0.s8 %v2037
        %v2039 = vlaneseq
        %v2040 = vshrl.u32 %v2039, 7
        %v2041 = vsub.s32 %v2038, %v2040
        %v2042 = vrot.slane %v2028, %v2041
        %v2043 = vlaneseq
        %v2044 = vshrl.u32 %v2043, 7
        %v2045 = vsub.s32 0, %v2044
        %v2046 = vrot.slane %v2035, %v2045
        %v2047 = vlaneseq
        %v2048 = vshrl.u32 %v2047, 7
        %v2049 = vsub.s32 0, %v2048
        %v2050 = vrot.slane %v2042, %v2049
        %v2053 = vadd.f32 %v2046, %v1913
        %v2054 = vadd.f32 %v2046, %v1914
        %v2055 = vadd.f32 %v2046, %v1915
        %v2056 = vadd.f32 %v2046, %v1916
        %v2057 = vadd.f32 %v2046, %v1917
        %v2058 = vadd.f32 %v2046, %v1918
        %v2059 = vadd.f32 %v2046, %v1919
        %v2060 = vadd.f32 %v2046, %v1920
        %v2061 = vadd.f32 %v2046, %v1921
        %v2062 = vadd.f32 %v2046, %v1922
        %v2063 = vadd.f32 %v2046, %v1923
        %v2064 = vadd.f32 %v2046, %v1924
        %v2065 = vadd.f32 %v2046, %v1925
        %v2066 = vadd.f32 %v2046, %v1926
        %v2067 = vadd.f32 %v2046, %v1927
        %v2068 = vadd.f32 %v2046, %v1928
        %v2069 = vadd.f32 %v2050, %v1929
        %v2070 = vadd.f32 %v2050, %v1930
        %v2071 = vadd.f32 %v2050, %v1931
        %v2072 = vadd.f32 %v2050, %v1932
        %v2073 = vadd.f32 %v2050, %v1933
        %v2074 = vadd.f32 %v2050, %v1934
        %v2075 = vadd.f32 %v2050, %v1935
        %v2076 = vadd.f32 %v2050, %v1936
        %v2077 = vadd.f32 %v2050, %v1937
        %v2078 = vadd.f32 %v2050, %v1938
        %v2079 = vadd.f32 %v2050, %v1939
        %v2080 = vadd.f32 %v2050, %v1940
        %v2081 = vadd.f32 %v2050, %v1941
        %v2082 = vadd.f32 %v2050, %v1942
        %v2083 = vadd.f32 %v2050, %v1943
        %v2084 = vadd.f32 %v2050, %v1944
        %v2085 = vtanh.pop %v2053
        %v2086 = vtanh.pop %v2054
        %v2087 = vtanh.pop %v2055
        %v2088 = vtanh.pop %v2056
        %v2089 = vtanh.pop %v2057
        %v2090 = vtanh.pop %v2058
        %v2091 = vtanh.pop %v2059
        %v2092 = vtanh.pop %v2060
        %v2093 = vtanh.pop %v2061
        %v2094 = vtanh.pop %v2062
        %v2095 = vtanh.pop %v2063
        %v2096 = vtanh.pop %v2064
        %v2097 = vtanh.pop %v2065
        %v2098 = vtanh.pop %v2066
        %v2099 = vtanh.pop %v2067
        %v2100 = vtanh.pop %v2068
        %v2101 = vtanh.pop %v2069
        %v2102 = vtanh.pop %v2070
        %v2103 = vtanh.pop %v2071
        %v2104 = vtanh.pop %v2072
        %v2105 = vtanh.pop %v2073
        %v2106 = vtanh.pop %v2074
        %v2107 = vtanh.pop %v2075
        %v2108 = vtanh.pop %v2076
        %v2109 = vtanh.pop %v2077
        %v2110 = vtanh.pop %v2078
        %v2111 = vtanh.pop %v2079
        %v2112 = vtanh.pop %v2080
        %v2113 = vtanh.pop %v2081
        %v2114 = vtanh.pop %v2082
        %v2115 = vtanh.pop %v2083
        %v2116 = vtanh.pop %v2084
        %v2118 = vlaneseq
        %v2119 = vshrl.u32 %v2118, 7
        %v2120 = vsub.s32 0, %v2119
        %v2121 = vrot.slane %v1950, %v2120
        %v2123 = vmul.f32 %v2085, %v2121
        %v2124 = vmul.f32 %v2086, %v2121
        %v2125 = vmul.f32 %v2087, %v2121
        %v2126 = vmul.f32 %v2088, %v2121
        %v2127 = vmul.f32 %v2089, %v2121
        %v2128 = vmul.f32 %v2090, %v2121
        %v2129 = vmul.f32 %v2091, %v2121
        %v2130 = vmul.f32 %v2092, %v2121
        %v2131 = vmul.f32 %v2093, %v2121
        %v2132 = vmul.f32 %v2094, %v2121
        %v2133 = vmul.f32 %v2095, %v2121
        %v2134 = vmul.f32 %v2096, %v2121
        %v2135 = vmul.f32 %v2097, %v2121
        %v2136 = vmul.f32 %v2098, %v2121
        %v2137 = vmul.f32 %v2099, %v2121
        %v2138 = vmul.f32 %v2100, %v2121
        %v2139 = vmul.f32 %v2101, %v2121
        %v2140 = vmul.f32 %v2102, %v2121
        %v2141 = vmul.f32 %v2103, %v2121
        %v2142 = vmul.f32 %v2104, %v2121
        %v2143 = vmul.f32 %v2105, %v2121
        %v2144 = vmul.f32 %v2106, %v2121
        %v2145 = vmul.f32 %v2107, %v2121
        %v2146 = vmul.f32 %v2108, %v2121
        %v2147 = vmul.f32 %v2109, %v2121
        %v2148 = vmul.f32 %v2110, %v2121
        %v2149 = vmul.f32 %v2111, %v2121
        %v2150 = vmul.f32 %v2112, %v2121
        %v2151 = vmul.f32 %v2113, %v2121
        %v2152 = vmul.f32 %v2114, %v2121
        %v2153 = vmul.f32 %v2115, %v2121
        %v2154 = vmul.f32 %v2116, %v2121
        %v2155 = vsel %vm603, %v2123, 0.0
        %2156 = vadd.xlane.f32.xlu0 %v2155
        %v2157 = vpop.xlane.xlu0 %2156
        %v2158 = vsel %vm603, %v2124, 0.0
        %2159 = vadd.xlane.f32.xlu0 %v2158
        %v2160 = vpop.xlane.xlu0 %2159
        %v2161 = vsel %vm603, %v2125, 0.0
        %2162 = vadd.xlane.f32.xlu0 %v2161
        %v2163 = vpop.xlane.xlu0 %2162
        %v2164 = vsel %vm603, %v2126, 0.0
        %2165 = vadd.xlane.f32.xlu0 %v2164
        %v2166 = vpop.xlane.xlu0 %2165
        %v2167 = vsel %vm603, %v2127, 0.0
        %2168 = vadd.xlane.f32.xlu0 %v2167
        %v2169 = vpop.xlane.xlu0 %2168
        %v2170 = vsel %vm603, %v2128, 0.0
        %2171 = vadd.xlane.f32.xlu0 %v2170
        %v2172 = vpop.xlane.xlu0 %2171
        %v2173 = vsel %vm603, %v2129, 0.0
        %2174 = vadd.xlane.f32.xlu0 %v2173
        %v2175 = vpop.xlane.xlu0 %2174
        %v2176 = vsel %vm603, %v2130, 0.0
        %2177 = vadd.xlane.f32.xlu0 %v2176
        %v2178 = vpop.xlane.xlu0 %2177
        %v2179 = vsel %vm603, %v2131, 0.0
        %2180 = vadd.xlane.f32.xlu0 %v2179
        %v2181 = vpop.xlane.xlu0 %2180
        %v2182 = vsel %vm603, %v2132, 0.0
        %2183 = vadd.xlane.f32.xlu0 %v2182
        %v2184 = vpop.xlane.xlu0 %2183
        %v2185 = vsel %vm603, %v2133, 0.0
        %2186 = vadd.xlane.f32.xlu0 %v2185
        %v2187 = vpop.xlane.xlu0 %2186
        %v2188 = vsel %vm603, %v2134, 0.0
        %2189 = vadd.xlane.f32.xlu0 %v2188
        %v2190 = vpop.xlane.xlu0 %2189
        %v2191 = vsel %vm603, %v2135, 0.0
        %2192 = vadd.xlane.f32.xlu0 %v2191
        %v2193 = vpop.xlane.xlu0 %2192
        %v2194 = vsel %vm603, %v2136, 0.0
        %2195 = vadd.xlane.f32.xlu0 %v2194
        %v2196 = vpop.xlane.xlu0 %2195
        %v2197 = vsel %vm603, %v2137, 0.0
        %2198 = vadd.xlane.f32.xlu0 %v2197
        %v2199 = vpop.xlane.xlu0 %2198
        %v2200 = vsel %vm603, %v2138, 0.0
        %2201 = vadd.xlane.f32.xlu0 %v2200
        %v2202 = vpop.xlane.xlu0 %2201
        %v2203 = vsel %vm603, %v2139, 0.0
        %2204 = vadd.xlane.f32.xlu0 %v2203
        %v2205 = vpop.xlane.xlu0 %2204
        %v2206 = vsel %vm603, %v2140, 0.0
        %2207 = vadd.xlane.f32.xlu0 %v2206
        %v2208 = vpop.xlane.xlu0 %2207
        %v2209 = vsel %vm603, %v2141, 0.0
        %2210 = vadd.xlane.f32.xlu0 %v2209
        %v2211 = vpop.xlane.xlu0 %2210
        %v2212 = vsel %vm603, %v2142, 0.0
        %2213 = vadd.xlane.f32.xlu0 %v2212
        %v2214 = vpop.xlane.xlu0 %2213
        %v2215 = vsel %vm603, %v2143, 0.0
        %2216 = vadd.xlane.f32.xlu0 %v2215
        %v2217 = vpop.xlane.xlu0 %2216
        %v2218 = vsel %vm603, %v2144, 0.0
        %2219 = vadd.xlane.f32.xlu0 %v2218
        %v2220 = vpop.xlane.xlu0 %2219
        %v2221 = vsel %vm603, %v2145, 0.0
        %2222 = vadd.xlane.f32.xlu0 %v2221
        %v2223 = vpop.xlane.xlu0 %2222
        %v2224 = vsel %vm603, %v2146, 0.0
        %2225 = vadd.xlane.f32.xlu0 %v2224
        %v2226 = vpop.xlane.xlu0 %2225
        %v2227 = vsel %vm603, %v2147, 0.0
        %2228 = vadd.xlane.f32.xlu0 %v2227
        %v2229 = vpop.xlane.xlu0 %2228
        %v2230 = vsel %vm603, %v2148, 0.0
        %2231 = vadd.xlane.f32.xlu0 %v2230
        %v2232 = vpop.xlane.xlu0 %2231
        %v2233 = vsel %vm603, %v2149, 0.0
        %2234 = vadd.xlane.f32.xlu0 %v2233
        %v2235 = vpop.xlane.xlu0 %2234
        %v2236 = vsel %vm603, %v2150, 0.0
        %2237 = vadd.xlane.f32.xlu0 %v2236
        %v2238 = vpop.xlane.xlu0 %2237
        %v2239 = vsel %vm603, %v2151, 0.0
        %2240 = vadd.xlane.f32.xlu0 %v2239
        %v2241 = vpop.xlane.xlu0 %2240
        %v2242 = vsel %vm603, %v2152, 0.0
        %2243 = vadd.xlane.f32.xlu0 %v2242
        %v2244 = vpop.xlane.xlu0 %2243
        %v2245 = vsel %vm603, %v2153, 0.0
        %2246 = vadd.xlane.f32.xlu0 %v2245
        %v2247 = vpop.xlane.xlu0 %2246
        %v2248 = vsel %vm603, %v2154, 0.0
        %2249 = vadd.xlane.f32.xlu0 %v2248
        %v2250 = vpop.xlane.xlu0 %2249
        %v2251 = vtanh.pop %v2157
        %v2252 = vtanh.pop %v2160
        %v2253 = vtanh.pop %v2163
        %v2254 = vtanh.pop %v2166
        %v2255 = vtanh.pop %v2169
        %v2256 = vtanh.pop %v2172
        %v2257 = vtanh.pop %v2175
        %v2258 = vtanh.pop %v2178
        %v2259 = vtanh.pop %v2181
        %v2260 = vtanh.pop %v2184
        %v2261 = vtanh.pop %v2187
        %v2262 = vtanh.pop %v2190
        %v2263 = vtanh.pop %v2193
        %v2264 = vtanh.pop %v2196
        %v2265 = vtanh.pop %v2199
        %v2266 = vtanh.pop %v2202
        %v2267 = vtanh.pop %v2205
        %v2268 = vtanh.pop %v2208
        %v2269 = vtanh.pop %v2211
        %v2270 = vtanh.pop %v2214
        %v2271 = vtanh.pop %v2217
        %v2272 = vtanh.pop %v2220
        %v2273 = vtanh.pop %v2223
        %v2274 = vtanh.pop %v2226
        %v2275 = vtanh.pop %v2229
        %v2276 = vtanh.pop %v2232
        %v2277 = vtanh.pop %v2235
        %v2278 = vtanh.pop %v2238
        %v2279 = vtanh.pop %v2241
        %v2280 = vtanh.pop %v2244
        %v2281 = vtanh.pop %v2247
        %v2282 = vtanh.pop %v2250
        %v2283 = vmul.f32 %v2251, 10.0
        %v2284 = vmul.f32 %v2252, 10.0
        %v2285 = vmul.f32 %v2253, 10.0
        %v2286 = vmul.f32 %v2254, 10.0
        %v2287 = vmul.f32 %v2255, 10.0
        %v2288 = vmul.f32 %v2256, 10.0
        %v2289 = vmul.f32 %v2257, 10.0
        %v2290 = vmul.f32 %v2258, 10.0
        %v2291 = vmul.f32 %v2259, 10.0
        %v2292 = vmul.f32 %v2260, 10.0
        %v2293 = vmul.f32 %v2261, 10.0
        %v2294 = vmul.f32 %v2262, 10.0
        %v2295 = vmul.f32 %v2263, 10.0
        %v2296 = vmul.f32 %v2264, 10.0
        %v2297 = vmul.f32 %v2265, 10.0
        %v2298 = vmul.f32 %v2266, 10.0
        %v2299 = vmul.f32 %v2267, 10.0
        %v2300 = vmul.f32 %v2268, 10.0
        %v2301 = vmul.f32 %v2269, 10.0
        %v2302 = vmul.f32 %v2270, 10.0
        %v2303 = vmul.f32 %v2271, 10.0
        %v2304 = vmul.f32 %v2272, 10.0
        %v2305 = vmul.f32 %v2273, 10.0
        %v2306 = vmul.f32 %v2274, 10.0
        %v2307 = vmul.f32 %v2275, 10.0
        %v2308 = vmul.f32 %v2276, 10.0
        %v2309 = vmul.f32 %v2277, 10.0
        %v2310 = vmul.f32 %v2278, 10.0
        %v2311 = vmul.f32 %v2279, 10.0
        %v2312 = vmul.f32 %v2280, 10.0
        %v2313 = vmul.f32 %v2281, 10.0
        %v2314 = vmul.f32 %v2282, 10.0
        %v2347 = vlaneseq
        %v2348 = vshrl.u32 %v2347, 7
        %v2349 = vsub.s32 %v1468, %v2348
        %v2350 = vrot.slane %v2283, %v2349
        %v2351 = vlaneseq
        %v2352 = vshrl.u32 %v2351, 7
        %v2353 = vsub.s32 %v1473, %v2352
        %v2354 = vrot.slane %v2284, %v2353
        %v2355 = vsel %vm1478, %v2354, %v2350
        %v2356 = vlaneseq
        %v2357 = vshrl.u32 %v2356, 7
        %v2358 = vsub.s32 %v1480, %v2357
        %v2359 = vrot.slane %v2285, %v2358
        %v2360 = vsel %vm1485, %v2359, %v2355
        %v2361 = vlaneseq
        %v2362 = vshrl.u32 %v2361, 7
        %v2363 = vsub.s32 %v1487, %v2362
        %v2364 = vrot.slane %v2286, %v2363
        %v2365 = vsel %vm1492, %v2364, %v2360
        %v2366 = vlaneseq
        %v2367 = vshrl.u32 %v2366, 7
        %v2368 = vsub.s32 %v1494, %v2367
        %v2369 = vrot.slane %v2287, %v2368
        %v2370 = vsel %vm1499, %v2369, %v2365
        %v2371 = vlaneseq
        %v2372 = vshrl.u32 %v2371, 7
        %v2373 = vsub.s32 %v1501, %v2372
        %v2374 = vrot.slane %v2288, %v2373
        %v2375 = vsel %vm1506, %v2374, %v2370
        %v2376 = vlaneseq
        %v2377 = vshrl.u32 %v2376, 7
        %v2378 = vsub.s32 %v1508, %v2377
        %v2379 = vrot.slane %v2289, %v2378
        %v2380 = vsel %vm1513, %v2379, %v2375
        %v2381 = vlaneseq
        %v2382 = vshrl.u32 %v2381, 7
        %v2383 = vsub.s32 %v1515, %v2382
        %v2384 = vrot.slane %v2290, %v2383
        %v2385 = vsel %vm1520, %v2384, %v2380
        %v2386 = vlaneseq
        %v2387 = vshrl.u32 %v2386, 7
        %v2388 = vsub.s32 %v1522, %v2387
        %v2389 = vrot.slane %v2291, %v2388
        %v2390 = vsel %vm1527, %v2389, %v2385
        %v2391 = vlaneseq
        %v2392 = vshrl.u32 %v2391, 7
        %v2393 = vsub.s32 %v1529, %v2392
        %v2394 = vrot.slane %v2292, %v2393
        %v2395 = vsel %vm1534, %v2394, %v2390
        %v2396 = vlaneseq
        %v2397 = vshrl.u32 %v2396, 7
        %v2398 = vsub.s32 %v1536, %v2397
        %v2399 = vrot.slane %v2293, %v2398
        %v2400 = vsel %vm1541, %v2399, %v2395
        %v2401 = vlaneseq
        %v2402 = vshrl.u32 %v2401, 7
        %v2403 = vsub.s32 %v1543, %v2402
        %v2404 = vrot.slane %v2294, %v2403
        %v2405 = vsel %vm1548, %v2404, %v2400
        %v2406 = vlaneseq
        %v2407 = vshrl.u32 %v2406, 7
        %v2408 = vsub.s32 %v1550, %v2407
        %v2409 = vrot.slane %v2295, %v2408
        %v2410 = vsel %vm1555, %v2409, %v2405
        %v2411 = vlaneseq
        %v2412 = vshrl.u32 %v2411, 7
        %v2413 = vsub.s32 %v1557, %v2412
        %v2414 = vrot.slane %v2296, %v2413
        %v2415 = vsel %vm1562, %v2414, %v2410
        %v2416 = vlaneseq
        %v2417 = vshrl.u32 %v2416, 7
        %v2418 = vsub.s32 %v1564, %v2417
        %v2419 = vrot.slane %v2297, %v2418
        %v2420 = vsel %vm1569, %v2419, %v2415
        %v2421 = vlaneseq
        %v2422 = vshrl.u32 %v2421, 7
        %v2423 = vsub.s32 %v1571, %v2422
        %v2424 = vrot.slane %v2298, %v2423
        %v2425 = vsel %vm1576, %v2424, %v2420
        %v2426 = vlaneseq
        %v2427 = vshrl.u32 %v2426, 7
        %v2428 = vsub.s32 %v1468, %v2427
        %v2429 = vrot.slane %v2299, %v2428
        %v2430 = vlaneseq
        %v2431 = vshrl.u32 %v2430, 7
        %v2432 = vsub.s32 %v1473, %v2431
        %v2433 = vrot.slane %v2300, %v2432
        %v2434 = vsel %vm1478, %v2433, %v2429
        %v2435 = vlaneseq
        %v2436 = vshrl.u32 %v2435, 7
        %v2437 = vsub.s32 %v1480, %v2436
        %v2438 = vrot.slane %v2301, %v2437
        %v2439 = vsel %vm1485, %v2438, %v2434
        %v2440 = vlaneseq
        %v2441 = vshrl.u32 %v2440, 7
        %v2442 = vsub.s32 %v1487, %v2441
        %v2443 = vrot.slane %v2302, %v2442
        %v2444 = vsel %vm1492, %v2443, %v2439
        %v2445 = vlaneseq
        %v2446 = vshrl.u32 %v2445, 7
        %v2447 = vsub.s32 %v1494, %v2446
        %v2448 = vrot.slane %v2303, %v2447
        %v2449 = vsel %vm1499, %v2448, %v2444
        %v2450 = vlaneseq
        %v2451 = vshrl.u32 %v2450, 7
        %v2452 = vsub.s32 %v1501, %v2451
        %v2453 = vrot.slane %v2304, %v2452
        %v2454 = vsel %vm1506, %v2453, %v2449
        %v2455 = vlaneseq
        %v2456 = vshrl.u32 %v2455, 7
        %v2457 = vsub.s32 %v1508, %v2456
        %v2458 = vrot.slane %v2305, %v2457
        %v2459 = vsel %vm1513, %v2458, %v2454
        %v2460 = vlaneseq
        %v2461 = vshrl.u32 %v2460, 7
        %v2462 = vsub.s32 %v1515, %v2461
        %v2463 = vrot.slane %v2306, %v2462
        %v2464 = vsel %vm1520, %v2463, %v2459
        %v2465 = vlaneseq
        %v2466 = vshrl.u32 %v2465, 7
        %v2467 = vsub.s32 %v1522, %v2466
        %v2468 = vrot.slane %v2307, %v2467
        %v2469 = vsel %vm1527, %v2468, %v2464
        %v2470 = vlaneseq
        %v2471 = vshrl.u32 %v2470, 7
        %v2472 = vsub.s32 %v1529, %v2471
        %v2473 = vrot.slane %v2308, %v2472
        %v2474 = vsel %vm1534, %v2473, %v2469
        %v2475 = vlaneseq
        %v2476 = vshrl.u32 %v2475, 7
        %v2477 = vsub.s32 %v1536, %v2476
        %v2478 = vrot.slane %v2309, %v2477
        %v2479 = vsel %vm1541, %v2478, %v2474
        %v2480 = vlaneseq
        %v2481 = vshrl.u32 %v2480, 7
        %v2482 = vsub.s32 %v1543, %v2481
        %v2483 = vrot.slane %v2310, %v2482
        %v2484 = vsel %vm1548, %v2483, %v2479
        %v2485 = vlaneseq
        %v2486 = vshrl.u32 %v2485, 7
        %v2487 = vsub.s32 %v1550, %v2486
        %v2488 = vrot.slane %v2311, %v2487
        %v2489 = vsel %vm1555, %v2488, %v2484
        %v2490 = vlaneseq
        %v2491 = vshrl.u32 %v2490, 7
        %v2492 = vsub.s32 %v1557, %v2491
        %v2493 = vrot.slane %v2312, %v2492
        %v2494 = vsel %vm1562, %v2493, %v2489
        %v2495 = vlaneseq
        %v2496 = vshrl.u32 %v2495, 7
        %v2497 = vsub.s32 %v1564, %v2496
        %v2498 = vrot.slane %v2313, %v2497
        %v2499 = vsel %vm1569, %v2498, %v2494
        %v2500 = vlaneseq
        %v2501 = vshrl.u32 %v2500, 7
        %v2502 = vsub.s32 %v1571, %v2501
        %v2503 = vrot.slane %v2314, %v2502
        %v2504 = vsel %vm1576, %v2503, %v2499
        %v2505 = vsel %vm1657, %v2504, %v2425
        %v2507 = vsel %vm1434, -1e+30, %v2505
        %v2508 = vsel %vm1661, %v2507, -inf
        %2509 = vmax.xlane.f32.xlu0 %v2508
        %v2510 = vpop.xlane.xlu0 %2509
        %v2511 = vsub.f32 %v2507, %v2510
        %v2512 = vmul.f32 %v2511, 1.442695
        %v2513 = vpow.pop %v2512
        %v2514 = vsel %vm1661, %v2513, 0.0
        %2515 = vadd.xlane.f32.xlu0 %v2514
        %v2516 = vpop.xlane.xlu0 %2515
        %v2517 = vrcp.pop %v2516
        %v2518 = vmul.f32 %v2513, %v2517
        %v2519 = vsel %vm1661, %v2518, -inf
        %2520 = vmax.xlane.f32.xlu0 %v2519
        %v2521 = vpop.xlane.xlu0 %2520
        %vm2522 = vcmp.eq.f32.partialorder %v2518, %v2521
        %v2523 = vsel %vm2522, %v1468, 128
        %v2524 = vsel %vm1661, %v2523, 2147483647
        %v2525 = vand.u32 %v2524, 65535
        %v2526 = vshra.s32 %v2524, 16
        %v2527 = vcvt.s32.f32 %v2525
        %v2528 = vcvt.s32.f32 %v2526
        %2529 = vmin.xlane.f32.xlu0 %v2528
        %v2530 = vpop.xlane.xlu0 %2529
        %vm2531 = vcmp.eq.f32.partialorder %v2528, %v2530
        %v2532 = vsel %vm2531, %v2527, inf
        %2533 = vmin.xlane.f32.xlu0 %v2532
        %v2534 = vpop.xlane.xlu0 %2533
        %v2535 = vcvt.f32.s32 %v2534
        %v2536 = vcvt.f32.s32 %v2530
        %v2537 = vshll.u32 %v2536, 16
        %v2538 = vadd.s32 %v2537, %v2535
        %vm2539 = vcmp.eq.s32.totalorder %v1468, %v2538
        %v2540 = vsel %vm2539, 1, 0
        %v2541 = vcvt.s32.f32 %v2540
        %v2542 = vlaneseq
        %v2543 = vshrl.u32 %v2542, 7
        %v2544 = vsub.s32 0, %v2543
        %v2545 = vrot.slane %v2541, %v2544
        %2547 = vbcast.lane.b32.xlu0 %v2545, 256
        %v2548 = vpop.permute.xlu0 %2547
        %s2550 = sor.u32 256, 8
        %2551 = vbcast.lane.b32.xlu0 %v2545, %s2550
        %v2552 = vpop.permute.xlu0 %2551
        %s2554 = sor.u32 256, 16
        %2555 = vbcast.lane.b32.xlu0 %v2545, %s2554
        %v2556 = vpop.permute.xlu0 %2555
        %s2558 = sor.u32 256, 24
        %2559 = vbcast.lane.b32.xlu0 %v2545, %s2558
        %v2560 = vpop.permute.xlu0 %2559
        %s2562 = sor.u32 256, 32
        %2563 = vbcast.lane.b32.xlu0 %v2545, %s2562
        %v2564 = vpop.permute.xlu0 %2563
        %s2566 = sor.u32 256, 40
        %2567 = vbcast.lane.b32.xlu0 %v2545, %s2566
        %v2568 = vpop.permute.xlu0 %2567
        %s2570 = sor.u32 256, 48
        %2571 = vbcast.lane.b32.xlu0 %v2545, %s2570
        %v2572 = vpop.permute.xlu0 %2571
        %s2574 = sor.u32 256, 56
        %2575 = vbcast.lane.b32.xlu0 %v2545, %s2574
        %v2576 = vpop.permute.xlu0 %2575
        %s2578 = sor.u32 256, 64
        %2579 = vbcast.lane.b32.xlu0 %v2545, %s2578
        %v2580 = vpop.permute.xlu0 %2579
        %s2582 = sor.u32 256, 72
        %2583 = vbcast.lane.b32.xlu0 %v2545, %s2582
        %v2584 = vpop.permute.xlu0 %2583
        %s2586 = sor.u32 256, 80
        %2587 = vbcast.lane.b32.xlu0 %v2545, %s2586
        %v2588 = vpop.permute.xlu0 %2587
        %s2590 = sor.u32 256, 88
        %2591 = vbcast.lane.b32.xlu0 %v2545, %s2590
        %v2592 = vpop.permute.xlu0 %2591
        %s2594 = sor.u32 256, 96
        %2595 = vbcast.lane.b32.xlu0 %v2545, %s2594
        %v2596 = vpop.permute.xlu0 %2595
        %s2598 = sor.u32 256, 104
        %2599 = vbcast.lane.b32.xlu0 %v2545, %s2598
        %v2600 = vpop.permute.xlu0 %2599
        %s2602 = sor.u32 256, 112
        %2603 = vbcast.lane.b32.xlu0 %v2545, %s2602
        %v2604 = vpop.permute.xlu0 %2603
        %s2606 = sor.u32 256, 120
        %2607 = vbcast.lane.b32.xlu0 %v2545, %s2606
        %v2608 = vpop.permute.xlu0 %2607
        %v2609 = vlaneseq
        %v2610 = vshrl.u32 %v2609, 7
        %v2611 = vsub.s32 1, %v2610
        %v2612 = vrot.slane %v2541, %v2611
        %2614 = vbcast.lane.b32.xlu0 %v2612, 256
        %v2615 = vpop.permute.xlu0 %2614
        %s2617 = sor.u32 256, 8
        %2618 = vbcast.lane.b32.xlu0 %v2612, %s2617
        %v2619 = vpop.permute.xlu0 %2618
        %s2621 = sor.u32 256, 16
        %2622 = vbcast.lane.b32.xlu0 %v2612, %s2621
        %v2623 = vpop.permute.xlu0 %2622
        %s2625 = sor.u32 256, 24
        %2626 = vbcast.lane.b32.xlu0 %v2612, %s2625
        %v2627 = vpop.permute.xlu0 %2626
        %s2629 = sor.u32 256, 32
        %2630 = vbcast.lane.b32.xlu0 %v2612, %s2629
        %v2631 = vpop.permute.xlu0 %2630
        %s2633 = sor.u32 256, 40
        %2634 = vbcast.lane.b32.xlu0 %v2612, %s2633
        %v2635 = vpop.permute.xlu0 %2634
        %s2637 = sor.u32 256, 48
        %2638 = vbcast.lane.b32.xlu0 %v2612, %s2637
        %v2639 = vpop.permute.xlu0 %2638
        %s2641 = sor.u32 256, 56
        %2642 = vbcast.lane.b32.xlu0 %v2612, %s2641
        %v2643 = vpop.permute.xlu0 %2642
        %s2645 = sor.u32 256, 64
        %2646 = vbcast.lane.b32.xlu0 %v2612, %s2645
        %v2647 = vpop.permute.xlu0 %2646
        %s2649 = sor.u32 256, 72
        %2650 = vbcast.lane.b32.xlu0 %v2612, %s2649
        %v2651 = vpop.permute.xlu0 %2650
        %s2653 = sor.u32 256, 80
        %2654 = vbcast.lane.b32.xlu0 %v2612, %s2653
        %v2655 = vpop.permute.xlu0 %2654
        %s2657 = sor.u32 256, 88
        %2658 = vbcast.lane.b32.xlu0 %v2612, %s2657
        %v2659 = vpop.permute.xlu0 %2658
        %s2661 = sor.u32 256, 96
        %2662 = vbcast.lane.b32.xlu0 %v2612, %s2661
        %v2663 = vpop.permute.xlu0 %2662
        %s2665 = sor.u32 256, 104
        %2666 = vbcast.lane.b32.xlu0 %v2612, %s2665
        %v2667 = vpop.permute.xlu0 %2666
        %s2669 = sor.u32 256, 112
        %2670 = vbcast.lane.b32.xlu0 %v2612, %s2669
        %v2671 = vpop.permute.xlu0 %2670
        %s2673 = sor.u32 256, 120
        %2674 = vbcast.lane.b32.xlu0 %v2612, %s2673
        %v2675 = vpop.permute.xlu0 %2674
        %v2676 = vld [vmem:[%s3] sm:$0xff]
        %v2677 = vld [vmem:[%s3 + $0x8] sm:$0xff]
        %v2678 = vld [vmem:[%s3 + $0x10] sm:$0xff]
        %v2679 = vld [vmem:[%s3 + $0x18] sm:$0xff]
        %v2680 = vld [vmem:[%s3 + $0x20] sm:$0xff]
        %v2681 = vld [vmem:[%s3 + $0x28] sm:$0xff]
        %v2682 = vld [vmem:[%s3 + $0x30] sm:$0xff]
        %v2683 = vld [vmem:[%s3 + $0x38] sm:$0xff]
        %v2684 = vld [vmem:[%s3 + $0x40] sm:$0xff]
        %v2685 = vld [vmem:[%s3 + $0x48] sm:$0xff]
        %v2686 = vld [vmem:[%s3 + $0x50] sm:$0xff]
        %v2687 = vld [vmem:[%s3 + $0x58] sm:$0xff]
        %v2688 = vld [vmem:[%s3 + $0x60] sm:$0xff]
        %v2689 = vld [vmem:[%s3 + $0x68] sm:$0xff]
        %v2690 = vld [vmem:[%s3 + $0x70] sm:$0xff]
        %v2691 = vld [vmem:[%s3 + $0x78] sm:$0xff]
        %v2692 = vld [vmem:[%s3 + $0x80] sm:$0xff]
        %v2693 = vld [vmem:[%s3 + $0x88] sm:$0xff]
        %v2694 = vld [vmem:[%s3 + $0x90] sm:$0xff]
        %v2695 = vld [vmem:[%s3 + $0x98] sm:$0xff]
        %v2696 = vld [vmem:[%s3 + $0xa0] sm:$0xff]
        %v2697 = vld [vmem:[%s3 + $0xa8] sm:$0xff]
        %v2698 = vld [vmem:[%s3 + $0xb0] sm:$0xff]
        %v2699 = vld [vmem:[%s3 + $0xb8] sm:$0xff]
        %v2700 = vld [vmem:[%s3 + $0xc0] sm:$0xff]
        %v2701 = vld [vmem:[%s3 + $0xc8] sm:$0xff]
        %v2702 = vld [vmem:[%s3 + $0xd0] sm:$0xff]
        %v2703 = vld [vmem:[%s3 + $0xd8] sm:$0xff]
        %v2704 = vld [vmem:[%s3 + $0xe0] sm:$0xff]
        %v2705 = vld [vmem:[%s3 + $0xe8] sm:$0xff]
        %v2706 = vld [vmem:[%s3 + $0xf0] sm:$0xff]
        %v2707 = vld [vmem:[%s3 + $0xf8] sm:$0xff]
        %v2708 = vmul.f32 %v2548, %v2676
        %v2709 = vmul.f32 %v2552, %v2677
        %v2710 = vmul.f32 %v2556, %v2678
        %v2711 = vmul.f32 %v2560, %v2679
        %v2712 = vmul.f32 %v2564, %v2680
        %v2713 = vmul.f32 %v2568, %v2681
        %v2714 = vmul.f32 %v2572, %v2682
        %v2715 = vmul.f32 %v2576, %v2683
        %v2716 = vmul.f32 %v2580, %v2684
        %v2717 = vmul.f32 %v2584, %v2685
        %v2718 = vmul.f32 %v2588, %v2686
        %v2719 = vmul.f32 %v2592, %v2687
        %v2720 = vmul.f32 %v2596, %v2688
        %v2721 = vmul.f32 %v2600, %v2689
        %v2722 = vmul.f32 %v2604, %v2690
        %v2723 = vmul.f32 %v2608, %v2691
        %v2724 = vmul.f32 %v2615, %v2692
        %v2725 = vmul.f32 %v2619, %v2693
        %v2726 = vmul.f32 %v2623, %v2694
        %v2727 = vmul.f32 %v2627, %v2695
        %v2728 = vmul.f32 %v2631, %v2696
        %v2729 = vmul.f32 %v2635, %v2697
        %v2730 = vmul.f32 %v2639, %v2698
        %v2731 = vmul.f32 %v2643, %v2699
        %v2732 = vmul.f32 %v2647, %v2700
        %v2733 = vmul.f32 %v2651, %v2701
        %v2734 = vmul.f32 %v2655, %v2702
        %v2735 = vmul.f32 %v2659, %v2703
        %v2736 = vmul.f32 %v2663, %v2704
        %v2737 = vmul.f32 %v2667, %v2705
        %v2738 = vmul.f32 %v2671, %v2706
        %v2739 = vmul.f32 %v2675, %v2707
        %v2740 = vsel %vm603, %v2708, 0.0
        %v2741 = vsel %vm603, %v2709, 0.0
        %v2742 = vadd.f32 %v2740, %v2741
        %v2743 = vsel %vm603, %v2710, 0.0
        %v2744 = vadd.f32 %v2742, %v2743
        %v2745 = vsel %vm603, %v2711, 0.0
        %v2746 = vadd.f32 %v2744, %v2745
        %v2747 = vsel %vm603, %v2712, 0.0
        %v2748 = vadd.f32 %v2746, %v2747
        %v2749 = vsel %vm603, %v2713, 0.0
        %v2750 = vadd.f32 %v2748, %v2749
        %v2751 = vsel %vm603, %v2714, 0.0
        %v2752 = vadd.f32 %v2750, %v2751
        %v2753 = vsel %vm603, %v2715, 0.0
        %v2754 = vadd.f32 %v2752, %v2753
        %v2755 = vsel %vm603, %v2716, 0.0
        %v2756 = vadd.f32 %v2754, %v2755
        %v2757 = vsel %vm603, %v2717, 0.0
        %v2758 = vadd.f32 %v2756, %v2757
        %v2759 = vsel %vm603, %v2718, 0.0
        %v2760 = vadd.f32 %v2758, %v2759
        %v2761 = vsel %vm603, %v2719, 0.0
        %v2762 = vadd.f32 %v2760, %v2761
        %v2763 = vsel %vm603, %v2720, 0.0
        %v2764 = vadd.f32 %v2762, %v2763
        %v2765 = vsel %vm603, %v2721, 0.0
        %v2766 = vadd.f32 %v2764, %v2765
        %v2767 = vsel %vm603, %v2722, 0.0
        %v2768 = vadd.f32 %v2766, %v2767
        %v2769 = vsel %vm603, %v2723, 0.0
        %v2770 = vadd.f32 %v2768, %v2769
        %v2771 = vrot.slane %v2770, 4
        %v2772 = vadd.f32 %v2770, %v2771
        %v2773 = vrot.slane %v2772, 2
        %v2774 = vadd.f32 %v2772, %v2773
        %v2775 = vrot.slane %v2774, 1
        %v2776 = vadd.f32 %v2774, %v2775
        %v2777 = vsel %vm603, %v2724, 0.0
        %v2778 = vsel %vm603, %v2725, 0.0
        %v2779 = vadd.f32 %v2777, %v2778
        %v2780 = vsel %vm603, %v2726, 0.0
        %v2781 = vadd.f32 %v2779, %v2780
        %v2782 = vsel %vm603, %v2727, 0.0
        %v2783 = vadd.f32 %v2781, %v2782
        %v2784 = vsel %vm603, %v2728, 0.0
        %v2785 = vadd.f32 %v2783, %v2784
        %v2786 = vsel %vm603, %v2729, 0.0
        %v2787 = vadd.f32 %v2785, %v2786
        %v2788 = vsel %vm603, %v2730, 0.0
        %v2789 = vadd.f32 %v2787, %v2788
        %v2790 = vsel %vm603, %v2731, 0.0
        %v2791 = vadd.f32 %v2789, %v2790
        %v2792 = vsel %vm603, %v2732, 0.0
        %v2793 = vadd.f32 %v2791, %v2792
        %v2794 = vsel %vm603, %v2733, 0.0
        %v2795 = vadd.f32 %v2793, %v2794
        %v2796 = vsel %vm603, %v2734, 0.0
        %v2797 = vadd.f32 %v2795, %v2796
        %v2798 = vsel %vm603, %v2735, 0.0
        %v2799 = vadd.f32 %v2797, %v2798
        %v2800 = vsel %vm603, %v2736, 0.0
        %v2801 = vadd.f32 %v2799, %v2800
        %v2802 = vsel %vm603, %v2737, 0.0
        %v2803 = vadd.f32 %v2801, %v2802
        %v2804 = vsel %vm603, %v2738, 0.0
        %v2805 = vadd.f32 %v2803, %v2804
        %v2806 = vsel %vm603, %v2739, 0.0
        %v2807 = vadd.f32 %v2805, %v2806
        %v2808 = vrot.slane %v2807, 4
        %v2809 = vadd.f32 %v2807, %v2808
        %v2810 = vrot.slane %v2809, 2
        %v2811 = vadd.f32 %v2809, %v2810
        %v2812 = vrot.slane %v2811, 1
        %v2813 = vadd.f32 %v2811, %v2812
        %2814 = vst [vmem:[%s545] sm:$0x3] %v2518
        %vm2815 = vcmask 1024
        %2816 = vst.msk [vmem:[%s559] sm:$0x3] %vm2815, %v2538
        %vm2817 = vcmask 254976
        %2818 = vst.msk [vmem:[#allocation8] sm:$0x3] %vm2817, %v1102
        %2819 = vst.msk [vmem:[#allocation10] sm:$0x3] %vm2817, %v1100
        %v2822 = vsel %vm1657, %v2813, %v2776
        %2824 = vst.msk [vmem:[#allocation2] sm:$0x3] %vm2817, %v2822
        %2825 = vst.msk [vmem:[#allocation3] sm:$0x3] %vm2817, %v1102
        %2826 = vst.msk [vmem:[#allocation4] sm:$0x3] %vm2817, %v1100
        %v2827 = vmax.f32 %v580, %v2541
        %2828 = vst [vmem:[#allocation5] sm:$0x3] %v2827
        %s2829 = sand.u32 %s357, 1
        %s2830 = scalar_lea.sflag [#allocation7], %s2829
        %s2831 = sand.u32 %s357, 1
        %s2832 = smul.addr %s2831, 2
        %s2833 = scalar_lea.vmem [#allocation6], %s2832
        %p2834 = scmp.lt.s32.totalorder %s34, 2
        %s2835 = scalar_select %p2834, %s34, 2
        %s2836 = smul.addr %s2835, 2
        %s2837 = scalar_lea.vmem %s16, %s2836
        // Predicated region
        $region85: #{tpu_custom_call.1} parent=79 // pred_check
          %p2838 = pneg %p367
        $region86: #{tpu_custom_call.1} parent=79 // pred_check_branch
          %2840 = sbr.rel (%p2838) target = $region88
        $region87: #{tpu_custom_call.1} parent=79 // pred_region
          %s2842 = ssub.s32 32, 32
          %2843 = vsyncadd %s2830, %s2842
          %s2844 = smul.addr %s34, 32
          %s2845 = scalar_lea.hbm %s15, %s2844
          %s2847 = sshll.u32 %s2833, 4
          %s2848 = int_to_ptr.vmem [resolvable:$true] %s2847
          %2850 = dma.vmem_to_hbm [thread:$0]  %s2848, 32, %s2845, %s2830
        $region88: #{tpu_custom_call.1} parent=79 // pred_fallthru
          _
        // Predicated region
        $region89: #{tpu_custom_call.1} parent=79 // pred_check
          %p2851 = pneg %p393
        $region90: #{tpu_custom_call.1} parent=79 // pred_check_branch
          %2853 = sbr.rel (%p2851) target = $region92
        $region91: #{tpu_custom_call.1} parent=79 // pred_region
          _
        $region92: #{tpu_custom_call.1} parent=79 // pred_fallthru
          _
        // Predicated region
        $region93: #{tpu_custom_call.1} parent=79 // pred_check
          %p2854 = pneg %p414
        $region94: #{tpu_custom_call.1} parent=79 // pred_check_branch
          %2856 = sbr.rel (%p2854) target = $region96
        $region95: #{tpu_custom_call.1} parent=79 // pred_region
          %s2858 = ssub.s32 32, 32
          %2859 = vsyncadd [#allocation9], %s2858
          %s2861 = sshll.u32 [#allocation8], 4
          %s2862 = int_to_ptr.vmem [resolvable:$true] %s2861
          %2864 = dma.vmem_to_hbm [thread:$0]  %s2862, 32, %s17, [#allocation9]
        $region96: #{tpu_custom_call.1} parent=79 // pred_fallthru
          _
        // Predicated region
        $region97: #{tpu_custom_call.1} parent=79 // pred_check
          %p2865 = pneg %p435
        $region98: #{tpu_custom_call.1} parent=79 // pred_check_branch
          %2867 = sbr.rel (%p2865) target = $region100
        $region99: #{tpu_custom_call.1} parent=79 // pred_region
          %s2869 = ssub.s32 32, 32
          %2870 = vsyncadd [#allocation9], %s2869
          %s2872 = sshll.u32 [#allocation10], 4
          %s2873 = int_to_ptr.vmem [resolvable:$true] %s2872
          %2875 = dma.vmem_to_hbm [thread:$0]  %s2873, 32, %s18, [#allocation9]
        $region100: #{tpu_custom_call.1} parent=79 // pred_fallthru
          _
        // Predicated region
        $region101: #{tpu_custom_call.1} parent=79 // pred_check
          %p2876 = pneg %p414
        $region102: #{tpu_custom_call.1} parent=79 // pred_check_branch
          %2878 = sbr.rel (%p2876) target = $region104
        $region103: #{tpu_custom_call.1} parent=79 // pred_region
          %2879 = dma.done [#allocation9], 32
        $region104: #{tpu_custom_call.1} parent=79 // pred_fallthru
          _
        // Predicated region
        $region105: #{tpu_custom_call.1} parent=79 // pred_check
          %p2880 = pneg %p435
        $region106: #{tpu_custom_call.1} parent=79 // pred_check_branch
          %2882 = sbr.rel (%p2880) target = $region108
        $region107: #{tpu_custom_call.1} parent=79 // pred_region
          %2883 = dma.done [#allocation9], 32
        $region108: #{tpu_custom_call.1} parent=79 // pred_fallthru
          _
      $region80: #{tpu_custom_call.1} parent=5 // pred_fallthru
        _
      %p2884 = scmp.le.s32.totalorder 2, %s29
      // Predicated region
      $region109: #{tpu_custom_call.1} parent=5 // pred_check
        %p2885 = pneg %p2884
      $region110: #{tpu_custom_call.1} parent=5 // pred_check_branch
        %2887 = sbr.rel (%p2885) target = $region112
      $region111: #{tpu_custom_call.1} parent=5 // pred_region
        %s2888 = ssub.s32 %s29, 2
        // Predicated region
        $region113: #{tpu_custom_call.1} parent=111 // pred_check
          %p2889 = pneg %p373
        $region114: #{tpu_custom_call.1} parent=111 // pred_check_branch
          %2891 = sbr.rel (%p2889) target = $region116
        $region115: #{tpu_custom_call.1} parent=111 // pred_region
          %s2892 = sand.u32 %s358, 1
          %s2893 = scalar_lea.sflag [#allocation7], %s2892
          %s2894 = sand.u32 %s358, 1
          %s2895 = smul.addr %s2894, 2
          %s2896 = scalar_lea.vmem [#allocation6], %s2895
          %2897 = dma.done %s2893, 32
        $region116: #{tpu_custom_call.1} parent=111 // pred_fallthru
          _
        // Predicated region
        $region117: #{tpu_custom_call.1} parent=111 // pred_check
          %p2898 = pneg %p399
        $region118: #{tpu_custom_call.1} parent=111 // pred_check_branch
          %2900 = sbr.rel (%p2898) target = $region120
        $region119: #{tpu_custom_call.1} parent=111 // pred_region
          %p2901 = scmp.lt.s32.totalorder %s35, 2
          %s2902 = scalar_select %p2901, %s35, 2
          %s2903 = smul.addr %s2902, 2
          %s2904 = scalar_lea.vmem %s16, %s2903
        $region120: #{tpu_custom_call.1} parent=111 // pred_fallthru
          _
      $region112: #{tpu_custom_call.1} parent=5 // pred_fallthru
        _
    $region6: #{tpu_custom_call.1} parent=1 // loop_footer
      %s33 = sadd.s32 1, %s29
    $region7: #{tpu_custom_call.1} parent=1 // loop_footer_branch
      %28 = sbr.rel target = $region3
    $region8: #{tpu_custom_call.1} parent=1 // loop_exit
      _
    %2905 = vsyncpa [#allocation7], 1
    %s2906 = scalar_lea.sflag [#allocation7], 1
    %2907 = vsyncpa %s2906, 1
    %2908 = vsyncpa [#allocation9], 1

</llo_original>
